<compile_context>
chip_gen: v6e
topology: v6e:2x2x1
jax: 0.10.0
libtpu: 0.0.40
codegen_flags: <defaults>
</compile_context>

<pallas_src>
import jax
import jax.numpy as jnp
from jax.experimental import pallas as pl
from jax.experimental.pallas import tpu as pltpu


def _mcabmil_kernel(x_ref, w1t_ref, aux_ref, wc_ref, bc_ref, y_ref, a_ref):
    Bt, N, L = x_ref.shape
    D = w1t_ref.shape[1]

    x3 = x_ref[...]                       # (Bt, N, L)
    b1 = aux_ref[0:1, :]                  # (1, D)  bias of Linear(L, D)
    w2r = aux_ref[1:2, :]                 # (1, D)  row of Linear(D, K=1).weight

    # Attention MLP stage 1 — the big MXU matmul: (Bt*N, L) @ (L, D).
    # The (Bt, N, L) -> (Bt*N, L) merge keeps the same (8,128) tiling (N == 8
    # sublanes per bag), and the (Bt*N, D) -> (Bt, N, D) split is tile-exact.
    x2 = x3.reshape(Bt * N, L)
    h = jnp.tanh(
        jnp.dot(x2, w1t_ref[...], preferred_element_type=jnp.float32) + b1)   # (Bt*N, D)
    h3 = h.reshape(Bt, N, D)

    # Stage 2 (D -> K=1): VPU multiply + lane reduce -> (Bt, N), then an XLU
    # transpose to the lane-dense (N, Bt) layout (lanes = bags).
    logits = jnp.sum(h3 * w2r.reshape(1, 1, D), axis=-1)                      # (Bt, N)
    logits_t = logits.T                                                        # (N, Bt)
    # NOTE: b2 is intentionally omitted; softmax(z + b2) == softmax(z).

    # Softmax over instances of each bag (sublane axis, N rows), lane-dense.
    logits_t = logits_t - jnp.max(logits_t, axis=0, keepdims=True)
    e = jnp.exp(logits_t)
    attn_t = e / jnp.sum(e, axis=0, keepdims=True)                            # (N, Bt)
    a_ref[...] = attn_t                                                        # lane-dense store

    # Weighted pooling M = A @ x (contraction length N): broadcast + sublane reduce.
    attn_bn = attn_t.T                                                         # (Bt, N)
    m = jnp.sum(attn_bn[:, :, None] * x3, axis=1)                              # (Bt, L)

    # Classifier Linear(L*K -> OUT) as one dot in the lane-dense domain:
    # (OUT, L) @ (L, Bt) -> (OUT, Bt); bias broadcasts along lanes.
    y_t = jnp.dot(wc_ref[...], m.T, preferred_element_type=jnp.float32)       # (OUT, Bt)
    y_ref[...] = y_t + bc_ref[...]


def prepare_params(params):
    """Hoist per-call transposes / packing out of the forward path (run once)."""
    D, L = params["w1"].shape
    K = params["w2"].shape[0]
    assert K == 1, "mcabmil hardcodes K == 1; classifier layout only valid for K == 1"
    out = params["wc"].shape[0]
    assert params["wc"].shape[1] == L * K
    f32 = jnp.float32
    return {
        "w1t": params["w1"].T.astype(f32),                                      # (L, D)
        "aux": jnp.stack([params["b1"], params["w2"][0]], axis=0).astype(f32),  # (2, D)
        "wc": params["wc"].astype(f32),                                         # (out, L)
        "bc": params["bc"].reshape(out, 1).astype(f32),                         # (out, 1)
        # b2 deliberately dropped (softmax shift-invariance).
    }


def _plan_tiles(B, target):
    """Return (bag_tile, padded_B).

    Prefer a multiple-of-128 divisor of B (lane-dense, (8,128)-aligned output
    blocks) with >= 2 grid steps (v7x megacore). Small / awkward batches fall
    back to a single full-batch block (block dim == array dim, so no alignment
    constraint and no padding). Only large ragged batches pad, once, to a
    multiple of the tile (padded all-zero bags give a finite uniform softmax
    and are sliced off)."""
    target = max(128, (min(int(target), 4096) // 128) * 128)
    best = 0
    bt = 128
    while bt <= min(target, B // 2):
        if B % bt == 0:
            best = bt
        bt += 128
    if best:
        return best, B
    if B <= 2 * target:
        return B, B
    b_pad = pl.cdiv(B, target) * target
    return target, b_pad


def mcabmil_forward(x, prep, *, bag_tile=1024):
    """x: (B, N, L) float32, B bags of N instances. Returns (Y (B,K,out), A (B,K,N))."""
    B, N, L = x.shape
    D = prep["w1t"].shape[1]
    OUT = prep["wc"].shape[0]
    K = 1

    Bt, B_pad = _plan_tiles(B, bag_tile)
    if B_pad != B:
        x = jnp.pad(x, ((0, B_pad - B), (0, 0), (0, 0)))
    n_tiles = B_pad // Bt

    y_t, a_t = pl.pallas_call(
        _mcabmil_kernel,
        out_shape=(
            jax.ShapeDtypeStruct((OUT, B_pad), jnp.float32),   # Y, lane-dense (bags on lanes)
            jax.ShapeDtypeStruct((N, B_pad), jnp.float32),     # A, lane-dense (bags on lanes)
        ),
        grid=(n_tiles,),
        in_specs=[
            pl.BlockSpec((Bt, N, L), lambda i: (i, 0, 0)),     # x tile (per grid step)
            pl.BlockSpec((L, D), lambda i: (0, 0)),            # w1t, resident
            pl.BlockSpec((2, D), lambda i: (0, 0)),            # packed [b1; w2 row]
            pl.BlockSpec((OUT, L), lambda i: (0, 0)),          # classifier weight
            pl.BlockSpec((OUT, 1), lambda i: (0, 0)),          # classifier bias
        ],
        out_specs=(
            pl.BlockSpec((OUT, Bt), lambda i: (0, i)),
            pl.BlockSpec((N, Bt), lambda i: (0, i)),
        ),
        compiler_params=pltpu.CompilerParams(
            dimension_semantics=("parallel",),
            vmem_limit_bytes=32 * 1024 * 1024,                 # raises v5e's 16 MiB default
        ),
    )(x, prep["w1t"], prep["aux"], prep["wc"], prep["bc"])

    # Tiny wrapper-side relayouts (B*N and B*OUT floats) back to PyTorch order.
    y = y_t[:, :B].T.reshape(B, K, OUT)
    attn = a_t[:, :B].T.reshape(B, K, N)
    return y, attn


def init_params(key, input_size=32, output_size=1, D=128, K=1):
    """Deterministic synthetic parameters matching nn.Linear shapes."""
    k1, k2, k3, k4, k5, k6 = jax.random.split(key, 6)
    L = input_size
    return {
        "w1": 0.05 * jax.random.normal(k1, (D, L), jnp.float32),                # Linear(L, D).weight
        "b1": 0.05 * jax.random.normal(k2, (D,), jnp.float32),                  # Linear(L, D).bias
        "w2": 0.05 * jax.random.normal(k3, (K, D), jnp.float32),                # Linear(D, K).weight
        "b2": 0.05 * jax.random.normal(k4, (K,), jnp.float32),                  # Linear(D, K).bias
        "wc": 0.05 * jax.random.normal(k5, (output_size, L * K), jnp.float32),  # classifier.weight
        "bc": 0.05 * jax.random.normal(k6, (output_size,), jnp.float32),        # classifier.bias
    }


def _reference_bag(x, params):
    """Pure-JAX single-bag forward mirroring the PyTorch module (K == 1)."""
    hp = jax.lax.Precision.HIGHEST
    h = jnp.tanh(jnp.dot(x, params["w1"].T, precision=hp) + params["b1"])
    a = jnp.dot(h, params["w2"].T, precision=hp) + params["b2"]   # (N, K)
    a = jax.nn.softmax(a.T, axis=1)                               # (K, N)
    m = jnp.dot(a, x, precision=hp)                               # (K, L)
    y = jnp.dot(m, params["wc"].T, precision=hp) + params["bc"]   # (K, out)
    return y, a


def reference_forward(x_batched, params):
    return jax.vmap(lambda xb: _reference_bag(xb, params))(x_batched)


if __name__ == "__main__":
    key = jax.random.PRNGKey(0)
    kx, kp = jax.random.split(key)

    N, L, D, OUT = 8, 32, 128, 1
    params = init_params(kp, input_size=L, output_size=OUT, D=D, K=1)
    prep = prepare_params(params)

    # B=256 exercises the aligned 2-step grid (Bt=128, lane-dense stores,
    # megacore split); B=50 exercises the single full-batch block fallback.
    for B in (256, 50):
        xb = jax.random.normal(jax.random.fold_in(kx, B), (B, N, L), jnp.float32)

        y, attn = mcabmil_forward(xb, prep, bag_tile=1024)
        jax.block_until_ready((y, attn))

        y_ref, attn_ref = reference_forward(xb, params)
        assert y.shape == y_ref.shape and attn.shape == attn_ref.shape
        # 1e-3 tolerance absorbs MXU fp32 multi-pass vs HIGHEST-precision
        # reference differences; real layout/softmax bugs are O(1) errors.
        assert jnp.allclose(y, y_ref, atol=1e-3, rtol=1e-3), "Y mismatch"
        assert jnp.allclose(attn, attn_ref, atol=1e-3, rtol=1e-3), "A mismatch"

    print("KERNEL_OK")
</pallas_src>

<mosaic_0001>
module attributes {stable_mosaic.version = 11 : i64} {
  func.func @_mcabmil_kernel(%arg0: i32, %arg1: memref<128x8x32xf32, #tpu.memory_space<vmem>>, %arg2: memref<32x128xf32, #tpu.memory_space<vmem>>, %arg3: memref<2x128xf32, #tpu.memory_space<vmem>>, %arg4: memref<1x32xf32, #tpu.memory_space<vmem>>, %arg5: memref<1x1xf32, #tpu.memory_space<vmem>>, %arg6: memref<1x128xf32, #tpu.memory_space<vmem>>, %arg7: memref<8x128xf32, #tpu.memory_space<vmem>>) attributes {dimension_semantics = [#tpu.dimension_semantics<parallel>], iteration_bounds = array<i64: 2>, scalar_prefetch = 0 : i64, scratch_operands = 0 : i64, tpu.core_type = #tpu.core_type<tc>, window_params = [{transform_indices = @transform_0, window_bounds = array<i64: 128, 8, 32>}, {pipeline_mode = #tpu.pipeline_mode<synchronous>, transform_indices = @transform_1, window_bounds = array<i64: 32, 128>}, {pipeline_mode = #tpu.pipeline_mode<synchronous>, transform_indices = @transform_2, window_bounds = array<i64: 2, 128>}, {pipeline_mode = #tpu.pipeline_mode<synchronous>, transform_indices = @transform_3, window_bounds = array<i64: 1, 32>}, {pipeline_mode = #tpu.pipeline_mode<synchronous>, transform_indices = @transform_4, window_bounds = array<i64: 1, 1>}, {transform_indices = @transform_5, window_bounds = array<i64: 1, 128>}, {transform_indices = @transform_6, window_bounds = array<i64: 8, 128>}]} {
    %c0 = arith.constant 0 : index
    %c0_0 = arith.constant 0 : index
    %c0_1 = arith.constant 0 : index
    %0 = vector.load %arg1[%c0, %c0_0, %c0_1] : memref<128x8x32xf32, #tpu.memory_space<vmem>>, vector<128x8x32xf32>
    %c0_2 = arith.constant 0 : index
    %c0_3 = arith.constant 0 : index
    %1 = vector.load %arg3[%c0_2, %c0_3] : memref<2x128xf32, #tpu.memory_space<vmem>>, vector<1x128xf32>
    %c1 = arith.constant 1 : index
    %c0_4 = arith.constant 0 : index
    %2 = vector.load %arg3[%c1, %c0_4] : memref<2x128xf32, #tpu.memory_space<vmem>>, vector<1x128xf32>
    %3 = vector.shape_cast %0 : vector<128x8x32xf32> to vector<1024x32xf32>
    %c0_5 = arith.constant 0 : index
    %c0_6 = arith.constant 0 : index
    %4 = vector.load %arg2[%c0_5, %c0_6] : memref<32x128xf32, #tpu.memory_space<vmem>>, vector<32x128xf32>
    %cst = arith.constant dense<0.000000e+00> : vector<1024x128xf32>
    %5 = tpu.matmul %3, %4, %cst {dimension_numbers = #tpu.dot_dimension_numbers<[1], [0], [0], [1], [0, 0, 1, 1], [], []>} : vector<1024x32xf32>, vector<32x128xf32>, vector<1024x128xf32> -> vector<1024x128xf32>
    %6 = vector.broadcast %1 : vector<1x128xf32> to vector<1024x128xf32>
    %7 = arith.addf %5, %6 : vector<1024x128xf32>
    %8 = math.tanh %7 : vector<1024x128xf32>
    %9 = vector.shape_cast %8 : vector<1024x128xf32> to vector<128x8x128xf32>
    %10 = vector.shape_cast %2 : vector<1x128xf32> to vector<1x1x128xf32>
    %11 = vector.broadcast %10 : vector<1x1x128xf32> to vector<128x8x128xf32>
    %12 = arith.mulf %9, %11 : vector<128x8x128xf32>
    %cst_7 = arith.constant dense<0.000000e+00> : vector<128x8xf32>
    %13 = vector.multi_reduction <add>, %12, %cst_7 [2] : vector<128x8x128xf32> to vector<128x8xf32>
    %14 = tpu.transpose %13, [1, 0] : vector<128x8xf32> -> vector<8x128xf32>
    %cst_8 = arith.constant dense<0xFF800000> : vector<128xf32>
    %15 = vector.multi_reduction <maximumf>, %14, %cst_8 [0] : vector<8x128xf32> to vector<128xf32>
    %16 = vector.shape_cast %15 : vector<128xf32> to vector<1x128xf32>
    %17 = vector.broadcast %16 : vector<1x128xf32> to vector<8x128xf32>
    %18 = arith.subf %14, %17 : vector<8x128xf32>
    %19 = math.exp %18 : vector<8x128xf32>
    %cst_9 = arith.constant dense<0.000000e+00> : vector<128xf32>
    %20 = vector.multi_reduction <add>, %19, %cst_9 [0] : vector<8x128xf32> to vector<128xf32>
    %21 = vector.shape_cast %20 : vector<128xf32> to vector<1x128xf32>
    %22 = vector.broadcast %21 : vector<1x128xf32> to vector<8x128xf32>
    %23 = arith.divf %19, %22 : vector<8x128xf32>
    %c0_10 = arith.constant 0 : index
    %c0_11 = arith.constant 0 : index
    %24 = vector.load %arg7[%c0_10, %c0_11] : memref<8x128xf32, #tpu.memory_space<vmem>>, vector<8x128xf32>
    tpu.vector_store %arg7[%c0_10, %c0_11], %23 {strides = array<i32>} : memref<8x128xf32, #tpu.memory_space<vmem>>, vector<8x128xf32>,
    %25 = tpu.transpose %23, [1, 0] : vector<8x128xf32> -> vector<128x8xf32>
    %26 = vector.shape_cast %25 : vector<128x8xf32> to vector<128x8x1xf32>
    %27 = vector.broadcast %26 : vector<128x8x1xf32> to vector<128x8x32xf32>
    %28 = arith.mulf %27, %0 : vector<128x8x32xf32>
    %cst_12 = arith.constant dense<0.000000e+00> : vector<128x32xf32>
    %29 = vector.multi_reduction <add>, %28, %cst_12 [1] : vector<128x8x32xf32> to vector<128x32xf32>
    %c0_13 = arith.constant 0 : index
    %c0_14 = arith.constant 0 : index
    %30 = vector.load %arg4[%c0_13, %c0_14] : memref<1x32xf32, #tpu.memory_space<vmem>>, vector<1x32xf32>
    %31 = tpu.transpose %29, [1, 0] : vector<128x32xf32> -> vector<32x128xf32>
    %cst_15 = arith.constant dense<0.000000e+00> : vector<1x128xf32>
    %32 = tpu.matmul %30, %31, %cst_15 {dimension_numbers = #tpu.dot_dimension_numbers<[1], [0], [0], [1], [0, 0, 1, 1], [], []>} : vector<1x32xf32>, vector<32x128xf32>, vector<1x128xf32> -> vector<1x128xf32>
    %c0_16 = arith.constant 0 : index
    %c0_17 = arith.constant 0 : index
    %33 = vector.load %arg5[%c0_16, %c0_17] : memref<1x1xf32, #tpu.memory_space<vmem>>, vector<1x1xf32>
    %34 = vector.broadcast %33 : vector<1x1xf32> to vector<1x128xf32>
    %35 = arith.addf %32, %34 : vector<1x128xf32>
    %c0_18 = arith.constant 0 : index
    %c0_19 = arith.constant 0 : index
    %36 = vector.load %arg6[%c0_18, %c0_19] : memref<1x128xf32, #tpu.memory_space<vmem>>, vector<1x128xf32>
    tpu.vector_store %arg6[%c0_18, %c0_19], %35 {strides = array<i32>} : memref<1x128xf32, #tpu.memory_space<vmem>>, vector<1x128xf32>,
    return
  }
  func.func @transform_0(%arg0: i32) -> (i32, i32, i32) {
    %c0_i32 = arith.constant 0 : i32
    %c0_i32_0 = arith.constant 0 : i32
    %c0_i32_1 = arith.constant 0 : i32
    return %arg0, %c0_i32, %c0_i32_0 : i32, i32, i32
  }
  func.func @transform_1(%arg0: i32) -> (i32, i32) {
    %c0_i32 = arith.constant 0 : i32
    %c0_i32_0 = arith.constant 0 : i32
    %c0_i32_1 = arith.constant 0 : i32
    return %c0_i32, %c0_i32_0 : i32, i32
  }
  func.func @transform_2(%arg0: i32) -> (i32, i32) {
    %c0_i32 = arith.constant 0 : i32
    %c0_i32_0 = arith.constant 0 : i32
    %c0_i32_1 = arith.constant 0 : i32
    return %c0_i32, %c0_i32_0 : i32, i32
  }
  func.func @transform_3(%arg0: i32) -> (i32, i32) {
    %c0_i32 = arith.constant 0 : i32
    %c0_i32_0 = arith.constant 0 : i32
    %c0_i32_1 = arith.constant 0 : i32
    return %c0_i32, %c0_i32_0 : i32, i32
  }
  func.func @transform_4(%arg0: i32) -> (i32, i32) {
    %c0_i32 = arith.constant 0 : i32
    %c0_i32_0 = arith.constant 0 : i32
    %c0_i32_1 = arith.constant 0 : i32
    return %c0_i32, %c0_i32_0 : i32, i32
  }
  func.func @transform_5(%arg0: i32) -> (i32, i32) {
    %c0_i32 = arith.constant 0 : i32
    %c0_i32_0 = arith.constant 0 : i32
    return %c0_i32, %arg0 : i32, i32
  }
  func.func @transform_6(%arg0: i32) -> (i32, i32) {
    %c0_i32 = arith.constant 0 : i32
    %c0_i32_0 = arith.constant 0 : i32
    return %c0_i32, %arg0 : i32, i32
  }
}

</mosaic_0001>

<llo_original>
// kernel: tpu_custom_call.1
$region0: #{tpu_custom_call.1}
  #allocation0 [shape = 'u32[]', space=smem, size = 0x4, offset = 0x4, fixed_abs, tag = 'smem constant byte address 0x4 - core index']
  #allocation1 [shape = 'u32[144,128]{1,0:T(1,128)}', space=vmem, size = 0x12000, scoped, tag = 'internal scratch']
  #allocation2 [shape = 'f32[1,1]{1,0:T(1,128)S(1)}', space=vmem, size = 0x200, scoped, tag = 'scoped memory for tpu_custom_call.1']
  %s0 = inlined_call_operand.vmem [shape: f32[256,8,32], index: 0, kind: input, shape index: {}]
  %s1 = inlined_call_operand.vmem [shape: f32[32,128], index: 1, kind: input, shape index: {}]
  %s2 = inlined_call_operand.vmem [shape: f32[2,128], index: 2, kind: input, shape index: {}]
  %s3 = inlined_call_operand.vmem [shape: f32[1,32], index: 3, kind: input, shape index: {}]
  %s4 = inlined_call_operand.<no memory space> [shape: f32[1,1], index: 4, kind: input, shape index: {}]
  %s5 = inlined_call_operand.hbm [shape: f32[1,256], index: 5, kind: output, shape index: {0}]
  %s6 = inlined_call_operand.hbm [shape: f32[8,256], index: 6, kind: output, shape index: {1}]
  %7 = xla_tuple %s5, %s6
  %s8 = sld [smem:[#allocation0]]
  $region61: #{tpu_custom_call.1} parent=0
    _
  %s10 = ssub.s32 1, %s8
  %s11 = scalar_select 0, %s10, %s8
  %v12 = vstv %s4
  %13 = vst [vmem:[#allocation2] sm:$0x1] %v12
  $region1: #{tpu_custom_call.1} parent=0
    #allocation3 [shape = 'u8[1024]{0}', space=vmem, size = 0x400, scoped, tag = 'output window, operand 0']
    #allocation4 [shape = 's32[2]{0}', space=sflag, size = 0x8, scoped, tag = 'scoped memory for tpu_custom_call.1']
    #allocation5 [shape = 'u8[8192]{0}', space=vmem, size = 0x2000, scoped, tag = 'output window, operand 1']
    #allocation6 [shape = 's32[2]{0}', space=sflag, size = 0x8, scoped, tag = 'scoped memory for tpu_custom_call.1']
    %14 = vsyncpa [#allocation4], 0
    %s15 = scalar_lea.sflag [#allocation4], 1
    %16 = vsyncpa %s15, 0
    %17 = vsyncpa [#allocation6], 0
    %s18 = scalar_lea.sflag [#allocation6], 1
    %19 = vsyncpa %s18, 0
    loop: start=0, step=1, limit=4
    $region2: #{tpu_custom_call.1} parent=1 // loop_pre_header
      _
    $region3: #{tpu_custom_call.1} parent=1 // loop_header
      %s21 = sphi 0, %s25
      %p22 = scmp.ge.s32.totalorder %s21, 4
      %s31 = sphi 0, %s33
      %s34 = sphi 0, %s31
      %s35 = sphi 0, %s34
      %s51 = sphi 0, %s35
      %s55 = sphi 0, %s55
      %s57 = sphi 0, %s55
      %s58 = sphi 0, %s57
      %s72 = sphi 0, %s58
      %s76 = sphi 0, %s76
      %s78 = sphi 0, %s76
      %s79 = sphi 0, %s78
      %s93 = sphi 0, %s79
      %s97 = sphi 0, %s97
      %s99 = sphi 0, %s97
      %s100 = sphi 0, %s99
      %s114 = sphi 0, %s100
      %s118 = sphi 0, %s118
      %s120 = sphi 0, %s118
      %s121 = sphi 0, %s120
      %s135 = sphi 0, %s121
      %s141 = sphi 0, %s143
      %s144 = sphi 0, %s141
      %s145 = sphi 0, %s144
      %s161 = sphi 0, %s145
      %s167 = sphi 0, %s169
      %s170 = sphi 0, %s167
      %s171 = sphi 0, %s170
      %s187 = sphi 0, %s171
    $region4: #{tpu_custom_call.1} parent=1 // loop_header_branch
      %24 = sbr.rel (%p22) target = $region8
    $region5: #{tpu_custom_call.1} parent=1 // loop_body
      %s26 = ssub.s32 %s21, 1
      %s27 = ssub.s32 %s21, 2
      %s28 = sadd.s32 %s21, 1
      %s29 = ssub.s32 %s21, %s28
      %p30 = scmp.eq.s32.totalorder %s29, 0
      %s32 = sadd.s32 %s31, 1
      %s33 = scalar_select %p30, %s31, %s32
      %p36 = pneg %p30
      %p37 = scmp.eq.s32.totalorder %s21, 1
      %p38 = por %p36, %p37
      %p39 = scmp.ne.s32.totalorder %s31, %s34
      %p40 = scmp.eq.s32.totalorder %s21, 0
      %p41 = por %p39, %p40
      %p42 = scmp.ne.s32.totalorder %s31, %s34
      %p43 = scmp.eq.s32.totalorder %s26, 1
      %p44 = por %p42, %p43
      %p45 = scmp.ne.s32.totalorder %s34, %s35
      %p46 = scmp.eq.s32.totalorder %s26, 0
      %p47 = por %p45, %p46
      %p48 = scmp.ne.s32.totalorder %s34, %s35
      %p49 = scmp.eq.s32.totalorder %s27, 1
      %p50 = por %p48, %p49
      %p52 = scmp.ne.s32.totalorder %s35, %s51
      %p53 = scmp.eq.s32.totalorder %s27, 0
      %p54 = por %p52, %p53
      %s56 = sadd.s32 %s55, 1
      %p59 = scmp.eq.s32.totalorder %s21, 1
      %p60 = scmp.ne.s32.totalorder %s55, %s57
      %p61 = scmp.eq.s32.totalorder %s21, 0
      %p62 = por %p60, %p61
      %p63 = scmp.ne.s32.totalorder %s55, %s57
      %p64 = scmp.eq.s32.totalorder %s26, 1
      %p65 = por %p63, %p64
      %p66 = scmp.ne.s32.totalorder %s57, %s58
      %p67 = scmp.eq.s32.totalorder %s26, 0
      %p68 = por %p66, %p67
      %p69 = scmp.ne.s32.totalorder %s57, %s58
      %p70 = scmp.eq.s32.totalorder %s27, 1
      %p71 = por %p69, %p70
      %p73 = scmp.ne.s32.totalorder %s58, %s72
      %p74 = scmp.eq.s32.totalorder %s27, 0
      %p75 = por %p73, %p74
      %s77 = sadd.s32 %s76, 1
      %p80 = scmp.eq.s32.totalorder %s21, 1
      %p81 = scmp.ne.s32.totalorder %s76, %s78
      %p82 = scmp.eq.s32.totalorder %s21, 0
      %p83 = por %p81, %p82
      %p84 = scmp.ne.s32.totalorder %s76, %s78
      %p85 = scmp.eq.s32.totalorder %s26, 1
      %p86 = por %p84, %p85
      %p87 = scmp.ne.s32.totalorder %s78, %s79
      %p88 = scmp.eq.s32.totalorder %s26, 0
      %p89 = por %p87, %p88
      %p90 = scmp.ne.s32.totalorder %s78, %s79
      %p91 = scmp.eq.s32.totalorder %s27, 1
      %p92 = por %p90, %p91
      %p94 = scmp.ne.s32.totalorder %s79, %s93
      %p95 = scmp.eq.s32.totalorder %s27, 0
      %p96 = por %p94, %p95
      %s98 = sadd.s32 %s97, 1
      %p101 = scmp.eq.s32.totalorder %s21, 1
      %p102 = scmp.ne.s32.totalorder %s97, %s99
      %p103 = scmp.eq.s32.totalorder %s21, 0
      %p104 = por %p102, %p103
      %p105 = scmp.ne.s32.totalorder %s97, %s99
      %p106 = scmp.eq.s32.totalorder %s26, 1
      %p107 = por %p105, %p106
      %p108 = scmp.ne.s32.totalorder %s99, %s100
      %p109 = scmp.eq.s32.totalorder %s26, 0
      %p110 = por %p108, %p109
      %p111 = scmp.ne.s32.totalorder %s99, %s100
      %p112 = scmp.eq.s32.totalorder %s27, 1
      %p113 = por %p111, %p112
      %p115 = scmp.ne.s32.totalorder %s100, %s114
      %p116 = scmp.eq.s32.totalorder %s27, 0
      %p117 = por %p115, %p116
      %s119 = sadd.s32 %s118, 1
      %p122 = scmp.eq.s32.totalorder %s21, 1
      %p123 = scmp.ne.s32.totalorder %s118, %s120
      %p124 = scmp.eq.s32.totalorder %s21, 0
      %p125 = por %p123, %p124
      %p126 = scmp.ne.s32.totalorder %s118, %s120
      %p127 = scmp.eq.s32.totalorder %s26, 1
      %p128 = por %p126, %p127
      %p129 = scmp.ne.s32.totalorder %s120, %s121
      %p130 = scmp.eq.s32.totalorder %s26, 0
      %p131 = por %p129, %p130
      %p132 = scmp.ne.s32.totalorder %s120, %s121
      %p133 = scmp.eq.s32.totalorder %s27, 1
      %p134 = por %p132, %p133
      %p136 = scmp.ne.s32.totalorder %s121, %s135
      %p137 = scmp.eq.s32.totalorder %s27, 0
      %p138 = por %p136, %p137
      %s139 = ssub.s32 %s21, %s28
      %p140 = scmp.eq.s32.totalorder %s139, 0
      %s142 = sadd.s32 %s141, 1
      %s143 = scalar_select %p140, %s141, %s142
      %p146 = pneg %p140
      %p147 = scmp.eq.s32.totalorder %s21, 1
      %p148 = por %p146, %p147
      %p149 = scmp.ne.s32.totalorder %s141, %s144
      %p150 = scmp.eq.s32.totalorder %s21, 0
      %p151 = por %p149, %p150
      %p152 = scmp.ne.s32.totalorder %s141, %s144
      %p153 = scmp.eq.s32.totalorder %s26, 1
      %p154 = por %p152, %p153
      %p155 = scmp.ne.s32.totalorder %s144, %s145
      %p156 = scmp.eq.s32.totalorder %s26, 0
      %p157 = por %p155, %p156
      %p158 = scmp.ne.s32.totalorder %s144, %s145
      %p159 = scmp.eq.s32.totalorder %s27, 1
      %p160 = por %p158, %p159
      %p162 = scmp.ne.s32.totalorder %s145, %s161
      %p163 = scmp.eq.s32.totalorder %s27, 0
      %p164 = por %p162, %p163
      %s165 = ssub.s32 %s21, %s28
      %p166 = scmp.eq.s32.totalorder %s165, 0
      %s168 = sadd.s32 %s167, 1
      %s169 = scalar_select %p166, %s167, %s168
      %p172 = pneg %p166
      %p173 = scmp.eq.s32.totalorder %s21, 1
      %p174 = por %p172, %p173
      %p175 = scmp.ne.s32.totalorder %s167, %s170
      %p176 = scmp.eq.s32.totalorder %s21, 0
      %p177 = por %p175, %p176
      %p178 = scmp.ne.s32.totalorder %s167, %s170
      %p179 = scmp.eq.s32.totalorder %s26, 1
      %p180 = por %p178, %p179
      %p181 = scmp.ne.s32.totalorder %s170, %s171
      %p182 = scmp.eq.s32.totalorder %s26, 0
      %p183 = por %p181, %p182
      %p184 = scmp.ne.s32.totalorder %s170, %s171
      %p185 = scmp.eq.s32.totalorder %s27, 1
      %p186 = por %p184, %p185
      %p188 = scmp.ne.s32.totalorder %s171, %s187
      %p189 = scmp.eq.s32.totalorder %s27, 0
      %p190 = por %p188, %p189
      %p191 = scmp.le.s32.totalorder 1, %s21
      %p192 = scmp.lt.s32.totalorder %s21, 3
      %p193 = pnand %p191, %p192
      %p194 = pneg %p193
      // Predicated region
      $region9: #{tpu_custom_call.1} parent=5 // pred_check
        _
      $region10: #{tpu_custom_call.1} parent=5 // pred_check_branch
        %196 = sbr.rel (%p193) target = $region12
      $region11: #{tpu_custom_call.1} parent=5 // pred_region
        %s197 = ssub.s32 %s21, 1
        // Predicated region
        $region13: #{tpu_custom_call.1} parent=11 // pred_check
          %p198 = pneg %p68
        $region14: #{tpu_custom_call.1} parent=11 // pred_check_branch
          %200 = sbr.rel (%p198) target = $region16
        $region15: #{tpu_custom_call.1} parent=11 // pred_region
          _
        $region16: #{tpu_custom_call.1} parent=11 // pred_fallthru
          _
        // Predicated region
        $region17: #{tpu_custom_call.1} parent=11 // pred_check
          %p201 = pneg %p89
        $region18: #{tpu_custom_call.1} parent=11 // pred_check_branch
          %203 = sbr.rel (%p201) target = $region20
        $region19: #{tpu_custom_call.1} parent=11 // pred_region
          _
        $region20: #{tpu_custom_call.1} parent=11 // pred_fallthru
          _
        // Predicated region
        $region21: #{tpu_custom_call.1} parent=11 // pred_check
          %p204 = pneg %p110
        $region22: #{tpu_custom_call.1} parent=11 // pred_check_branch
          %206 = sbr.rel (%p204) target = $region24
        $region23: #{tpu_custom_call.1} parent=11 // pred_region
          _
        $region24: #{tpu_custom_call.1} parent=11 // pred_fallthru
          _
        // Predicated region
        $region25: #{tpu_custom_call.1} parent=11 // pred_check
          %p207 = pneg %p131
        $region26: #{tpu_custom_call.1} parent=11 // pred_check_branch
          %209 = sbr.rel (%p207) target = $region28
        $region27: #{tpu_custom_call.1} parent=11 // pred_region
          _
        $region28: #{tpu_custom_call.1} parent=11 // pred_fallthru
          _
      $region12: #{tpu_custom_call.1} parent=5 // pred_fallthru
        _
      %p210 = scmp.lt.s32.totalorder %s21, 2
      // Predicated region
      $region29: #{tpu_custom_call.1} parent=5 // pred_check
        %p211 = pneg %p210
      $region30: #{tpu_custom_call.1} parent=5 // pred_check_branch
        %213 = sbr.rel (%p211) target = $region32
      $region31: #{tpu_custom_call.1} parent=5 // pred_region
        // Predicated region
        $region33: #{tpu_custom_call.1} parent=31 // pred_check
          %p214 = pneg %p41
        $region34: #{tpu_custom_call.1} parent=31 // pred_check_branch
          %216 = sbr.rel (%p214) target = $region36
        $region35: #{tpu_custom_call.1} parent=31 // pred_region
          %s217 = smul.u32 128, %s21
          %p218 = scmp.lt.s32.totalorder %s217, 255
          %s219 = scalar_select %p218, %s217, 255
          %s220 = smul.addr %s219, 8
          %s221 = scalar_lea.vmem %s0, %s220
          %s222 = smul.u32 128, %s21
        $region36: #{tpu_custom_call.1} parent=31 // pred_fallthru
          _
      $region32: #{tpu_custom_call.1} parent=5 // pred_fallthru
        _
      %p223 = scmp.le.s32.totalorder 1, %s21
      %p224 = scmp.lt.s32.totalorder %s21, 3
      %p225 = pnand %p223, %p224
      %p226 = pneg %p225
      // Predicated region
      $region37: #{tpu_custom_call.1} parent=5 // pred_check
        _
      $region38: #{tpu_custom_call.1} parent=5 // pred_check_branch
        %228 = sbr.rel (%p225) target = $region40
      $region39: #{tpu_custom_call.1} parent=5 // pred_region
        %s229 = ssub.s32 %s21, 1
        %s230 = smul.u32 128, %s26
        %p231 = scmp.lt.s32.totalorder %s230, 255
        %s232 = scalar_select %p231, %s230, 255
        %s233 = smul.addr %s232, 8
        %s234 = scalar_lea.vmem %s0, %s233
        %p235 = pneg %p47
        %p236 = pneg %p44
        %p237 = pneg %p68
        %p238 = pneg %p65
        %p239 = pneg %p89
        %p240 = pneg %p86
        %p241 = pneg %p110
        %p242 = pneg %p107
        %p243 = pneg %p131
        %p244 = pneg %p128
        %p245 = pneg %p157
        %p246 = pneg %p154
        %s247 = sand.u32 %s144, 1
        %s248 = scalar_lea.sflag [#allocation4], %s247
        %s249 = sand.u32 %s144, 1
        %s250 = scalar_lea.vmem [#allocation3], %s249
        %p251 = pneg %p183
        %p252 = pneg %p180
        %s253 = sand.u32 %s170, 1
        %s254 = scalar_lea.sflag [#allocation6], %s253
        %s255 = sand.u32 %s170, 1
        %s256 = smul.addr %s255, 8
        %s257 = scalar_lea.vmem [#allocation5], %s256
        %s258 = smul.u32 128, %s26
        %p259 = scmp.lt.s32.totalorder %s258, 255
        %s260 = scalar_select %p259, %s258, 255
        %s261 = smul.addr %s260, 8
        %s262 = scalar_lea.vmem %s0, %s261
        %s263 = smul.u32 128, %s26
        %v264 = vld [vmem:[%s262] sm:$0xff]
        %v265 = vld [vmem:[%s262 + $0x8] sm:$0xff]
        %v266 = vld [vmem:[%s262 + $0x10] sm:$0xff]
        %v267 = vld [vmem:[%s262 + $0x18] sm:$0xff]
        %v268 = vld [vmem:[%s262 + $0x20] sm:$0xff]
        %v269 = vld [vmem:[%s262 + $0x28] sm:$0xff]
        %v270 = vld [vmem:[%s262 + $0x30] sm:$0xff]
        %v271 = vld [vmem:[%s262 + $0x38] sm:$0xff]
        %v272 = vld [vmem:[%s262 + $0x40] sm:$0xff]
        %v273 = vld [vmem:[%s262 + $0x48] sm:$0xff]
        %v274 = vld [vmem:[%s262 + $0x50] sm:$0xff]
        %v275 = vld [vmem:[%s262 + $0x58] sm:$0xff]
        %v276 = vld [vmem:[%s262 + $0x60] sm:$0xff]
        %v277 = vld [vmem:[%s262 + $0x68] sm:$0xff]
        %v278 = vld [vmem:[%s262 + $0x70] sm:$0xff]
        %v279 = vld [vmem:[%s262 + $0x78] sm:$0xff]
        %v280 = vld [vmem:[%s262 + $0x80] sm:$0xff]
        %v281 = vld [vmem:[%s262 + $0x88] sm:$0xff]
        %v282 = vld [vmem:[%s262 + $0x90] sm:$0xff]
        %v283 = vld [vmem:[%s262 + $0x98] sm:$0xff]
        %v284 = vld [vmem:[%s262 + $0xa0] sm:$0xff]
        %v285 = vld [vmem:[%s262 + $0xa8] sm:$0xff]
        %v286 = vld [vmem:[%s262 + $0xb0] sm:$0xff]
        %v287 = vld [vmem:[%s262 + $0xb8] sm:$0xff]
        %v288 = vld [vmem:[%s262 + $0xc0] sm:$0xff]
        %v289 = vld [vmem:[%s262 + $0xc8] sm:$0xff]
        %v290 = vld [vmem:[%s262 + $0xd0] sm:$0xff]
        %v291 = vld [vmem:[%s262 + $0xd8] sm:$0xff]
        %v292 = vld [vmem:[%s262 + $0xe0] sm:$0xff]
        %v293 = vld [vmem:[%s262 + $0xe8] sm:$0xff]
        %v294 = vld [vmem:[%s262 + $0xf0] sm:$0xff]
        %v295 = vld [vmem:[%s262 + $0xf8] sm:$0xff]
        %v296 = vld [vmem:[%s262 + $0x100] sm:$0xff]
        %v297 = vld [vmem:[%s262 + $0x108] sm:$0xff]
        %v298 = vld [vmem:[%s262 + $0x110] sm:$0xff]
        %v299 = vld [vmem:[%s262 + $0x118] sm:$0xff]
        %v300 = vld [vmem:[%s262 + $0x120] sm:$0xff]
        %v301 = vld [vmem:[%s262 + $0x128] sm:$0xff]
        %v302 = vld [vmem:[%s262 + $0x130] sm:$0xff]
        %v303 = vld [vmem:[%s262 + $0x138] sm:$0xff]
        %v304 = vld [vmem:[%s262 + $0x140] sm:$0xff]
        %v305 = vld [vmem:[%s262 + $0x148] sm:$0xff]
        %v306 = vld [vmem:[%s262 + $0x150] sm:$0xff]
        %v307 = vld [vmem:[%s262 + $0x158] sm:$0xff]
        %v308 = vld [vmem:[%s262 + $0x160] sm:$0xff]
        %v309 = vld [vmem:[%s262 + $0x168] sm:$0xff]
        %v310 = vld [vmem:[%s262 + $0x170] sm:$0xff]
        %v311 = vld [vmem:[%s262 + $0x178] sm:$0xff]
        %v312 = vld [vmem:[%s262 + $0x180] sm:$0xff]
        %v313 = vld [vmem:[%s262 + $0x188] sm:$0xff]
        %v314 = vld [vmem:[%s262 + $0x190] sm:$0xff]
        %v315 = vld [vmem:[%s262 + $0x198] sm:$0xff]
        %v316 = vld [vmem:[%s262 + $0x1a0] sm:$0xff]
        %v317 = vld [vmem:[%s262 + $0x1a8] sm:$0xff]
        %v318 = vld [vmem:[%s262 + $0x1b0] sm:$0xff]
        %v319 = vld [vmem:[%s262 + $0x1b8] sm:$0xff]
        %v320 = vld [vmem:[%s262 + $0x1c0] sm:$0xff]
        %v321 = vld [vmem:[%s262 + $0x1c8] sm:$0xff]
        %v322 = vld [vmem:[%s262 + $0x1d0] sm:$0xff]
        %v323 = vld [vmem:[%s262 + $0x1d8] sm:$0xff]
        %v324 = vld [vmem:[%s262 + $0x1e0] sm:$0xff]
        %v325 = vld [vmem:[%s262 + $0x1e8] sm:$0xff]
        %v326 = vld [vmem:[%s262 + $0x1f0] sm:$0xff]
        %v327 = vld [vmem:[%s262 + $0x1f8] sm:$0xff]
        %v328 = vld [vmem:[%s262 + $0x200] sm:$0xff]
        %v329 = vld [vmem:[%s262 + $0x208] sm:$0xff]
        %v330 = vld [vmem:[%s262 + $0x210] sm:$0xff]
        %v331 = vld [vmem:[%s262 + $0x218] sm:$0xff]
        %v332 = vld [vmem:[%s262 + $0x220] sm:$0xff]
        %v333 = vld [vmem:[%s262 + $0x228] sm:$0xff]
        %v334 = vld [vmem:[%s262 + $0x230] sm:$0xff]
        %v335 = vld [vmem:[%s262 + $0x238] sm:$0xff]
        %v336 = vld [vmem:[%s262 + $0x240] sm:$0xff]
        %v337 = vld [vmem:[%s262 + $0x248] sm:$0xff]
        %v338 = vld [vmem:[%s262 + $0x250] sm:$0xff]
        %v339 = vld [vmem:[%s262 + $0x258] sm:$0xff]
        %v340 = vld [vmem:[%s262 + $0x260] sm:$0xff]
        %v341 = vld [vmem:[%s262 + $0x268] sm:$0xff]
        %v342 = vld [vmem:[%s262 + $0x270] sm:$0xff]
        %v343 = vld [vmem:[%s262 + $0x278] sm:$0xff]
        %v344 = vld [vmem:[%s262 + $0x280] sm:$0xff]
        %v345 = vld [vmem:[%s262 + $0x288] sm:$0xff]
        %v346 = vld [vmem:[%s262 + $0x290] sm:$0xff]
        %v347 = vld [vmem:[%s262 + $0x298] sm:$0xff]
        %v348 = vld [vmem:[%s262 + $0x2a0] sm:$0xff]
        %v349 = vld [vmem:[%s262 + $0x2a8] sm:$0xff]
        %v350 = vld [vmem:[%s262 + $0x2b0] sm:$0xff]
        %v351 = vld [vmem:[%s262 + $0x2b8] sm:$0xff]
        %v352 = vld [vmem:[%s262 + $0x2c0] sm:$0xff]
        %v353 = vld [vmem:[%s262 + $0x2c8] sm:$0xff]
        %v354 = vld [vmem:[%s262 + $0x2d0] sm:$0xff]
        %v355 = vld [vmem:[%s262 + $0x2d8] sm:$0xff]
        %v356 = vld [vmem:[%s262 + $0x2e0] sm:$0xff]
        %v357 = vld [vmem:[%s262 + $0x2e8] sm:$0xff]
        %v358 = vld [vmem:[%s262 + $0x2f0] sm:$0xff]
        %v359 = vld [vmem:[%s262 + $0x2f8] sm:$0xff]
        %v360 = vld [vmem:[%s262 + $0x300] sm:$0xff]
        %v361 = vld [vmem:[%s262 + $0x308] sm:$0xff]
        %v362 = vld [vmem:[%s262 + $0x310] sm:$0xff]
        %v363 = vld [vmem:[%s262 + $0x318] sm:$0xff]
        %v364 = vld [vmem:[%s262 + $0x320] sm:$0xff]
        %v365 = vld [vmem:[%s262 + $0x328] sm:$0xff]
        %v366 = vld [vmem:[%s262 + $0x330] sm:$0xff]
        %v367 = vld [vmem:[%s262 + $0x338] sm:$0xff]
        %v368 = vld [vmem:[%s262 + $0x340] sm:$0xff]
        %v369 = vld [vmem:[%s262 + $0x348] sm:$0xff]
        %v370 = vld [vmem:[%s262 + $0x350] sm:$0xff]
        %v371 = vld [vmem:[%s262 + $0x358] sm:$0xff]
        %v372 = vld [vmem:[%s262 + $0x360] sm:$0xff]
        %v373 = vld [vmem:[%s262 + $0x368] sm:$0xff]
        %v374 = vld [vmem:[%s262 + $0x370] sm:$0xff]
        %v375 = vld [vmem:[%s262 + $0x378] sm:$0xff]
        %v376 = vld [vmem:[%s262 + $0x380] sm:$0xff]
        %v377 = vld [vmem:[%s262 + $0x388] sm:$0xff]
        %v378 = vld [vmem:[%s262 + $0x390] sm:$0xff]
        %v379 = vld [vmem:[%s262 + $0x398] sm:$0xff]
        %v380 = vld [vmem:[%s262 + $0x3a0] sm:$0xff]
        %v381 = vld [vmem:[%s262 + $0x3a8] sm:$0xff]
        %v382 = vld [vmem:[%s262 + $0x3b0] sm:$0xff]
        %v383 = vld [vmem:[%s262 + $0x3b8] sm:$0xff]
        %v384 = vld [vmem:[%s262 + $0x3c0] sm:$0xff]
        %v385 = vld [vmem:[%s262 + $0x3c8] sm:$0xff]
        %v386 = vld [vmem:[%s262 + $0x3d0] sm:$0xff]
        %v387 = vld [vmem:[%s262 + $0x3d8] sm:$0xff]
        %v388 = vld [vmem:[%s262 + $0x3e0] sm:$0xff]
        %v389 = vld [vmem:[%s262 + $0x3e8] sm:$0xff]
        %v390 = vld [vmem:[%s262 + $0x3f0] sm:$0xff]
        %v391 = vld [vmem:[%s262 + $0x3f8] sm:$0xff]
        %v392 = vld [vmem:[%s2] sm:$0x1]
        %v393 = vld [vmem:[%s2 + $0x1] sm:$0x1]
        %v394 = vld [vmem:[%s1] sm:$0xff]
        %v395 = vld [vmem:[%s1 + $0x8] sm:$0xff]
        %v396 = vld [vmem:[%s1 + $0x10] sm:$0xff]
        %v397 = vld [vmem:[%s1 + $0x18] sm:$0xff]
        %v398 = vlaneseq
        %v399 = vshrl.u32 %v398, 7
        %v400 = vsub.s32 0, %v399
        %v401 = vrot.slane %v392, %v400
        %vm402 = vcmask 261120
        %v404 = vsel %vm402, %v264, 0
        %v407 = vsel %vm402, %v265, 0
        %v410 = vsel %vm402, %v266, 0
        %v413 = vsel %vm402, %v267, 0
        %v416 = vsel %vm402, %v268, 0
        %v419 = vsel %vm402, %v269, 0
        %v422 = vsel %vm402, %v270, 0
        %v425 = vsel %vm402, %v271, 0
        %v428 = vsel %vm402, %v272, 0
        %v431 = vsel %vm402, %v273, 0
        %v434 = vsel %vm402, %v274, 0
        %v437 = vsel %vm402, %v275, 0
        %v440 = vsel %vm402, %v276, 0
        %v443 = vsel %vm402, %v277, 0
        %v446 = vsel %vm402, %v278, 0
        %v449 = vsel %vm402, %v279, 0
        %v452 = vsel %vm402, %v280, 0
        %v455 = vsel %vm402, %v281, 0
        %v458 = vsel %vm402, %v282, 0
        %v461 = vsel %vm402, %v283, 0
        %v464 = vsel %vm402, %v284, 0
        %v467 = vsel %vm402, %v285, 0
        %v470 = vsel %vm402, %v286, 0
        %v473 = vsel %vm402, %v287, 0
        %v476 = vsel %vm402, %v288, 0
        %v479 = vsel %vm402, %v289, 0
        %v482 = vsel %vm402, %v290, 0
        %v485 = vsel %vm402, %v291, 0
        %v488 = vsel %vm402, %v292, 0
        %v491 = vsel %vm402, %v293, 0
        %v494 = vsel %vm402, %v294, 0
        %v497 = vsel %vm402, %v295, 0
        %v500 = vsel %vm402, %v296, 0
        %v503 = vsel %vm402, %v297, 0
        %v506 = vsel %vm402, %v298, 0
        %v509 = vsel %vm402, %v299, 0
        %v512 = vsel %vm402, %v300, 0
        %v515 = vsel %vm402, %v301, 0
        %v518 = vsel %vm402, %v302, 0
        %v521 = vsel %vm402, %v303, 0
        %v524 = vsel %vm402, %v304, 0
        %v527 = vsel %vm402, %v305, 0
        %v530 = vsel %vm402, %v306, 0
        %v533 = vsel %vm402, %v307, 0
        %v536 = vsel %vm402, %v308, 0
        %v539 = vsel %vm402, %v309, 0
        %v542 = vsel %vm402, %v310, 0
        %v545 = vsel %vm402, %v311, 0
        %v548 = vsel %vm402, %v312, 0
        %v551 = vsel %vm402, %v313, 0
        %v554 = vsel %vm402, %v314, 0
        %v557 = vsel %vm402, %v315, 0
        %v560 = vsel %vm402, %v316, 0
        %v563 = vsel %vm402, %v317, 0
        %v566 = vsel %vm402, %v318, 0
        %v569 = vsel %vm402, %v319, 0
        %v572 = vsel %vm402, %v320, 0
        %v575 = vsel %vm402, %v321, 0
        %v578 = vsel %vm402, %v322, 0
        %v581 = vsel %vm402, %v323, 0
        %v584 = vsel %vm402, %v324, 0
        %v587 = vsel %vm402, %v325, 0
        %v590 = vsel %vm402, %v326, 0
        %v593 = vsel %vm402, %v327, 0
        %v596 = vsel %vm402, %v328, 0
        %v599 = vsel %vm402, %v329, 0
        %v602 = vsel %vm402, %v330, 0
        %v605 = vsel %vm402, %v331, 0
        %v608 = vsel %vm402, %v332, 0
        %v611 = vsel %vm402, %v333, 0
        %v614 = vsel %vm402, %v334, 0
        %v617 = vsel %vm402, %v335, 0
        %v620 = vsel %vm402, %v336, 0
        %v623 = vsel %vm402, %v337, 0
        %v626 = vsel %vm402, %v338, 0
        %v629 = vsel %vm402, %v339, 0
        %v632 = vsel %vm402, %v340, 0
        %v635 = vsel %vm402, %v341, 0
        %v638 = vsel %vm402, %v342, 0
        %v641 = vsel %vm402, %v343, 0
        %v644 = vsel %vm402, %v344, 0
        %v647 = vsel %vm402, %v345, 0
        %v650 = vsel %vm402, %v346, 0
        %v653 = vsel %vm402, %v347, 0
        %v656 = vsel %vm402, %v348, 0
        %v659 = vsel %vm402, %v349, 0
        %v662 = vsel %vm402, %v350, 0
        %v665 = vsel %vm402, %v351, 0
        %v668 = vsel %vm402, %v352, 0
        %v671 = vsel %vm402, %v353, 0
        %v674 = vsel %vm402, %v354, 0
        %v677 = vsel %vm402, %v355, 0
        %v680 = vsel %vm402, %v356, 0
        %v683 = vsel %vm402, %v357, 0
        %v686 = vsel %vm402, %v358, 0
        %v689 = vsel %vm402, %v359, 0
        %v692 = vsel %vm402, %v360, 0
        %v695 = vsel %vm402, %v361, 0
        %v698 = vsel %vm402, %v362, 0
        %v701 = vsel %vm402, %v363, 0
        %v704 = vsel %vm402, %v364, 0
        %v707 = vsel %vm402, %v365, 0
        %v710 = vsel %vm402, %v366, 0
        %v713 = vsel %vm402, %v367, 0
        %v716 = vsel %vm402, %v368, 0
        %v719 = vsel %vm402, %v369, 0
        %v722 = vsel %vm402, %v370, 0
        %v725 = vsel %vm402, %v371, 0
        %v728 = vsel %vm402, %v372, 0
        %v731 = vsel %vm402, %v373, 0
        %v734 = vsel %vm402, %v374, 0
        %v737 = vsel %vm402, %v375, 0
        %v740 = vsel %vm402, %v376, 0
        %v743 = vsel %vm402, %v377, 0
        %v746 = vsel %vm402, %v378, 0
        %v749 = vsel %vm402, %v379, 0
        %v752 = vsel %vm402, %v380, 0
        %v755 = vsel %vm402, %v381, 0
        %v758 = vsel %vm402, %v382, 0
        %v761 = vsel %vm402, %v383, 0
        %v764 = vsel %vm402, %v384, 0
        %v767 = vsel %vm402, %v385, 0
        %v770 = vsel %vm402, %v386, 0
        %v773 = vsel %vm402, %v387, 0
        %v776 = vsel %vm402, %v388, 0
        %v779 = vsel %vm402, %v389, 0
        %v782 = vsel %vm402, %v390, 0
        %v785 = vsel %vm402, %v391, 0
        %787 = vmatprep.subr.mxu0 0.0
        %788 = vmatpush1.msra.mxu0 0.0
        %789 = vmatprep.subr.mxu0 0.0
        %790 = vmatpush1.msra.mxu0 0.0
        %791 = vmatprep.subr.mxu0 0.0
        %792 = vmatpush1.msra.mxu0 0.0
        %793 = vmatprep.subr.mxu0 0.0
        %794 = vmatpush1.msra.mxu0 0.0
        %795 = vmatprep.subr.mxu0 0.0
        %796 = vmatpush1.msra.mxu0 0.0
        %797 = vmatprep.subr.mxu0 0.0
        %798 = vmatpush1.msra.mxu0 0.0
        %799 = vmatprep.subr.mxu0 0.0
        %800 = vmatpush1.msra.mxu0 0.0
        %801 = vmatprep.subr.mxu0 0.0
        %802 = vmatpush1.msra.mxu0 0.0
        %803 = vmatprep.subr.mxu0 0.0
        %804 = vmatpush1.msra.mxu0 0.0
        %805 = vmatprep.subr.mxu0 0.0
        %806 = vmatpush1.msra.mxu0 0.0
        %807 = vmatprep.subr.mxu0 0.0
        %808 = vmatpush1.msra.mxu0 0.0
        %809 = vmatprep.subr.mxu0 0.0
        %810 = vmatpush1.msra.mxu0 0.0
        %811 = vmatprep.subr.mxu0 0.0
        %812 = vmatpush1.msra.mxu0 %v397
        %813 = vmatprep.subr.mxu0 0.0
        %814 = vmatpush1.msra.mxu0 %v396
        %815 = vmatprep.subr.mxu0 0.0
        %816 = vmatpush1.msra.mxu0 %v395
        %817 = vmatprep.subr.mxu0 0.0
        %818 = vmatpush1.msra.mxu0 %v394
        %819 = vmatprep.subr.mxu0 0.0
        %820 = vmatpush2.msra.mxu0 0.0
        %821 = vmatprep.subr.mxu0 0.0
        %822 = vmatpush2.msra.mxu0 0.0
        %823 = vmatprep.subr.mxu0 0.0
        %824 = vmatpush2.msra.mxu0 0.0
        %825 = vmatprep.subr.mxu0 0.0
        %826 = vmatpush2.msra.mxu0 0.0
        %827 = vmatprep.subr.mxu0 0.0
        %828 = vmatpush2.msra.mxu0 0.0
        %829 = vmatprep.subr.mxu0 0.0
        %830 = vmatpush2.msra.mxu0 0.0
        %831 = vmatprep.subr.mxu0 0.0
        %832 = vmatpush2.msra.mxu0 0.0
        %833 = vmatprep.subr.mxu0 0.0
        %834 = vmatpush2.msra.mxu0 0.0
        %835 = vmatprep.subr.mxu0 0.0
        %836 = vmatpush2.msra.mxu0 0.0
        %837 = vmatprep.subr.mxu0 0.0
        %838 = vmatpush2.msra.mxu0 0.0
        %839 = vmatprep.subr.mxu0 0.0
        %840 = vmatpush2.msra.mxu0 0.0
        %841 = vmatprep.subr.mxu0 0.0
        %842 = vmatpush2.msra.mxu0 0.0
        %843 = vmatprep.subr.mxu0 0.0
        %844 = vmatpush2.msra.mxu0 0.0
        %845 = vmatprep.subr.mxu0 0.0
        %846 = vmatpush2.msra.mxu0 0.0
        %847 = vmatprep.subr.mxu0 0.0
        %848 = vmatpush2.msra.mxu0 0.0
        %849 = vmatprep.subr.mxu0 0.0
        %850 = vmatpush2.msra.mxu0 0.0
        %851 = vmatprep.mubr.f32.mxu0 0.0
        %852 = vmatmul.mubr.f32.gmra.mxu0 %v404
        %v853 = vpop.f32.mrf.mxu0
        %v854 = vadd.f32 %v401, %v853
        %v855 = vpop.f32.mrf.mxu0
        %856 = vmatprep.mubr.f32.mxu0 0.0
        %857 = vmatmul.mubr.f32.gmra.mxu0 %v407
        %v858 = vpop.f32.mrf.mxu0
        %v859 = vadd.f32 %v401, %v858
        %v860 = vpop.f32.mrf.mxu0
        %861 = vmatprep.mubr.f32.mxu0 0.0
        %862 = vmatmul.mubr.f32.gmra.mxu0 %v410
        %v863 = vpop.f32.mrf.mxu0
        %v864 = vadd.f32 %v401, %v863
        %v865 = vpop.f32.mrf.mxu0
        %866 = vmatprep.mubr.f32.mxu0 0.0
        %867 = vmatmul.mubr.f32.gmra.mxu0 %v413
        %v868 = vpop.f32.mrf.mxu0
        %v869 = vadd.f32 %v401, %v868
        %v870 = vpop.f32.mrf.mxu0
        %871 = vmatprep.mubr.f32.mxu0 0.0
        %872 = vmatmul.mubr.f32.gmra.mxu0 %v416
        %v873 = vpop.f32.mrf.mxu0
        %v874 = vadd.f32 %v401, %v873
        %v875 = vpop.f32.mrf.mxu0
        %876 = vmatprep.mubr.f32.mxu0 0.0
        %877 = vmatmul.mubr.f32.gmra.mxu0 %v419
        %v878 = vpop.f32.mrf.mxu0
        %v879 = vadd.f32 %v401, %v878
        %v880 = vpop.f32.mrf.mxu0
        %881 = vmatprep.mubr.f32.mxu0 0.0
        %882 = vmatmul.mubr.f32.gmra.mxu0 %v422
        %v883 = vpop.f32.mrf.mxu0
        %v884 = vadd.f32 %v401, %v883
        %v885 = vpop.f32.mrf.mxu0
        %886 = vmatprep.mubr.f32.mxu0 0.0
        %887 = vmatmul.mubr.f32.gmra.mxu0 %v425
        %v888 = vpop.f32.mrf.mxu0
        %v889 = vadd.f32 %v401, %v888
        %v890 = vpop.f32.mrf.mxu0
        %891 = vmatprep.mubr.f32.mxu0 0.0
        %892 = vmatmul.mubr.f32.gmra.mxu0 %v428
        %v893 = vpop.f32.mrf.mxu0
        %v894 = vadd.f32 %v401, %v893
        %v895 = vpop.f32.mrf.mxu0
        %896 = vmatprep.mubr.f32.mxu0 0.0
        %897 = vmatmul.mubr.f32.gmra.mxu0 %v431
        %v898 = vpop.f32.mrf.mxu0
        %v899 = vadd.f32 %v401, %v898
        %v900 = vpop.f32.mrf.mxu0
        %901 = vmatprep.mubr.f32.mxu0 0.0
        %902 = vmatmul.mubr.f32.gmra.mxu0 %v434
        %v903 = vpop.f32.mrf.mxu0
        %v904 = vadd.f32 %v401, %v903
        %v905 = vpop.f32.mrf.mxu0
        %906 = vmatprep.mubr.f32.mxu0 0.0
        %907 = vmatmul.mubr.f32.gmra.mxu0 %v437
        %v908 = vpop.f32.mrf.mxu0
        %v909 = vadd.f32 %v401, %v908
        %v910 = vpop.f32.mrf.mxu0
        %911 = vmatprep.mubr.f32.mxu0 0.0
        %912 = vmatmul.mubr.f32.gmra.mxu0 %v440
        %v913 = vpop.f32.mrf.mxu0
        %v914 = vadd.f32 %v401, %v913
        %v915 = vpop.f32.mrf.mxu0
        %916 = vmatprep.mubr.f32.mxu0 0.0
        %917 = vmatmul.mubr.f32.gmra.mxu0 %v443
        %v918 = vpop.f32.mrf.mxu0
        %v919 = vadd.f32 %v401, %v918
        %v920 = vpop.f32.mrf.mxu0
        %921 = vmatprep.mubr.f32.mxu0 0.0
        %922 = vmatmul.mubr.f32.gmra.mxu0 %v446
        %v923 = vpop.f32.mrf.mxu0
        %v924 = vadd.f32 %v401, %v923
        %v925 = vpop.f32.mrf.mxu0
        %926 = vmatprep.mubr.f32.mxu0 0.0
        %927 = vmatmul.mubr.f32.gmra.mxu0 %v449
        %v928 = vpop.f32.mrf.mxu0
        %v929 = vadd.f32 %v401, %v928
        %v930 = vpop.f32.mrf.mxu0
        %931 = vmatprep.mubr.f32.mxu0 0.0
        %932 = vmatmul.mubr.f32.gmra.mxu0 %v452
        %v933 = vpop.f32.mrf.mxu0
        %v934 = vadd.f32 %v401, %v933
        %v935 = vpop.f32.mrf.mxu0
        %936 = vmatprep.mubr.f32.mxu0 0.0
        %937 = vmatmul.mubr.f32.gmra.mxu0 %v455
        %v938 = vpop.f32.mrf.mxu0
        %v939 = vadd.f32 %v401, %v938
        %v940 = vpop.f32.mrf.mxu0
        %941 = vmatprep.mubr.f32.mxu0 0.0
        %942 = vmatmul.mubr.f32.gmra.mxu0 %v458
        %v943 = vpop.f32.mrf.mxu0
        %v944 = vadd.f32 %v401, %v943
        %v945 = vpop.f32.mrf.mxu0
        %946 = vmatprep.mubr.f32.mxu0 0.0
        %947 = vmatmul.mubr.f32.gmra.mxu0 %v461
        %v948 = vpop.f32.mrf.mxu0
        %v949 = vadd.f32 %v401, %v948
        %v950 = vpop.f32.mrf.mxu0
        %951 = vmatprep.mubr.f32.mxu0 0.0
        %952 = vmatmul.mubr.f32.gmra.mxu0 %v464
        %v953 = vpop.f32.mrf.mxu0
        %v954 = vadd.f32 %v401, %v953
        %v955 = vpop.f32.mrf.mxu0
        %956 = vmatprep.mubr.f32.mxu0 0.0
        %957 = vmatmul.mubr.f32.gmra.mxu0 %v467
        %v958 = vpop.f32.mrf.mxu0
        %v959 = vadd.f32 %v401, %v958
        %v960 = vpop.f32.mrf.mxu0
        %961 = vmatprep.mubr.f32.mxu0 0.0
        %962 = vmatmul.mubr.f32.gmra.mxu0 %v470
        %v963 = vpop.f32.mrf.mxu0
        %v964 = vadd.f32 %v401, %v963
        %v965 = vpop.f32.mrf.mxu0
        %966 = vmatprep.mubr.f32.mxu0 0.0
        %967 = vmatmul.mubr.f32.gmra.mxu0 %v473
        %v968 = vpop.f32.mrf.mxu0
        %v969 = vadd.f32 %v401, %v968
        %v970 = vpop.f32.mrf.mxu0
        %971 = vmatprep.mubr.f32.mxu0 0.0
        %972 = vmatmul.mubr.f32.gmra.mxu0 %v476
        %v973 = vpop.f32.mrf.mxu0
        %v974 = vadd.f32 %v401, %v973
        %v975 = vpop.f32.mrf.mxu0
        %976 = vmatprep.mubr.f32.mxu0 0.0
        %977 = vmatmul.mubr.f32.gmra.mxu0 %v479
        %v978 = vpop.f32.mrf.mxu0
        %v979 = vadd.f32 %v401, %v978
        %v980 = vpop.f32.mrf.mxu0
        %981 = vmatprep.mubr.f32.mxu0 0.0
        %982 = vmatmul.mubr.f32.gmra.mxu0 %v482
        %v983 = vpop.f32.mrf.mxu0
        %v984 = vadd.f32 %v401, %v983
        %v985 = vpop.f32.mrf.mxu0
        %986 = vmatprep.mubr.f32.mxu0 0.0
        %987 = vmatmul.mubr.f32.gmra.mxu0 %v485
        %v988 = vpop.f32.mrf.mxu0
        %v989 = vadd.f32 %v401, %v988
        %v990 = vpop.f32.mrf.mxu0
        %991 = vmatprep.mubr.f32.mxu0 0.0
        %992 = vmatmul.mubr.f32.gmra.mxu0 %v488
        %v993 = vpop.f32.mrf.mxu0
        %v994 = vadd.f32 %v401, %v993
        %v995 = vpop.f32.mrf.mxu0
        %996 = vmatprep.mubr.f32.mxu0 0.0
        %997 = vmatmul.mubr.f32.gmra.mxu0 %v491
        %v998 = vpop.f32.mrf.mxu0
        %v999 = vadd.f32 %v401, %v998
        %v1000 = vpop.f32.mrf.mxu0
        %1001 = vmatprep.mubr.f32.mxu0 0.0
        %1002 = vmatmul.mubr.f32.gmra.mxu0 %v494
        %v1003 = vpop.f32.mrf.mxu0
        %v1004 = vadd.f32 %v401, %v1003
        %v1005 = vpop.f32.mrf.mxu0
        %1006 = vmatprep.mubr.f32.mxu0 0.0
        %1007 = vmatmul.mubr.f32.gmra.mxu0 %v497
        %v1008 = vpop.f32.mrf.mxu0
        %v1009 = vadd.f32 %v401, %v1008
        %v1010 = vpop.f32.mrf.mxu0
        %1011 = vmatprep.mubr.f32.mxu0 0.0
        %1012 = vmatmul.mubr.f32.gmra.mxu0 %v500
        %v1013 = vpop.f32.mrf.mxu0
        %v1014 = vadd.f32 %v401, %v1013
        %v1015 = vpop.f32.mrf.mxu0
        %1016 = vmatprep.mubr.f32.mxu0 0.0
        %1017 = vmatmul.mubr.f32.gmra.mxu0 %v503
        %v1018 = vpop.f32.mrf.mxu0
        %v1019 = vadd.f32 %v401, %v1018
        %v1020 = vpop.f32.mrf.mxu0
        %1021 = vmatprep.mubr.f32.mxu0 0.0
        %1022 = vmatmul.mubr.f32.gmra.mxu0 %v506
        %v1023 = vpop.f32.mrf.mxu0
        %v1024 = vadd.f32 %v401, %v1023
        %v1025 = vpop.f32.mrf.mxu0
        %1026 = vmatprep.mubr.f32.mxu0 0.0
        %1027 = vmatmul.mubr.f32.gmra.mxu0 %v509
        %v1028 = vpop.f32.mrf.mxu0
        %v1029 = vadd.f32 %v401, %v1028
        %v1030 = vpop.f32.mrf.mxu0
        %1031 = vmatprep.mubr.f32.mxu0 0.0
        %1032 = vmatmul.mubr.f32.gmra.mxu0 %v512
        %v1033 = vpop.f32.mrf.mxu0
        %v1034 = vadd.f32 %v401, %v1033
        %v1035 = vpop.f32.mrf.mxu0
        %1036 = vmatprep.mubr.f32.mxu0 0.0
        %1037 = vmatmul.mubr.f32.gmra.mxu0 %v515
        %v1038 = vpop.f32.mrf.mxu0
        %v1039 = vadd.f32 %v401, %v1038
        %v1040 = vpop.f32.mrf.mxu0
        %1041 = vmatprep.mubr.f32.mxu0 0.0
        %1042 = vmatmul.mubr.f32.gmra.mxu0 %v518
        %v1043 = vpop.f32.mrf.mxu0
        %v1044 = vadd.f32 %v401, %v1043
        %v1045 = vpop.f32.mrf.mxu0
        %1046 = vmatprep.mubr.f32.mxu0 0.0
        %1047 = vmatmul.mubr.f32.gmra.mxu0 %v521
        %v1048 = vpop.f32.mrf.mxu0
        %v1049 = vadd.f32 %v401, %v1048
        %v1050 = vpop.f32.mrf.mxu0
        %1051 = vmatprep.mubr.f32.mxu0 0.0
        %1052 = vmatmul.mubr.f32.gmra.mxu0 %v524
        %v1053 = vpop.f32.mrf.mxu0
        %v1054 = vadd.f32 %v401, %v1053
        %v1055 = vpop.f32.mrf.mxu0
        %1056 = vmatprep.mubr.f32.mxu0 0.0
        %1057 = vmatmul.mubr.f32.gmra.mxu0 %v527
        %v1058 = vpop.f32.mrf.mxu0
        %v1059 = vadd.f32 %v401, %v1058
        %v1060 = vpop.f32.mrf.mxu0
        %1061 = vmatprep.mubr.f32.mxu0 0.0
        %1062 = vmatmul.mubr.f32.gmra.mxu0 %v530
        %v1063 = vpop.f32.mrf.mxu0
        %v1064 = vadd.f32 %v401, %v1063
        %v1065 = vpop.f32.mrf.mxu0
        %1066 = vmatprep.mubr.f32.mxu0 0.0
        %1067 = vmatmul.mubr.f32.gmra.mxu0 %v533
        %v1068 = vpop.f32.mrf.mxu0
        %v1069 = vadd.f32 %v401, %v1068
        %v1070 = vpop.f32.mrf.mxu0
        %1071 = vmatprep.mubr.f32.mxu0 0.0
        %1072 = vmatmul.mubr.f32.gmra.mxu0 %v536
        %v1073 = vpop.f32.mrf.mxu0
        %v1074 = vadd.f32 %v401, %v1073
        %v1075 = vpop.f32.mrf.mxu0
        %1076 = vmatprep.mubr.f32.mxu0 0.0
        %1077 = vmatmul.mubr.f32.gmra.mxu0 %v539
        %v1078 = vpop.f32.mrf.mxu0
        %v1079 = vadd.f32 %v401, %v1078
        %v1080 = vpop.f32.mrf.mxu0
        %1081 = vmatprep.mubr.f32.mxu0 0.0
        %1082 = vmatmul.mubr.f32.gmra.mxu0 %v542
        %v1083 = vpop.f32.mrf.mxu0
        %v1084 = vadd.f32 %v401, %v1083
        %v1085 = vpop.f32.mrf.mxu0
        %1086 = vmatprep.mubr.f32.mxu0 0.0
        %1087 = vmatmul.mubr.f32.gmra.mxu0 %v545
        %v1088 = vpop.f32.mrf.mxu0
        %v1089 = vadd.f32 %v401, %v1088
        %v1090 = vpop.f32.mrf.mxu0
        %1091 = vmatprep.mubr.f32.mxu0 0.0
        %1092 = vmatmul.mubr.f32.gmra.mxu0 %v548
        %v1093 = vpop.f32.mrf.mxu0
        %v1094 = vadd.f32 %v401, %v1093
        %v1095 = vpop.f32.mrf.mxu0
        %1096 = vmatprep.mubr.f32.mxu0 0.0
        %1097 = vmatmul.mubr.f32.gmra.mxu0 %v551
        %v1098 = vpop.f32.mrf.mxu0
        %v1099 = vadd.f32 %v401, %v1098
        %v1100 = vpop.f32.mrf.mxu0
        %1101 = vmatprep.mubr.f32.mxu0 0.0
        %1102 = vmatmul.mubr.f32.gmra.mxu0 %v554
        %v1103 = vpop.f32.mrf.mxu0
        %v1104 = vadd.f32 %v401, %v1103
        %v1105 = vpop.f32.mrf.mxu0
        %1106 = vmatprep.mubr.f32.mxu0 0.0
        %1107 = vmatmul.mubr.f32.gmra.mxu0 %v557
        %v1108 = vpop.f32.mrf.mxu0
        %v1109 = vadd.f32 %v401, %v1108
        %v1110 = vpop.f32.mrf.mxu0
        %1111 = vmatprep.mubr.f32.mxu0 0.0
        %1112 = vmatmul.mubr.f32.gmra.mxu0 %v560
        %v1113 = vpop.f32.mrf.mxu0
        %v1114 = vadd.f32 %v401, %v1113
        %v1115 = vpop.f32.mrf.mxu0
        %1116 = vmatprep.mubr.f32.mxu0 0.0
        %1117 = vmatmul.mubr.f32.gmra.mxu0 %v563
        %v1118 = vpop.f32.mrf.mxu0
        %v1119 = vadd.f32 %v401, %v1118
        %v1120 = vpop.f32.mrf.mxu0
        %1121 = vmatprep.mubr.f32.mxu0 0.0
        %1122 = vmatmul.mubr.f32.gmra.mxu0 %v566
        %v1123 = vpop.f32.mrf.mxu0
        %v1124 = vadd.f32 %v401, %v1123
        %v1125 = vpop.f32.mrf.mxu0
        %1126 = vmatprep.mubr.f32.mxu0 0.0
        %1127 = vmatmul.mubr.f32.gmra.mxu0 %v569
        %v1128 = vpop.f32.mrf.mxu0
        %v1129 = vadd.f32 %v401, %v1128
        %v1130 = vpop.f32.mrf.mxu0
        %1131 = vmatprep.mubr.f32.mxu0 0.0
        %1132 = vmatmul.mubr.f32.gmra.mxu0 %v572
        %v1133 = vpop.f32.mrf.mxu0
        %v1134 = vadd.f32 %v401, %v1133
        %v1135 = vpop.f32.mrf.mxu0
        %1136 = vmatprep.mubr.f32.mxu0 0.0
        %1137 = vmatmul.mubr.f32.gmra.mxu0 %v575
        %v1138 = vpop.f32.mrf.mxu0
        %v1139 = vadd.f32 %v401, %v1138
        %v1140 = vpop.f32.mrf.mxu0
        %1141 = vmatprep.mubr.f32.mxu0 0.0
        %1142 = vmatmul.mubr.f32.gmra.mxu0 %v578
        %v1143 = vpop.f32.mrf.mxu0
        %v1144 = vadd.f32 %v401, %v1143
        %v1145 = vpop.f32.mrf.mxu0
        %1146 = vmatprep.mubr.f32.mxu0 0.0
        %1147 = vmatmul.mubr.f32.gmra.mxu0 %v581
        %v1148 = vpop.f32.mrf.mxu0
        %v1149 = vadd.f32 %v401, %v1148
        %v1150 = vpop.f32.mrf.mxu0
        %1151 = vmatprep.mubr.f32.mxu0 0.0
        %1152 = vmatmul.mubr.f32.gmra.mxu0 %v584
        %v1153 = vpop.f32.mrf.mxu0
        %v1154 = vadd.f32 %v401, %v1153
        %v1155 = vpop.f32.mrf.mxu0
        %1156 = vmatprep.mubr.f32.mxu0 0.0
        %1157 = vmatmul.mubr.f32.gmra.mxu0 %v587
        %v1158 = vpop.f32.mrf.mxu0
        %v1159 = vadd.f32 %v401, %v1158
        %v1160 = vpop.f32.mrf.mxu0
        %1161 = vmatprep.mubr.f32.mxu0 0.0
        %1162 = vmatmul.mubr.f32.gmra.mxu0 %v590
        %v1163 = vpop.f32.mrf.mxu0
        %v1164 = vadd.f32 %v401, %v1163
        %v1165 = vpop.f32.mrf.mxu0
        %1166 = vmatprep.mubr.f32.mxu0 0.0
        %1167 = vmatmul.mubr.f32.gmra.mxu0 %v593
        %v1168 = vpop.f32.mrf.mxu0
        %v1169 = vadd.f32 %v401, %v1168
        %v1170 = vpop.f32.mrf.mxu0
        %1171 = vmatprep.mubr.f32.mxu0 0.0
        %1172 = vmatmul.mubr.f32.gmra.mxu0 %v596
        %v1173 = vpop.f32.mrf.mxu0
        %v1174 = vadd.f32 %v401, %v1173
        %v1175 = vpop.f32.mrf.mxu0
        %1176 = vmatprep.mubr.f32.mxu0 0.0
        %1177 = vmatmul.mubr.f32.gmra.mxu0 %v599
        %v1178 = vpop.f32.mrf.mxu0
        %v1179 = vadd.f32 %v401, %v1178
        %v1180 = vpop.f32.mrf.mxu0
        %1181 = vmatprep.mubr.f32.mxu0 0.0
        %1182 = vmatmul.mubr.f32.gmra.mxu0 %v602
        %v1183 = vpop.f32.mrf.mxu0
        %v1184 = vadd.f32 %v401, %v1183
        %v1185 = vpop.f32.mrf.mxu0
        %1186 = vmatprep.mubr.f32.mxu0 0.0
        %1187 = vmatmul.mubr.f32.gmra.mxu0 %v605
        %v1188 = vpop.f32.mrf.mxu0
        %v1189 = vadd.f32 %v401, %v1188
        %v1190 = vpop.f32.mrf.mxu0
        %1191 = vmatprep.mubr.f32.mxu0 0.0
        %1192 = vmatmul.mubr.f32.gmra.mxu0 %v608
        %v1193 = vpop.f32.mrf.mxu0
        %v1194 = vadd.f32 %v401, %v1193
        %v1195 = vpop.f32.mrf.mxu0
        %1196 = vmatprep.mubr.f32.mxu0 0.0
        %1197 = vmatmul.mubr.f32.gmra.mxu0 %v611
        %v1198 = vpop.f32.mrf.mxu0
        %v1199 = vadd.f32 %v401, %v1198
        %v1200 = vpop.f32.mrf.mxu0
        %1201 = vmatprep.mubr.f32.mxu0 0.0
        %1202 = vmatmul.mubr.f32.gmra.mxu0 %v614
        %v1203 = vpop.f32.mrf.mxu0
        %v1204 = vadd.f32 %v401, %v1203
        %v1205 = vpop.f32.mrf.mxu0
        %1206 = vmatprep.mubr.f32.mxu0 0.0
        %1207 = vmatmul.mubr.f32.gmra.mxu0 %v617
        %v1208 = vpop.f32.mrf.mxu0
        %v1209 = vadd.f32 %v401, %v1208
        %v1210 = vpop.f32.mrf.mxu0
        %1211 = vmatprep.mubr.f32.mxu0 0.0
        %1212 = vmatmul.mubr.f32.gmra.mxu0 %v620
        %v1213 = vpop.f32.mrf.mxu0
        %v1214 = vadd.f32 %v401, %v1213
        %v1215 = vpop.f32.mrf.mxu0
        %1216 = vmatprep.mubr.f32.mxu0 0.0
        %1217 = vmatmul.mubr.f32.gmra.mxu0 %v623
        %v1218 = vpop.f32.mrf.mxu0
        %v1219 = vadd.f32 %v401, %v1218
        %v1220 = vpop.f32.mrf.mxu0
        %1221 = vmatprep.mubr.f32.mxu0 0.0
        %1222 = vmatmul.mubr.f32.gmra.mxu0 %v626
        %v1223 = vpop.f32.mrf.mxu0
        %v1224 = vadd.f32 %v401, %v1223
        %v1225 = vpop.f32.mrf.mxu0
        %1226 = vmatprep.mubr.f32.mxu0 0.0
        %1227 = vmatmul.mubr.f32.gmra.mxu0 %v629
        %v1228 = vpop.f32.mrf.mxu0
        %v1229 = vadd.f32 %v401, %v1228
        %v1230 = vpop.f32.mrf.mxu0
        %1231 = vmatprep.mubr.f32.mxu0 0.0
        %1232 = vmatmul.mubr.f32.gmra.mxu0 %v632
        %v1233 = vpop.f32.mrf.mxu0
        %v1234 = vadd.f32 %v401, %v1233
        %v1235 = vpop.f32.mrf.mxu0
        %1236 = vmatprep.mubr.f32.mxu0 0.0
        %1237 = vmatmul.mubr.f32.gmra.mxu0 %v635
        %v1238 = vpop.f32.mrf.mxu0
        %v1239 = vadd.f32 %v401, %v1238
        %v1240 = vpop.f32.mrf.mxu0
        %1241 = vmatprep.mubr.f32.mxu0 0.0
        %1242 = vmatmul.mubr.f32.gmra.mxu0 %v638
        %v1243 = vpop.f32.mrf.mxu0
        %v1244 = vadd.f32 %v401, %v1243
        %v1245 = vpop.f32.mrf.mxu0
        %1246 = vmatprep.mubr.f32.mxu0 0.0
        %1247 = vmatmul.mubr.f32.gmra.mxu0 %v641
        %v1248 = vpop.f32.mrf.mxu0
        %v1249 = vadd.f32 %v401, %v1248
        %v1250 = vpop.f32.mrf.mxu0
        %1251 = vmatprep.mubr.f32.mxu0 0.0
        %1252 = vmatmul.mubr.f32.gmra.mxu0 %v644
        %v1253 = vpop.f32.mrf.mxu0
        %v1254 = vadd.f32 %v401, %v1253
        %v1255 = vpop.f32.mrf.mxu0
        %1256 = vmatprep.mubr.f32.mxu0 0.0
        %1257 = vmatmul.mubr.f32.gmra.mxu0 %v647
        %v1258 = vpop.f32.mrf.mxu0
        %v1259 = vadd.f32 %v401, %v1258
        %v1260 = vpop.f32.mrf.mxu0
        %1261 = vmatprep.mubr.f32.mxu0 0.0
        %1262 = vmatmul.mubr.f32.gmra.mxu0 %v650
        %v1263 = vpop.f32.mrf.mxu0
        %v1264 = vadd.f32 %v401, %v1263
        %v1265 = vpop.f32.mrf.mxu0
        %1266 = vmatprep.mubr.f32.mxu0 0.0
        %1267 = vmatmul.mubr.f32.gmra.mxu0 %v653
        %v1268 = vpop.f32.mrf.mxu0
        %v1269 = vadd.f32 %v401, %v1268
        %v1270 = vpop.f32.mrf.mxu0
        %1271 = vmatprep.mubr.f32.mxu0 0.0
        %1272 = vmatmul.mubr.f32.gmra.mxu0 %v656
        %v1273 = vpop.f32.mrf.mxu0
        %v1274 = vadd.f32 %v401, %v1273
        %v1275 = vpop.f32.mrf.mxu0
        %1276 = vmatprep.mubr.f32.mxu0 0.0
        %1277 = vmatmul.mubr.f32.gmra.mxu0 %v659
        %v1278 = vpop.f32.mrf.mxu0
        %v1279 = vadd.f32 %v401, %v1278
        %v1280 = vpop.f32.mrf.mxu0
        %1281 = vmatprep.mubr.f32.mxu0 0.0
        %1282 = vmatmul.mubr.f32.gmra.mxu0 %v662
        %v1283 = vpop.f32.mrf.mxu0
        %v1284 = vadd.f32 %v401, %v1283
        %v1285 = vpop.f32.mrf.mxu0
        %1286 = vmatprep.mubr.f32.mxu0 0.0
        %1287 = vmatmul.mubr.f32.gmra.mxu0 %v665
        %v1288 = vpop.f32.mrf.mxu0
        %v1289 = vadd.f32 %v401, %v1288
        %v1290 = vpop.f32.mrf.mxu0
        %1291 = vmatprep.mubr.f32.mxu0 0.0
        %1292 = vmatmul.mubr.f32.gmra.mxu0 %v668
        %v1293 = vpop.f32.mrf.mxu0
        %v1294 = vadd.f32 %v401, %v1293
        %v1295 = vpop.f32.mrf.mxu0
        %1296 = vmatprep.mubr.f32.mxu0 0.0
        %1297 = vmatmul.mubr.f32.gmra.mxu0 %v671
        %v1298 = vpop.f32.mrf.mxu0
        %v1299 = vadd.f32 %v401, %v1298
        %v1300 = vpop.f32.mrf.mxu0
        %1301 = vmatprep.mubr.f32.mxu0 0.0
        %1302 = vmatmul.mubr.f32.gmra.mxu0 %v674
        %v1303 = vpop.f32.mrf.mxu0
        %v1304 = vadd.f32 %v401, %v1303
        %v1305 = vpop.f32.mrf.mxu0
        %1306 = vmatprep.mubr.f32.mxu0 0.0
        %1307 = vmatmul.mubr.f32.gmra.mxu0 %v677
        %v1308 = vpop.f32.mrf.mxu0
        %v1309 = vadd.f32 %v401, %v1308
        %v1310 = vpop.f32.mrf.mxu0
        %1311 = vmatprep.mubr.f32.mxu0 0.0
        %1312 = vmatmul.mubr.f32.gmra.mxu0 %v680
        %v1313 = vpop.f32.mrf.mxu0
        %v1314 = vadd.f32 %v401, %v1313
        %v1315 = vpop.f32.mrf.mxu0
        %1316 = vmatprep.mubr.f32.mxu0 0.0
        %1317 = vmatmul.mubr.f32.gmra.mxu0 %v683
        %v1318 = vpop.f32.mrf.mxu0
        %v1319 = vadd.f32 %v401, %v1318
        %v1320 = vpop.f32.mrf.mxu0
        %1321 = vmatprep.mubr.f32.mxu0 0.0
        %1322 = vmatmul.mubr.f32.gmra.mxu0 %v686
        %v1323 = vpop.f32.mrf.mxu0
        %v1324 = vadd.f32 %v401, %v1323
        %v1325 = vpop.f32.mrf.mxu0
        %1326 = vmatprep.mubr.f32.mxu0 0.0
        %1327 = vmatmul.mubr.f32.gmra.mxu0 %v689
        %v1328 = vpop.f32.mrf.mxu0
        %v1329 = vadd.f32 %v401, %v1328
        %v1330 = vpop.f32.mrf.mxu0
        %1331 = vmatprep.mubr.f32.mxu0 0.0
        %1332 = vmatmul.mubr.f32.gmra.mxu0 %v692
        %v1333 = vpop.f32.mrf.mxu0
        %v1334 = vadd.f32 %v401, %v1333
        %v1335 = vpop.f32.mrf.mxu0
        %1336 = vmatprep.mubr.f32.mxu0 0.0
        %1337 = vmatmul.mubr.f32.gmra.mxu0 %v695
        %v1338 = vpop.f32.mrf.mxu0
        %v1339 = vadd.f32 %v401, %v1338
        %v1340 = vpop.f32.mrf.mxu0
        %1341 = vmatprep.mubr.f32.mxu0 0.0
        %1342 = vmatmul.mubr.f32.gmra.mxu0 %v698
        %v1343 = vpop.f32.mrf.mxu0
        %v1344 = vadd.f32 %v401, %v1343
        %v1345 = vpop.f32.mrf.mxu0
        %1346 = vmatprep.mubr.f32.mxu0 0.0
        %1347 = vmatmul.mubr.f32.gmra.mxu0 %v701
        %v1348 = vpop.f32.mrf.mxu0
        %v1349 = vadd.f32 %v401, %v1348
        %v1350 = vpop.f32.mrf.mxu0
        %1351 = vmatprep.mubr.f32.mxu0 0.0
        %1352 = vmatmul.mubr.f32.gmra.mxu0 %v704
        %v1353 = vpop.f32.mrf.mxu0
        %v1354 = vadd.f32 %v401, %v1353
        %v1355 = vpop.f32.mrf.mxu0
        %1356 = vmatprep.mubr.f32.mxu0 0.0
        %1357 = vmatmul.mubr.f32.gmra.mxu0 %v707
        %v1358 = vpop.f32.mrf.mxu0
        %v1359 = vadd.f32 %v401, %v1358
        %v1360 = vpop.f32.mrf.mxu0
        %1361 = vmatprep.mubr.f32.mxu0 0.0
        %1362 = vmatmul.mubr.f32.gmra.mxu0 %v710
        %v1363 = vpop.f32.mrf.mxu0
        %v1364 = vadd.f32 %v401, %v1363
        %v1365 = vpop.f32.mrf.mxu0
        %1366 = vmatprep.mubr.f32.mxu0 0.0
        %1367 = vmatmul.mubr.f32.gmra.mxu0 %v713
        %v1368 = vpop.f32.mrf.mxu0
        %v1369 = vadd.f32 %v401, %v1368
        %v1370 = vpop.f32.mrf.mxu0
        %1371 = vmatprep.mubr.f32.mxu0 0.0
        %1372 = vmatmul.mubr.f32.gmra.mxu0 %v716
        %v1373 = vpop.f32.mrf.mxu0
        %v1374 = vadd.f32 %v401, %v1373
        %v1375 = vpop.f32.mrf.mxu0
        %1376 = vmatprep.mubr.f32.mxu0 0.0
        %1377 = vmatmul.mubr.f32.gmra.mxu0 %v719
        %v1378 = vpop.f32.mrf.mxu0
        %v1379 = vadd.f32 %v401, %v1378
        %v1380 = vpop.f32.mrf.mxu0
        %1381 = vmatprep.mubr.f32.mxu0 0.0
        %1382 = vmatmul.mubr.f32.gmra.mxu0 %v722
        %v1383 = vpop.f32.mrf.mxu0
        %v1384 = vadd.f32 %v401, %v1383
        %v1385 = vpop.f32.mrf.mxu0
        %1386 = vmatprep.mubr.f32.mxu0 0.0
        %1387 = vmatmul.mubr.f32.gmra.mxu0 %v725
        %v1388 = vpop.f32.mrf.mxu0
        %v1389 = vadd.f32 %v401, %v1388
        %v1390 = vpop.f32.mrf.mxu0
        %1391 = vmatprep.mubr.f32.mxu0 0.0
        %1392 = vmatmul.mubr.f32.gmra.mxu0 %v728
        %v1393 = vpop.f32.mrf.mxu0
        %v1394 = vadd.f32 %v401, %v1393
        %v1395 = vpop.f32.mrf.mxu0
        %1396 = vmatprep.mubr.f32.mxu0 0.0
        %1397 = vmatmul.mubr.f32.gmra.mxu0 %v731
        %v1398 = vpop.f32.mrf.mxu0
        %v1399 = vadd.f32 %v401, %v1398
        %v1400 = vpop.f32.mrf.mxu0
        %1401 = vmatprep.mubr.f32.mxu0 0.0
        %1402 = vmatmul.mubr.f32.gmra.mxu0 %v734
        %v1403 = vpop.f32.mrf.mxu0
        %v1404 = vadd.f32 %v401, %v1403
        %v1405 = vpop.f32.mrf.mxu0
        %1406 = vmatprep.mubr.f32.mxu0 0.0
        %1407 = vmatmul.mubr.f32.gmra.mxu0 %v737
        %v1408 = vpop.f32.mrf.mxu0
        %v1409 = vadd.f32 %v401, %v1408
        %v1410 = vpop.f32.mrf.mxu0
        %1411 = vmatprep.mubr.f32.mxu0 0.0
        %1412 = vmatmul.mubr.f32.gmra.mxu0 %v740
        %v1413 = vpop.f32.mrf.mxu0
        %v1414 = vadd.f32 %v401, %v1413
        %v1415 = vpop.f32.mrf.mxu0
        %1416 = vmatprep.mubr.f32.mxu0 0.0
        %1417 = vmatmul.mubr.f32.gmra.mxu0 %v743
        %v1418 = vpop.f32.mrf.mxu0
        %v1419 = vadd.f32 %v401, %v1418
        %v1420 = vpop.f32.mrf.mxu0
        %1421 = vmatprep.mubr.f32.mxu0 0.0
        %1422 = vmatmul.mubr.f32.gmra.mxu0 %v746
        %v1423 = vpop.f32.mrf.mxu0
        %v1424 = vadd.f32 %v401, %v1423
        %v1425 = vpop.f32.mrf.mxu0
        %1426 = vmatprep.mubr.f32.mxu0 0.0
        %1427 = vmatmul.mubr.f32.gmra.mxu0 %v749
        %v1428 = vpop.f32.mrf.mxu0
        %v1429 = vadd.f32 %v401, %v1428
        %v1430 = vpop.f32.mrf.mxu0
        %1431 = vmatprep.mubr.f32.mxu0 0.0
        %1432 = vmatmul.mubr.f32.gmra.mxu0 %v752
        %v1433 = vpop.f32.mrf.mxu0
        %v1434 = vadd.f32 %v401, %v1433
        %v1435 = vpop.f32.mrf.mxu0
        %1436 = vmatprep.mubr.f32.mxu0 0.0
        %1437 = vmatmul.mubr.f32.gmra.mxu0 %v755
        %v1438 = vpop.f32.mrf.mxu0
        %v1439 = vadd.f32 %v401, %v1438
        %v1440 = vpop.f32.mrf.mxu0
        %1441 = vmatprep.mubr.f32.mxu0 0.0
        %1442 = vmatmul.mubr.f32.gmra.mxu0 %v758
        %v1443 = vpop.f32.mrf.mxu0
        %v1444 = vadd.f32 %v401, %v1443
        %v1445 = vpop.f32.mrf.mxu0
        %1446 = vmatprep.mubr.f32.mxu0 0.0
        %1447 = vmatmul.mubr.f32.gmra.mxu0 %v761
        %v1448 = vpop.f32.mrf.mxu0
        %v1449 = vadd.f32 %v401, %v1448
        %v1450 = vpop.f32.mrf.mxu0
        %1451 = vmatprep.mubr.f32.mxu0 0.0
        %1452 = vmatmul.mubr.f32.gmra.mxu0 %v764
        %v1453 = vpop.f32.mrf.mxu0
        %v1454 = vadd.f32 %v401, %v1453
        %v1455 = vpop.f32.mrf.mxu0
        %1456 = vmatprep.mubr.f32.mxu0 0.0
        %1457 = vmatmul.mubr.f32.gmra.mxu0 %v767
        %v1458 = vpop.f32.mrf.mxu0
        %v1459 = vadd.f32 %v401, %v1458
        %v1460 = vpop.f32.mrf.mxu0
        %1461 = vmatprep.mubr.f32.mxu0 0.0
        %1462 = vmatmul.mubr.f32.gmra.mxu0 %v770
        %v1463 = vpop.f32.mrf.mxu0
        %v1464 = vadd.f32 %v401, %v1463
        %v1465 = vpop.f32.mrf.mxu0
        %1466 = vmatprep.mubr.f32.mxu0 0.0
        %1467 = vmatmul.mubr.f32.gmra.mxu0 %v773
        %v1468 = vpop.f32.mrf.mxu0
        %v1469 = vadd.f32 %v401, %v1468
        %v1470 = vpop.f32.mrf.mxu0
        %1471 = vmatprep.mubr.f32.mxu0 0.0
        %1472 = vmatmul.mubr.f32.gmra.mxu0 %v776
        %v1473 = vpop.f32.mrf.mxu0
        %v1474 = vadd.f32 %v401, %v1473
        %v1475 = vpop.f32.mrf.mxu0
        %1476 = vmatprep.mubr.f32.mxu0 0.0
        %1477 = vmatmul.mubr.f32.gmra.mxu0 %v779
        %v1478 = vpop.f32.mrf.mxu0
        %v1479 = vadd.f32 %v401, %v1478
        %v1480 = vpop.f32.mrf.mxu0
        %1481 = vmatprep.mubr.f32.mxu0 0.0
        %1482 = vmatmul.mubr.f32.gmra.mxu0 %v782
        %v1483 = vpop.f32.mrf.mxu0
        %v1484 = vadd.f32 %v401, %v1483
        %v1485 = vpop.f32.mrf.mxu0
        %1486 = vmatprep.mubr.f32.mxu0 0.0
        %1487 = vmatmul.mubr.f32.gmra.mxu0 %v785
        %v1488 = vpop.f32.mrf.mxu0
        %v1489 = vadd.f32 %v401, %v1488
        %v1490 = vpop.f32.mrf.mxu0
        %1491 = vdwg.mxu0
        %v1492 = vtanh.pop %v854
        %v1493 = vtanh.pop %v859
        %v1494 = vtanh.pop %v864
        %v1495 = vtanh.pop %v869
        %v1496 = vtanh.pop %v874
        %v1497 = vtanh.pop %v879
        %v1498 = vtanh.pop %v884
        %v1499 = vtanh.pop %v889
        %v1500 = vtanh.pop %v894
        %v1501 = vtanh.pop %v899
        %v1502 = vtanh.pop %v904
        %v1503 = vtanh.pop %v909
        %v1504 = vtanh.pop %v914
        %v1505 = vtanh.pop %v919
        %v1506 = vtanh.pop %v924
        %v1507 = vtanh.pop %v929
        %v1508 = vtanh.pop %v934
        %v1509 = vtanh.pop %v939
        %v1510 = vtanh.pop %v944
        %v1511 = vtanh.pop %v949
        %v1512 = vtanh.pop %v954
        %v1513 = vtanh.pop %v959
        %v1514 = vtanh.pop %v964
        %v1515 = vtanh.pop %v969
        %v1516 = vtanh.pop %v974
        %v1517 = vtanh.pop %v979
        %v1518 = vtanh.pop %v984
        %v1519 = vtanh.pop %v989
        %v1520 = vtanh.pop %v994
        %v1521 = vtanh.pop %v999
        %v1522 = vtanh.pop %v1004
        %v1523 = vtanh.pop %v1009
        %v1524 = vtanh.pop %v1014
        %v1525 = vtanh.pop %v1019
        %v1526 = vtanh.pop %v1024
        %v1527 = vtanh.pop %v1029
        %v1528 = vtanh.pop %v1034
        %v1529 = vtanh.pop %v1039
        %v1530 = vtanh.pop %v1044
        %v1531 = vtanh.pop %v1049
        %v1532 = vtanh.pop %v1054
        %v1533 = vtanh.pop %v1059
        %v1534 = vtanh.pop %v1064
        %v1535 = vtanh.pop %v1069
        %v1536 = vtanh.pop %v1074
        %v1537 = vtanh.pop %v1079
        %v1538 = vtanh.pop %v1084
        %v1539 = vtanh.pop %v1089
        %v1540 = vtanh.pop %v1094
        %v1541 = vtanh.pop %v1099
        %v1542 = vtanh.pop %v1104
        %v1543 = vtanh.pop %v1109
        %v1544 = vtanh.pop %v1114
        %v1545 = vtanh.pop %v1119
        %v1546 = vtanh.pop %v1124
        %v1547 = vtanh.pop %v1129
        %v1548 = vtanh.pop %v1134
        %v1549 = vtanh.pop %v1139
        %v1550 = vtanh.pop %v1144
        %v1551 = vtanh.pop %v1149
        %v1552 = vtanh.pop %v1154
        %v1553 = vtanh.pop %v1159
        %v1554 = vtanh.pop %v1164
        %v1555 = vtanh.pop %v1169
        %v1556 = vtanh.pop %v1174
        %v1557 = vtanh.pop %v1179
        %v1558 = vtanh.pop %v1184
        %v1559 = vtanh.pop %v1189
        %v1560 = vtanh.pop %v1194
        %v1561 = vtanh.pop %v1199
        %v1562 = vtanh.pop %v1204
        %v1563 = vtanh.pop %v1209
        %v1564 = vtanh.pop %v1214
        %v1565 = vtanh.pop %v1219
        %v1566 = vtanh.pop %v1224
        %v1567 = vtanh.pop %v1229
        %v1568 = vtanh.pop %v1234
        %v1569 = vtanh.pop %v1239
        %v1570 = vtanh.pop %v1244
        %v1571 = vtanh.pop %v1249
        %v1572 = vtanh.pop %v1254
        %v1573 = vtanh.pop %v1259
        %v1574 = vtanh.pop %v1264
        %v1575 = vtanh.pop %v1269
        %v1576 = vtanh.pop %v1274
        %v1577 = vtanh.pop %v1279
        %v1578 = vtanh.pop %v1284
        %v1579 = vtanh.pop %v1289
        %v1580 = vtanh.pop %v1294
        %v1581 = vtanh.pop %v1299
        %v1582 = vtanh.pop %v1304
        %v1583 = vtanh.pop %v1309
        %v1584 = vtanh.pop %v1314
        %v1585 = vtanh.pop %v1319
        %v1586 = vtanh.pop %v1324
        %v1587 = vtanh.pop %v1329
        %v1588 = vtanh.pop %v1334
        %v1589 = vtanh.pop %v1339
        %v1590 = vtanh.pop %v1344
        %v1591 = vtanh.pop %v1349
        %v1592 = vtanh.pop %v1354
        %v1593 = vtanh.pop %v1359
        %v1594 = vtanh.pop %v1364
        %v1595 = vtanh.pop %v1369
        %v1596 = vtanh.pop %v1374
        %v1597 = vtanh.pop %v1379
        %v1598 = vtanh.pop %v1384
        %v1599 = vtanh.pop %v1389
        %v1600 = vtanh.pop %v1394
        %v1601 = vtanh.pop %v1399
        %v1602 = vtanh.pop %v1404
        %v1603 = vtanh.pop %v1409
        %v1604 = vtanh.pop %v1414
        %v1605 = vtanh.pop %v1419
        %v1606 = vtanh.pop %v1424
        %v1607 = vtanh.pop %v1429
        %v1608 = vtanh.pop %v1434
        %v1609 = vtanh.pop %v1439
        %v1610 = vtanh.pop %v1444
        %v1611 = vtanh.pop %v1449
        %v1612 = vtanh.pop %v1454
        %v1613 = vtanh.pop %v1459
        %v1614 = vtanh.pop %v1464
        %v1615 = vtanh.pop %v1469
        %v1616 = vtanh.pop %v1474
        %v1617 = vtanh.pop %v1479
        %v1618 = vtanh.pop %v1484
        %v1619 = vtanh.pop %v1489
        %v1620 = vlaneseq
        %v1621 = vshrl.u32 %v1620, 7
        %v1622 = vsub.s32 0, %v1621
        %v1623 = vrot.slane %v393, %v1622
        %v1624 = vmul.f32 %v1492, %v1623
        %v1625 = vmul.f32 %v1493, %v1623
        %v1626 = vmul.f32 %v1494, %v1623
        %v1627 = vmul.f32 %v1495, %v1623
        %v1628 = vmul.f32 %v1496, %v1623
        %v1629 = vmul.f32 %v1497, %v1623
        %v1630 = vmul.f32 %v1498, %v1623
        %v1631 = vmul.f32 %v1499, %v1623
        %v1632 = vmul.f32 %v1500, %v1623
        %v1633 = vmul.f32 %v1501, %v1623
        %v1634 = vmul.f32 %v1502, %v1623
        %v1635 = vmul.f32 %v1503, %v1623
        %v1636 = vmul.f32 %v1504, %v1623
        %v1637 = vmul.f32 %v1505, %v1623
        %v1638 = vmul.f32 %v1506, %v1623
        %v1639 = vmul.f32 %v1507, %v1623
        %v1640 = vmul.f32 %v1508, %v1623
        %v1641 = vmul.f32 %v1509, %v1623
        %v1642 = vmul.f32 %v1510, %v1623
        %v1643 = vmul.f32 %v1511, %v1623
        %v1644 = vmul.f32 %v1512, %v1623
        %v1645 = vmul.f32 %v1513, %v1623
        %v1646 = vmul.f32 %v1514, %v1623
        %v1647 = vmul.f32 %v1515, %v1623
        %v1648 = vmul.f32 %v1516, %v1623
        %v1649 = vmul.f32 %v1517, %v1623
        %v1650 = vmul.f32 %v1518, %v1623
        %v1651 = vmul.f32 %v1519, %v1623
        %v1652 = vmul.f32 %v1520, %v1623
        %v1653 = vmul.f32 %v1521, %v1623
        %v1654 = vmul.f32 %v1522, %v1623
        %v1655 = vmul.f32 %v1523, %v1623
        %v1656 = vmul.f32 %v1524, %v1623
        %v1657 = vmul.f32 %v1525, %v1623
        %v1658 = vmul.f32 %v1526, %v1623
        %v1659 = vmul.f32 %v1527, %v1623
        %v1660 = vmul.f32 %v1528, %v1623
        %v1661 = vmul.f32 %v1529, %v1623
        %v1662 = vmul.f32 %v1530, %v1623
        %v1663 = vmul.f32 %v1531, %v1623
        %v1664 = vmul.f32 %v1532, %v1623
        %v1665 = vmul.f32 %v1533, %v1623
        %v1666 = vmul.f32 %v1534, %v1623
        %v1667 = vmul.f32 %v1535, %v1623
        %v1668 = vmul.f32 %v1536, %v1623
        %v1669 = vmul.f32 %v1537, %v1623
        %v1670 = vmul.f32 %v1538, %v1623
        %v1671 = vmul.f32 %v1539, %v1623
        %v1672 = vmul.f32 %v1540, %v1623
        %v1673 = vmul.f32 %v1541, %v1623
        %v1674 = vmul.f32 %v1542, %v1623
        %v1675 = vmul.f32 %v1543, %v1623
        %v1676 = vmul.f32 %v1544, %v1623
        %v1677 = vmul.f32 %v1545, %v1623
        %v1678 = vmul.f32 %v1546, %v1623
        %v1679 = vmul.f32 %v1547, %v1623
        %v1680 = vmul.f32 %v1548, %v1623
        %v1681 = vmul.f32 %v1549, %v1623
        %v1682 = vmul.f32 %v1550, %v1623
        %v1683 = vmul.f32 %v1551, %v1623
        %v1684 = vmul.f32 %v1552, %v1623
        %v1685 = vmul.f32 %v1553, %v1623
        %v1686 = vmul.f32 %v1554, %v1623
        %v1687 = vmul.f32 %v1555, %v1623
        %v1688 = vmul.f32 %v1556, %v1623
        %v1689 = vmul.f32 %v1557, %v1623
        %v1690 = vmul.f32 %v1558, %v1623
        %v1691 = vmul.f32 %v1559, %v1623
        %v1692 = vmul.f32 %v1560, %v1623
        %v1693 = vmul.f32 %v1561, %v1623
        %v1694 = vmul.f32 %v1562, %v1623
        %v1695 = vmul.f32 %v1563, %v1623
        %v1696 = vmul.f32 %v1564, %v1623
        %v1697 = vmul.f32 %v1565, %v1623
        %v1698 = vmul.f32 %v1566, %v1623
        %v1699 = vmul.f32 %v1567, %v1623
        %v1700 = vmul.f32 %v1568, %v1623
        %v1701 = vmul.f32 %v1569, %v1623
        %v1702 = vmul.f32 %v1570, %v1623
        %v1703 = vmul.f32 %v1571, %v1623
        %v1704 = vmul.f32 %v1572, %v1623
        %v1705 = vmul.f32 %v1573, %v1623
        %v1706 = vmul.f32 %v1574, %v1623
        %v1707 = vmul.f32 %v1575, %v1623
        %v1708 = vmul.f32 %v1576, %v1623
        %v1709 = vmul.f32 %v1577, %v1623
        %v1710 = vmul.f32 %v1578, %v1623
        %v1711 = vmul.f32 %v1579, %v1623
        %v1712 = vmul.f32 %v1580, %v1623
        %v1713 = vmul.f32 %v1581, %v1623
        %v1714 = vmul.f32 %v1582, %v1623
        %v1715 = vmul.f32 %v1583, %v1623
        %v1716 = vmul.f32 %v1584, %v1623
        %v1717 = vmul.f32 %v1585, %v1623
        %v1718 = vmul.f32 %v1586, %v1623
        %v1719 = vmul.f32 %v1587, %v1623
        %v1720 = vmul.f32 %v1588, %v1623
        %v1721 = vmul.f32 %v1589, %v1623
        %v1722 = vmul.f32 %v1590, %v1623
        %v1723 = vmul.f32 %v1591, %v1623
        %v1724 = vmul.f32 %v1592, %v1623
        %v1725 = vmul.f32 %v1593, %v1623
        %v1726 = vmul.f32 %v1594, %v1623
        %v1727 = vmul.f32 %v1595, %v1623
        %v1728 = vmul.f32 %v1596, %v1623
        %v1729 = vmul.f32 %v1597, %v1623
        %v1730 = vmul.f32 %v1598, %v1623
        %v1731 = vmul.f32 %v1599, %v1623
        %v1732 = vmul.f32 %v1600, %v1623
        %v1733 = vmul.f32 %v1601, %v1623
        %v1734 = vmul.f32 %v1602, %v1623
        %v1735 = vmul.f32 %v1603, %v1623
        %v1736 = vmul.f32 %v1604, %v1623
        %v1737 = vmul.f32 %v1605, %v1623
        %v1738 = vmul.f32 %v1606, %v1623
        %v1739 = vmul.f32 %v1607, %v1623
        %v1740 = vmul.f32 %v1608, %v1623
        %v1741 = vmul.f32 %v1609, %v1623
        %v1742 = vmul.f32 %v1610, %v1623
        %v1743 = vmul.f32 %v1611, %v1623
        %v1744 = vmul.f32 %v1612, %v1623
        %v1745 = vmul.f32 %v1613, %v1623
        %v1746 = vmul.f32 %v1614, %v1623
        %v1747 = vmul.f32 %v1615, %v1623
        %v1748 = vmul.f32 %v1616, %v1623
        %v1749 = vmul.f32 %v1617, %v1623
        %v1750 = vmul.f32 %v1618, %v1623
        %v1751 = vmul.f32 %v1619, %v1623
        %1752 = vadd.xlane.f32.xlu0 %v1624
        %v1753 = vpop.xlane.xlu0 %1752
        %1754 = vadd.xlane.f32.xlu0 %v1625
        %v1755 = vpop.xlane.xlu0 %1754
        %1756 = vadd.xlane.f32.xlu0 %v1626
        %v1757 = vpop.xlane.xlu0 %1756
        %1758 = vadd.xlane.f32.xlu0 %v1627
        %v1759 = vpop.xlane.xlu0 %1758
        %1760 = vadd.xlane.f32.xlu0 %v1628
        %v1761 = vpop.xlane.xlu0 %1760
        %1762 = vadd.xlane.f32.xlu0 %v1629
        %v1763 = vpop.xlane.xlu0 %1762
        %1764 = vadd.xlane.f32.xlu0 %v1630
        %v1765 = vpop.xlane.xlu0 %1764
        %1766 = vadd.xlane.f32.xlu0 %v1631
        %v1767 = vpop.xlane.xlu0 %1766
        %1768 = vadd.xlane.f32.xlu0 %v1632
        %v1769 = vpop.xlane.xlu0 %1768
        %1770 = vadd.xlane.f32.xlu0 %v1633
        %v1771 = vpop.xlane.xlu0 %1770
        %1772 = vadd.xlane.f32.xlu0 %v1634
        %v1773 = vpop.xlane.xlu0 %1772
        %1774 = vadd.xlane.f32.xlu0 %v1635
        %v1775 = vpop.xlane.xlu0 %1774
        %1776 = vadd.xlane.f32.xlu0 %v1636
        %v1777 = vpop.xlane.xlu0 %1776
        %1778 = vadd.xlane.f32.xlu0 %v1637
        %v1779 = vpop.xlane.xlu0 %1778
        %1780 = vadd.xlane.f32.xlu0 %v1638
        %v1781 = vpop.xlane.xlu0 %1780
        %1782 = vadd.xlane.f32.xlu0 %v1639
        %v1783 = vpop.xlane.xlu0 %1782
        %1784 = vadd.xlane.f32.xlu0 %v1640
        %v1785 = vpop.xlane.xlu0 %1784
        %1786 = vadd.xlane.f32.xlu0 %v1641
        %v1787 = vpop.xlane.xlu0 %1786
        %1788 = vadd.xlane.f32.xlu0 %v1642
        %v1789 = vpop.xlane.xlu0 %1788
        %1790 = vadd.xlane.f32.xlu0 %v1643
        %v1791 = vpop.xlane.xlu0 %1790
        %1792 = vadd.xlane.f32.xlu0 %v1644
        %v1793 = vpop.xlane.xlu0 %1792
        %1794 = vadd.xlane.f32.xlu0 %v1645
        %v1795 = vpop.xlane.xlu0 %1794
        %1796 = vadd.xlane.f32.xlu0 %v1646
        %v1797 = vpop.xlane.xlu0 %1796
        %1798 = vadd.xlane.f32.xlu0 %v1647
        %v1799 = vpop.xlane.xlu0 %1798
        %1800 = vadd.xlane.f32.xlu0 %v1648
        %v1801 = vpop.xlane.xlu0 %1800
        %1802 = vadd.xlane.f32.xlu0 %v1649
        %v1803 = vpop.xlane.xlu0 %1802
        %1804 = vadd.xlane.f32.xlu0 %v1650
        %v1805 = vpop.xlane.xlu0 %1804
        %1806 = vadd.xlane.f32.xlu0 %v1651
        %v1807 = vpop.xlane.xlu0 %1806
        %1808 = vadd.xlane.f32.xlu0 %v1652
        %v1809 = vpop.xlane.xlu0 %1808
        %1810 = vadd.xlane.f32.xlu0 %v1653
        %v1811 = vpop.xlane.xlu0 %1810
        %1812 = vadd.xlane.f32.xlu0 %v1654
        %v1813 = vpop.xlane.xlu0 %1812
        %1814 = vadd.xlane.f32.xlu0 %v1655
        %v1815 = vpop.xlane.xlu0 %1814
        %1816 = vadd.xlane.f32.xlu0 %v1656
        %v1817 = vpop.xlane.xlu0 %1816
        %1818 = vadd.xlane.f32.xlu0 %v1657
        %v1819 = vpop.xlane.xlu0 %1818
        %1820 = vadd.xlane.f32.xlu0 %v1658
        %v1821 = vpop.xlane.xlu0 %1820
        %1822 = vadd.xlane.f32.xlu0 %v1659
        %v1823 = vpop.xlane.xlu0 %1822
        %1824 = vadd.xlane.f32.xlu0 %v1660
        %v1825 = vpop.xlane.xlu0 %1824
        %1826 = vadd.xlane.f32.xlu0 %v1661
        %v1827 = vpop.xlane.xlu0 %1826
        %1828 = vadd.xlane.f32.xlu0 %v1662
        %v1829 = vpop.xlane.xlu0 %1828
        %1830 = vadd.xlane.f32.xlu0 %v1663
        %v1831 = vpop.xlane.xlu0 %1830
        %1832 = vadd.xlane.f32.xlu0 %v1664
        %v1833 = vpop.xlane.xlu0 %1832
        %1834 = vadd.xlane.f32.xlu0 %v1665
        %v1835 = vpop.xlane.xlu0 %1834
        %1836 = vadd.xlane.f32.xlu0 %v1666
        %v1837 = vpop.xlane.xlu0 %1836
        %1838 = vadd.xlane.f32.xlu0 %v1667
        %v1839 = vpop.xlane.xlu0 %1838
        %1840 = vadd.xlane.f32.xlu0 %v1668
        %v1841 = vpop.xlane.xlu0 %1840
        %1842 = vadd.xlane.f32.xlu0 %v1669
        %v1843 = vpop.xlane.xlu0 %1842
        %1844 = vadd.xlane.f32.xlu0 %v1670
        %v1845 = vpop.xlane.xlu0 %1844
        %1846 = vadd.xlane.f32.xlu0 %v1671
        %v1847 = vpop.xlane.xlu0 %1846
        %1848 = vadd.xlane.f32.xlu0 %v1672
        %v1849 = vpop.xlane.xlu0 %1848
        %1850 = vadd.xlane.f32.xlu0 %v1673
        %v1851 = vpop.xlane.xlu0 %1850
        %1852 = vadd.xlane.f32.xlu0 %v1674
        %v1853 = vpop.xlane.xlu0 %1852
        %1854 = vadd.xlane.f32.xlu0 %v1675
        %v1855 = vpop.xlane.xlu0 %1854
        %1856 = vadd.xlane.f32.xlu0 %v1676
        %v1857 = vpop.xlane.xlu0 %1856
        %1858 = vadd.xlane.f32.xlu0 %v1677
        %v1859 = vpop.xlane.xlu0 %1858
        %1860 = vadd.xlane.f32.xlu0 %v1678
        %v1861 = vpop.xlane.xlu0 %1860
        %1862 = vadd.xlane.f32.xlu0 %v1679
        %v1863 = vpop.xlane.xlu0 %1862
        %1864 = vadd.xlane.f32.xlu0 %v1680
        %v1865 = vpop.xlane.xlu0 %1864
        %1866 = vadd.xlane.f32.xlu0 %v1681
        %v1867 = vpop.xlane.xlu0 %1866
        %1868 = vadd.xlane.f32.xlu0 %v1682
        %v1869 = vpop.xlane.xlu0 %1868
        %1870 = vadd.xlane.f32.xlu0 %v1683
        %v1871 = vpop.xlane.xlu0 %1870
        %1872 = vadd.xlane.f32.xlu0 %v1684
        %v1873 = vpop.xlane.xlu0 %1872
        %1874 = vadd.xlane.f32.xlu0 %v1685
        %v1875 = vpop.xlane.xlu0 %1874
        %1876 = vadd.xlane.f32.xlu0 %v1686
        %v1877 = vpop.xlane.xlu0 %1876
        %1878 = vadd.xlane.f32.xlu0 %v1687
        %v1879 = vpop.xlane.xlu0 %1878
        %1880 = vadd.xlane.f32.xlu0 %v1688
        %v1881 = vpop.xlane.xlu0 %1880
        %1882 = vadd.xlane.f32.xlu0 %v1689
        %v1883 = vpop.xlane.xlu0 %1882
        %1884 = vadd.xlane.f32.xlu0 %v1690
        %v1885 = vpop.xlane.xlu0 %1884
        %1886 = vadd.xlane.f32.xlu0 %v1691
        %v1887 = vpop.xlane.xlu0 %1886
        %1888 = vadd.xlane.f32.xlu0 %v1692
        %v1889 = vpop.xlane.xlu0 %1888
        %1890 = vadd.xlane.f32.xlu0 %v1693
        %v1891 = vpop.xlane.xlu0 %1890
        %1892 = vadd.xlane.f32.xlu0 %v1694
        %v1893 = vpop.xlane.xlu0 %1892
        %1894 = vadd.xlane.f32.xlu0 %v1695
        %v1895 = vpop.xlane.xlu0 %1894
        %1896 = vadd.xlane.f32.xlu0 %v1696
        %v1897 = vpop.xlane.xlu0 %1896
        %1898 = vadd.xlane.f32.xlu0 %v1697
        %v1899 = vpop.xlane.xlu0 %1898
        %1900 = vadd.xlane.f32.xlu0 %v1698
        %v1901 = vpop.xlane.xlu0 %1900
        %1902 = vadd.xlane.f32.xlu0 %v1699
        %v1903 = vpop.xlane.xlu0 %1902
        %1904 = vadd.xlane.f32.xlu0 %v1700
        %v1905 = vpop.xlane.xlu0 %1904
        %1906 = vadd.xlane.f32.xlu0 %v1701
        %v1907 = vpop.xlane.xlu0 %1906
        %1908 = vadd.xlane.f32.xlu0 %v1702
        %v1909 = vpop.xlane.xlu0 %1908
        %1910 = vadd.xlane.f32.xlu0 %v1703
        %v1911 = vpop.xlane.xlu0 %1910
        %1912 = vadd.xlane.f32.xlu0 %v1704
        %v1913 = vpop.xlane.xlu0 %1912
        %1914 = vadd.xlane.f32.xlu0 %v1705
        %v1915 = vpop.xlane.xlu0 %1914
        %1916 = vadd.xlane.f32.xlu0 %v1706
        %v1917 = vpop.xlane.xlu0 %1916
        %1918 = vadd.xlane.f32.xlu0 %v1707
        %v1919 = vpop.xlane.xlu0 %1918
        %1920 = vadd.xlane.f32.xlu0 %v1708
        %v1921 = vpop.xlane.xlu0 %1920
        %1922 = vadd.xlane.f32.xlu0 %v1709
        %v1923 = vpop.xlane.xlu0 %1922
        %1924 = vadd.xlane.f32.xlu0 %v1710
        %v1925 = vpop.xlane.xlu0 %1924
        %1926 = vadd.xlane.f32.xlu0 %v1711
        %v1927 = vpop.xlane.xlu0 %1926
        %1928 = vadd.xlane.f32.xlu0 %v1712
        %v1929 = vpop.xlane.xlu0 %1928
        %1930 = vadd.xlane.f32.xlu0 %v1713
        %v1931 = vpop.xlane.xlu0 %1930
        %1932 = vadd.xlane.f32.xlu0 %v1714
        %v1933 = vpop.xlane.xlu0 %1932
        %1934 = vadd.xlane.f32.xlu0 %v1715
        %v1935 = vpop.xlane.xlu0 %1934
        %1936 = vadd.xlane.f32.xlu0 %v1716
        %v1937 = vpop.xlane.xlu0 %1936
        %1938 = vadd.xlane.f32.xlu0 %v1717
        %v1939 = vpop.xlane.xlu0 %1938
        %1940 = vadd.xlane.f32.xlu0 %v1718
        %v1941 = vpop.xlane.xlu0 %1940
        %1942 = vadd.xlane.f32.xlu0 %v1719
        %v1943 = vpop.xlane.xlu0 %1942
        %1944 = vadd.xlane.f32.xlu0 %v1720
        %v1945 = vpop.xlane.xlu0 %1944
        %1946 = vadd.xlane.f32.xlu0 %v1721
        %v1947 = vpop.xlane.xlu0 %1946
        %1948 = vadd.xlane.f32.xlu0 %v1722
        %v1949 = vpop.xlane.xlu0 %1948
        %1950 = vadd.xlane.f32.xlu0 %v1723
        %v1951 = vpop.xlane.xlu0 %1950
        %1952 = vadd.xlane.f32.xlu0 %v1724
        %v1953 = vpop.xlane.xlu0 %1952
        %1954 = vadd.xlane.f32.xlu0 %v1725
        %v1955 = vpop.xlane.xlu0 %1954
        %1956 = vadd.xlane.f32.xlu0 %v1726
        %v1957 = vpop.xlane.xlu0 %1956
        %1958 = vadd.xlane.f32.xlu0 %v1727
        %v1959 = vpop.xlane.xlu0 %1958
        %1960 = vadd.xlane.f32.xlu0 %v1728
        %v1961 = vpop.xlane.xlu0 %1960
        %1962 = vadd.xlane.f32.xlu0 %v1729
        %v1963 = vpop.xlane.xlu0 %1962
        %1964 = vadd.xlane.f32.xlu0 %v1730
        %v1965 = vpop.xlane.xlu0 %1964
        %1966 = vadd.xlane.f32.xlu0 %v1731
        %v1967 = vpop.xlane.xlu0 %1966
        %1968 = vadd.xlane.f32.xlu0 %v1732
        %v1969 = vpop.xlane.xlu0 %1968
        %1970 = vadd.xlane.f32.xlu0 %v1733
        %v1971 = vpop.xlane.xlu0 %1970
        %1972 = vadd.xlane.f32.xlu0 %v1734
        %v1973 = vpop.xlane.xlu0 %1972
        %1974 = vadd.xlane.f32.xlu0 %v1735
        %v1975 = vpop.xlane.xlu0 %1974
        %1976 = vadd.xlane.f32.xlu0 %v1736
        %v1977 = vpop.xlane.xlu0 %1976
        %1978 = vadd.xlane.f32.xlu0 %v1737
        %v1979 = vpop.xlane.xlu0 %1978
        %1980 = vadd.xlane.f32.xlu0 %v1738
        %v1981 = vpop.xlane.xlu0 %1980
        %1982 = vadd.xlane.f32.xlu0 %v1739
        %v1983 = vpop.xlane.xlu0 %1982
        %1984 = vadd.xlane.f32.xlu0 %v1740
        %v1985 = vpop.xlane.xlu0 %1984
        %1986 = vadd.xlane.f32.xlu0 %v1741
        %v1987 = vpop.xlane.xlu0 %1986
        %1988 = vadd.xlane.f32.xlu0 %v1742
        %v1989 = vpop.xlane.xlu0 %1988
        %1990 = vadd.xlane.f32.xlu0 %v1743
        %v1991 = vpop.xlane.xlu0 %1990
        %1992 = vadd.xlane.f32.xlu0 %v1744
        %v1993 = vpop.xlane.xlu0 %1992
        %1994 = vadd.xlane.f32.xlu0 %v1745
        %v1995 = vpop.xlane.xlu0 %1994
        %1996 = vadd.xlane.f32.xlu0 %v1746
        %v1997 = vpop.xlane.xlu0 %1996
        %1998 = vadd.xlane.f32.xlu0 %v1747
        %v1999 = vpop.xlane.xlu0 %1998
        %2000 = vadd.xlane.f32.xlu0 %v1748
        %v2001 = vpop.xlane.xlu0 %2000
        %2002 = vadd.xlane.f32.xlu0 %v1749
        %v2003 = vpop.xlane.xlu0 %2002
        %2004 = vadd.xlane.f32.xlu0 %v1750
        %v2005 = vpop.xlane.xlu0 %2004
        %2006 = vadd.xlane.f32.xlu0 %v1751
        %v2007 = vpop.xlane.xlu0 %2006
        %v2136 = vlaneseq
        %v2137 = vand.u32 %v2136, 127
        %v2138 = vlaneseq
        %v2139 = vshrl.u32 %v2138, 7
        %v2140 = vsub.s32 %v2137, %v2139
        %v2141 = vrot.slane %v1753, %v2140
        %v2142 = vlaneseq
        %v2143 = vshrl.u32 %v2142, 7
        %v2144 = vsub.s32 %v2137, %v2143
        %v2145 = vrot.slane %v1755, %v2144
        %v2146 = vlaneseq
        %v2147 = vshrl.u32 %v2146, 7
        %v2148 = vsub.s32 %v2137, %v2147
        %v2149 = vrot.slane %v1757, %v2148
        %v2150 = vlaneseq
        %v2151 = vshrl.u32 %v2150, 7
        %v2152 = vsub.s32 %v2137, %v2151
        %v2153 = vrot.slane %v1759, %v2152
        %v2154 = vlaneseq
        %v2155 = vshrl.u32 %v2154, 7
        %v2156 = vsub.s32 %v2137, %v2155
        %v2157 = vrot.slane %v1761, %v2156
        %v2158 = vlaneseq
        %v2159 = vshrl.u32 %v2158, 7
        %v2160 = vsub.s32 %v2137, %v2159
        %v2161 = vrot.slane %v1763, %v2160
        %v2162 = vlaneseq
        %v2163 = vshrl.u32 %v2162, 7
        %v2164 = vsub.s32 %v2137, %v2163
        %v2165 = vrot.slane %v1765, %v2164
        %v2166 = vlaneseq
        %v2167 = vshrl.u32 %v2166, 7
        %v2168 = vsub.s32 %v2137, %v2167
        %v2169 = vrot.slane %v1767, %v2168
        %v2170 = vlaneseq
        %v2171 = vshrl.u32 %v2170, 7
        %v2172 = vsub.s32 %v2137, %v2171
        %v2173 = vrot.slane %v1769, %v2172
        %v2174 = vlaneseq
        %v2175 = vshrl.u32 %v2174, 7
        %v2176 = vsub.s32 %v2137, %v2175
        %v2177 = vrot.slane %v1771, %v2176
        %v2178 = vlaneseq
        %v2179 = vshrl.u32 %v2178, 7
        %v2180 = vsub.s32 %v2137, %v2179
        %v2181 = vrot.slane %v1773, %v2180
        %v2182 = vlaneseq
        %v2183 = vshrl.u32 %v2182, 7
        %v2184 = vsub.s32 %v2137, %v2183
        %v2185 = vrot.slane %v1775, %v2184
        %v2186 = vlaneseq
        %v2187 = vshrl.u32 %v2186, 7
        %v2188 = vsub.s32 %v2137, %v2187
        %v2189 = vrot.slane %v1777, %v2188
        %v2190 = vlaneseq
        %v2191 = vshrl.u32 %v2190, 7
        %v2192 = vsub.s32 %v2137, %v2191
        %v2193 = vrot.slane %v1779, %v2192
        %v2194 = vlaneseq
        %v2195 = vshrl.u32 %v2194, 7
        %v2196 = vsub.s32 %v2137, %v2195
        %v2197 = vrot.slane %v1781, %v2196
        %v2198 = vlaneseq
        %v2199 = vshrl.u32 %v2198, 7
        %v2200 = vsub.s32 %v2137, %v2199
        %v2201 = vrot.slane %v1783, %v2200
        %v2202 = vlaneseq
        %v2203 = vshrl.u32 %v2202, 7
        %v2204 = vsub.s32 %v2137, %v2203
        %v2205 = vrot.slane %v1785, %v2204
        %v2206 = vlaneseq
        %v2207 = vshrl.u32 %v2206, 7
        %v2208 = vsub.s32 %v2137, %v2207
        %v2209 = vrot.slane %v1787, %v2208
        %v2210 = vlaneseq
        %v2211 = vshrl.u32 %v2210, 7
        %v2212 = vsub.s32 %v2137, %v2211
        %v2213 = vrot.slane %v1789, %v2212
        %v2214 = vlaneseq
        %v2215 = vshrl.u32 %v2214, 7
        %v2216 = vsub.s32 %v2137, %v2215
        %v2217 = vrot.slane %v1791, %v2216
        %v2218 = vlaneseq
        %v2219 = vshrl.u32 %v2218, 7
        %v2220 = vsub.s32 %v2137, %v2219
        %v2221 = vrot.slane %v1793, %v2220
        %v2222 = vlaneseq
        %v2223 = vshrl.u32 %v2222, 7
        %v2224 = vsub.s32 %v2137, %v2223
        %v2225 = vrot.slane %v1795, %v2224
        %v2226 = vlaneseq
        %v2227 = vshrl.u32 %v2226, 7
        %v2228 = vsub.s32 %v2137, %v2227
        %v2229 = vrot.slane %v1797, %v2228
        %v2230 = vlaneseq
        %v2231 = vshrl.u32 %v2230, 7
        %v2232 = vsub.s32 %v2137, %v2231
        %v2233 = vrot.slane %v1799, %v2232
        %v2234 = vlaneseq
        %v2235 = vshrl.u32 %v2234, 7
        %v2236 = vsub.s32 %v2137, %v2235
        %v2237 = vrot.slane %v1801, %v2236
        %v2238 = vlaneseq
        %v2239 = vshrl.u32 %v2238, 7
        %v2240 = vsub.s32 %v2137, %v2239
        %v2241 = vrot.slane %v1803, %v2240
        %v2242 = vlaneseq
        %v2243 = vshrl.u32 %v2242, 7
        %v2244 = vsub.s32 %v2137, %v2243
        %v2245 = vrot.slane %v1805, %v2244
        %v2246 = vlaneseq
        %v2247 = vshrl.u32 %v2246, 7
        %v2248 = vsub.s32 %v2137, %v2247
        %v2249 = vrot.slane %v1807, %v2248
        %v2250 = vlaneseq
        %v2251 = vshrl.u32 %v2250, 7
        %v2252 = vsub.s32 %v2137, %v2251
        %v2253 = vrot.slane %v1809, %v2252
        %v2254 = vlaneseq
        %v2255 = vshrl.u32 %v2254, 7
        %v2256 = vsub.s32 %v2137, %v2255
        %v2257 = vrot.slane %v1811, %v2256
        %v2258 = vlaneseq
        %v2259 = vshrl.u32 %v2258, 7
        %v2260 = vsub.s32 %v2137, %v2259
        %v2261 = vrot.slane %v1813, %v2260
        %v2262 = vlaneseq
        %v2263 = vshrl.u32 %v2262, 7
        %v2264 = vsub.s32 %v2137, %v2263
        %v2265 = vrot.slane %v1815, %v2264
        %v2266 = vlaneseq
        %v2267 = vshrl.u32 %v2266, 7
        %v2268 = vsub.s32 %v2137, %v2267
        %v2269 = vrot.slane %v1817, %v2268
        %v2270 = vlaneseq
        %v2271 = vshrl.u32 %v2270, 7
        %v2272 = vsub.s32 %v2137, %v2271
        %v2273 = vrot.slane %v1819, %v2272
        %v2274 = vlaneseq
        %v2275 = vshrl.u32 %v2274, 7
        %v2276 = vsub.s32 %v2137, %v2275
        %v2277 = vrot.slane %v1821, %v2276
        %v2278 = vlaneseq
        %v2279 = vshrl.u32 %v2278, 7
        %v2280 = vsub.s32 %v2137, %v2279
        %v2281 = vrot.slane %v1823, %v2280
        %v2282 = vlaneseq
        %v2283 = vshrl.u32 %v2282, 7
        %v2284 = vsub.s32 %v2137, %v2283
        %v2285 = vrot.slane %v1825, %v2284
        %v2286 = vlaneseq
        %v2287 = vshrl.u32 %v2286, 7
        %v2288 = vsub.s32 %v2137, %v2287
        %v2289 = vrot.slane %v1827, %v2288
        %v2290 = vlaneseq
        %v2291 = vshrl.u32 %v2290, 7
        %v2292 = vsub.s32 %v2137, %v2291
        %v2293 = vrot.slane %v1829, %v2292
        %v2294 = vlaneseq
        %v2295 = vshrl.u32 %v2294, 7
        %v2296 = vsub.s32 %v2137, %v2295
        %v2297 = vrot.slane %v1831, %v2296
        %v2298 = vlaneseq
        %v2299 = vshrl.u32 %v2298, 7
        %v2300 = vsub.s32 %v2137, %v2299
        %v2301 = vrot.slane %v1833, %v2300
        %v2302 = vlaneseq
        %v2303 = vshrl.u32 %v2302, 7
        %v2304 = vsub.s32 %v2137, %v2303
        %v2305 = vrot.slane %v1835, %v2304
        %v2306 = vlaneseq
        %v2307 = vshrl.u32 %v2306, 7
        %v2308 = vsub.s32 %v2137, %v2307
        %v2309 = vrot.slane %v1837, %v2308
        %v2310 = vlaneseq
        %v2311 = vshrl.u32 %v2310, 7
        %v2312 = vsub.s32 %v2137, %v2311
        %v2313 = vrot.slane %v1839, %v2312
        %v2314 = vlaneseq
        %v2315 = vshrl.u32 %v2314, 7
        %v2316 = vsub.s32 %v2137, %v2315
        %v2317 = vrot.slane %v1841, %v2316
        %v2318 = vlaneseq
        %v2319 = vshrl.u32 %v2318, 7
        %v2320 = vsub.s32 %v2137, %v2319
        %v2321 = vrot.slane %v1843, %v2320
        %v2322 = vlaneseq
        %v2323 = vshrl.u32 %v2322, 7
        %v2324 = vsub.s32 %v2137, %v2323
        %v2325 = vrot.slane %v1845, %v2324
        %v2326 = vlaneseq
        %v2327 = vshrl.u32 %v2326, 7
        %v2328 = vsub.s32 %v2137, %v2327
        %v2329 = vrot.slane %v1847, %v2328
        %v2330 = vlaneseq
        %v2331 = vshrl.u32 %v2330, 7
        %v2332 = vsub.s32 %v2137, %v2331
        %v2333 = vrot.slane %v1849, %v2332
        %v2334 = vlaneseq
        %v2335 = vshrl.u32 %v2334, 7
        %v2336 = vsub.s32 %v2137, %v2335
        %v2337 = vrot.slane %v1851, %v2336
        %v2338 = vlaneseq
        %v2339 = vshrl.u32 %v2338, 7
        %v2340 = vsub.s32 %v2137, %v2339
        %v2341 = vrot.slane %v1853, %v2340
        %v2342 = vlaneseq
        %v2343 = vshrl.u32 %v2342, 7
        %v2344 = vsub.s32 %v2137, %v2343
        %v2345 = vrot.slane %v1855, %v2344
        %v2346 = vlaneseq
        %v2347 = vshrl.u32 %v2346, 7
        %v2348 = vsub.s32 %v2137, %v2347
        %v2349 = vrot.slane %v1857, %v2348
        %v2350 = vlaneseq
        %v2351 = vshrl.u32 %v2350, 7
        %v2352 = vsub.s32 %v2137, %v2351
        %v2353 = vrot.slane %v1859, %v2352
        %v2354 = vlaneseq
        %v2355 = vshrl.u32 %v2354, 7
        %v2356 = vsub.s32 %v2137, %v2355
        %v2357 = vrot.slane %v1861, %v2356
        %v2358 = vlaneseq
        %v2359 = vshrl.u32 %v2358, 7
        %v2360 = vsub.s32 %v2137, %v2359
        %v2361 = vrot.slane %v1863, %v2360
        %v2362 = vlaneseq
        %v2363 = vshrl.u32 %v2362, 7
        %v2364 = vsub.s32 %v2137, %v2363
        %v2365 = vrot.slane %v1865, %v2364
        %v2366 = vlaneseq
        %v2367 = vshrl.u32 %v2366, 7
        %v2368 = vsub.s32 %v2137, %v2367
        %v2369 = vrot.slane %v1867, %v2368
        %v2370 = vlaneseq
        %v2371 = vshrl.u32 %v2370, 7
        %v2372 = vsub.s32 %v2137, %v2371
        %v2373 = vrot.slane %v1869, %v2372
        %v2374 = vlaneseq
        %v2375 = vshrl.u32 %v2374, 7
        %v2376 = vsub.s32 %v2137, %v2375
        %v2377 = vrot.slane %v1871, %v2376
        %v2378 = vlaneseq
        %v2379 = vshrl.u32 %v2378, 7
        %v2380 = vsub.s32 %v2137, %v2379
        %v2381 = vrot.slane %v1873, %v2380
        %v2382 = vlaneseq
        %v2383 = vshrl.u32 %v2382, 7
        %v2384 = vsub.s32 %v2137, %v2383
        %v2385 = vrot.slane %v1875, %v2384
        %v2386 = vlaneseq
        %v2387 = vshrl.u32 %v2386, 7
        %v2388 = vsub.s32 %v2137, %v2387
        %v2389 = vrot.slane %v1877, %v2388
        %v2390 = vlaneseq
        %v2391 = vshrl.u32 %v2390, 7
        %v2392 = vsub.s32 %v2137, %v2391
        %v2393 = vrot.slane %v1879, %v2392
        %v2394 = vlaneseq
        %v2395 = vshrl.u32 %v2394, 7
        %v2396 = vsub.s32 %v2137, %v2395
        %v2397 = vrot.slane %v1881, %v2396
        %v2398 = vlaneseq
        %v2399 = vshrl.u32 %v2398, 7
        %v2400 = vsub.s32 %v2137, %v2399
        %v2401 = vrot.slane %v1883, %v2400
        %v2402 = vlaneseq
        %v2403 = vshrl.u32 %v2402, 7
        %v2404 = vsub.s32 %v2137, %v2403
        %v2405 = vrot.slane %v1885, %v2404
        %v2406 = vlaneseq
        %v2407 = vshrl.u32 %v2406, 7
        %v2408 = vsub.s32 %v2137, %v2407
        %v2409 = vrot.slane %v1887, %v2408
        %v2410 = vlaneseq
        %v2411 = vshrl.u32 %v2410, 7
        %v2412 = vsub.s32 %v2137, %v2411
        %v2413 = vrot.slane %v1889, %v2412
        %v2414 = vlaneseq
        %v2415 = vshrl.u32 %v2414, 7
        %v2416 = vsub.s32 %v2137, %v2415
        %v2417 = vrot.slane %v1891, %v2416
        %v2418 = vlaneseq
        %v2419 = vshrl.u32 %v2418, 7
        %v2420 = vsub.s32 %v2137, %v2419
        %v2421 = vrot.slane %v1893, %v2420
        %v2422 = vlaneseq
        %v2423 = vshrl.u32 %v2422, 7
        %v2424 = vsub.s32 %v2137, %v2423
        %v2425 = vrot.slane %v1895, %v2424
        %v2426 = vlaneseq
        %v2427 = vshrl.u32 %v2426, 7
        %v2428 = vsub.s32 %v2137, %v2427
        %v2429 = vrot.slane %v1897, %v2428
        %v2430 = vlaneseq
        %v2431 = vshrl.u32 %v2430, 7
        %v2432 = vsub.s32 %v2137, %v2431
        %v2433 = vrot.slane %v1899, %v2432
        %v2434 = vlaneseq
        %v2435 = vshrl.u32 %v2434, 7
        %v2436 = vsub.s32 %v2137, %v2435
        %v2437 = vrot.slane %v1901, %v2436
        %v2438 = vlaneseq
        %v2439 = vshrl.u32 %v2438, 7
        %v2440 = vsub.s32 %v2137, %v2439
        %v2441 = vrot.slane %v1903, %v2440
        %v2442 = vlaneseq
        %v2443 = vshrl.u32 %v2442, 7
        %v2444 = vsub.s32 %v2137, %v2443
        %v2445 = vrot.slane %v1905, %v2444
        %v2446 = vlaneseq
        %v2447 = vshrl.u32 %v2446, 7
        %v2448 = vsub.s32 %v2137, %v2447
        %v2449 = vrot.slane %v1907, %v2448
        %v2450 = vlaneseq
        %v2451 = vshrl.u32 %v2450, 7
        %v2452 = vsub.s32 %v2137, %v2451
        %v2453 = vrot.slane %v1909, %v2452
        %v2454 = vlaneseq
        %v2455 = vshrl.u32 %v2454, 7
        %v2456 = vsub.s32 %v2137, %v2455
        %v2457 = vrot.slane %v1911, %v2456
        %v2458 = vlaneseq
        %v2459 = vshrl.u32 %v2458, 7
        %v2460 = vsub.s32 %v2137, %v2459
        %v2461 = vrot.slane %v1913, %v2460
        %v2462 = vlaneseq
        %v2463 = vshrl.u32 %v2462, 7
        %v2464 = vsub.s32 %v2137, %v2463
        %v2465 = vrot.slane %v1915, %v2464
        %v2466 = vlaneseq
        %v2467 = vshrl.u32 %v2466, 7
        %v2468 = vsub.s32 %v2137, %v2467
        %v2469 = vrot.slane %v1917, %v2468
        %v2470 = vlaneseq
        %v2471 = vshrl.u32 %v2470, 7
        %v2472 = vsub.s32 %v2137, %v2471
        %v2473 = vrot.slane %v1919, %v2472
        %v2474 = vlaneseq
        %v2475 = vshrl.u32 %v2474, 7
        %v2476 = vsub.s32 %v2137, %v2475
        %v2477 = vrot.slane %v1921, %v2476
        %v2478 = vlaneseq
        %v2479 = vshrl.u32 %v2478, 7
        %v2480 = vsub.s32 %v2137, %v2479
        %v2481 = vrot.slane %v1923, %v2480
        %v2482 = vlaneseq
        %v2483 = vshrl.u32 %v2482, 7
        %v2484 = vsub.s32 %v2137, %v2483
        %v2485 = vrot.slane %v1925, %v2484
        %v2486 = vlaneseq
        %v2487 = vshrl.u32 %v2486, 7
        %v2488 = vsub.s32 %v2137, %v2487
        %v2489 = vrot.slane %v1927, %v2488
        %v2490 = vlaneseq
        %v2491 = vshrl.u32 %v2490, 7
        %v2492 = vsub.s32 %v2137, %v2491
        %v2493 = vrot.slane %v1929, %v2492
        %v2494 = vlaneseq
        %v2495 = vshrl.u32 %v2494, 7
        %v2496 = vsub.s32 %v2137, %v2495
        %v2497 = vrot.slane %v1931, %v2496
        %v2498 = vlaneseq
        %v2499 = vshrl.u32 %v2498, 7
        %v2500 = vsub.s32 %v2137, %v2499
        %v2501 = vrot.slane %v1933, %v2500
        %v2502 = vlaneseq
        %v2503 = vshrl.u32 %v2502, 7
        %v2504 = vsub.s32 %v2137, %v2503
        %v2505 = vrot.slane %v1935, %v2504
        %v2506 = vlaneseq
        %v2507 = vshrl.u32 %v2506, 7
        %v2508 = vsub.s32 %v2137, %v2507
        %v2509 = vrot.slane %v1937, %v2508
        %v2510 = vlaneseq
        %v2511 = vshrl.u32 %v2510, 7
        %v2512 = vsub.s32 %v2137, %v2511
        %v2513 = vrot.slane %v1939, %v2512
        %v2514 = vlaneseq
        %v2515 = vshrl.u32 %v2514, 7
        %v2516 = vsub.s32 %v2137, %v2515
        %v2517 = vrot.slane %v1941, %v2516
        %v2518 = vlaneseq
        %v2519 = vshrl.u32 %v2518, 7
        %v2520 = vsub.s32 %v2137, %v2519
        %v2521 = vrot.slane %v1943, %v2520
        %v2522 = vlaneseq
        %v2523 = vshrl.u32 %v2522, 7
        %v2524 = vsub.s32 %v2137, %v2523
        %v2525 = vrot.slane %v1945, %v2524
        %v2526 = vlaneseq
        %v2527 = vshrl.u32 %v2526, 7
        %v2528 = vsub.s32 %v2137, %v2527
        %v2529 = vrot.slane %v1947, %v2528
        %v2530 = vlaneseq
        %v2531 = vshrl.u32 %v2530, 7
        %v2532 = vsub.s32 %v2137, %v2531
        %v2533 = vrot.slane %v1949, %v2532
        %v2534 = vlaneseq
        %v2535 = vshrl.u32 %v2534, 7
        %v2536 = vsub.s32 %v2137, %v2535
        %v2537 = vrot.slane %v1951, %v2536
        %v2538 = vlaneseq
        %v2539 = vshrl.u32 %v2538, 7
        %v2540 = vsub.s32 %v2137, %v2539
        %v2541 = vrot.slane %v1953, %v2540
        %v2542 = vlaneseq
        %v2543 = vshrl.u32 %v2542, 7
        %v2544 = vsub.s32 %v2137, %v2543
        %v2545 = vrot.slane %v1955, %v2544
        %v2546 = vlaneseq
        %v2547 = vshrl.u32 %v2546, 7
        %v2548 = vsub.s32 %v2137, %v2547
        %v2549 = vrot.slane %v1957, %v2548
        %v2550 = vlaneseq
        %v2551 = vshrl.u32 %v2550, 7
        %v2552 = vsub.s32 %v2137, %v2551
        %v2553 = vrot.slane %v1959, %v2552
        %v2554 = vlaneseq
        %v2555 = vshrl.u32 %v2554, 7
        %v2556 = vsub.s32 %v2137, %v2555
        %v2557 = vrot.slane %v1961, %v2556
        %v2558 = vlaneseq
        %v2559 = vshrl.u32 %v2558, 7
        %v2560 = vsub.s32 %v2137, %v2559
        %v2561 = vrot.slane %v1963, %v2560
        %v2562 = vlaneseq
        %v2563 = vshrl.u32 %v2562, 7
        %v2564 = vsub.s32 %v2137, %v2563
        %v2565 = vrot.slane %v1965, %v2564
        %v2566 = vlaneseq
        %v2567 = vshrl.u32 %v2566, 7
        %v2568 = vsub.s32 %v2137, %v2567
        %v2569 = vrot.slane %v1967, %v2568
        %v2570 = vlaneseq
        %v2571 = vshrl.u32 %v2570, 7
        %v2572 = vsub.s32 %v2137, %v2571
        %v2573 = vrot.slane %v1969, %v2572
        %v2574 = vlaneseq
        %v2575 = vshrl.u32 %v2574, 7
        %v2576 = vsub.s32 %v2137, %v2575
        %v2577 = vrot.slane %v1971, %v2576
        %v2578 = vlaneseq
        %v2579 = vshrl.u32 %v2578, 7
        %v2580 = vsub.s32 %v2137, %v2579
        %v2581 = vrot.slane %v1973, %v2580
        %v2582 = vlaneseq
        %v2583 = vshrl.u32 %v2582, 7
        %v2584 = vsub.s32 %v2137, %v2583
        %v2585 = vrot.slane %v1975, %v2584
        %v2586 = vlaneseq
        %v2587 = vshrl.u32 %v2586, 7
        %v2588 = vsub.s32 %v2137, %v2587
        %v2589 = vrot.slane %v1977, %v2588
        %v2590 = vlaneseq
        %v2591 = vshrl.u32 %v2590, 7
        %v2592 = vsub.s32 %v2137, %v2591
        %v2593 = vrot.slane %v1979, %v2592
        %v2594 = vlaneseq
        %v2595 = vshrl.u32 %v2594, 7
        %v2596 = vsub.s32 %v2137, %v2595
        %v2597 = vrot.slane %v1981, %v2596
        %v2598 = vlaneseq
        %v2599 = vshrl.u32 %v2598, 7
        %v2600 = vsub.s32 %v2137, %v2599
        %v2601 = vrot.slane %v1983, %v2600
        %v2602 = vlaneseq
        %v2603 = vshrl.u32 %v2602, 7
        %v2604 = vsub.s32 %v2137, %v2603
        %v2605 = vrot.slane %v1985, %v2604
        %v2606 = vlaneseq
        %v2607 = vshrl.u32 %v2606, 7
        %v2608 = vsub.s32 %v2137, %v2607
        %v2609 = vrot.slane %v1987, %v2608
        %v2610 = vlaneseq
        %v2611 = vshrl.u32 %v2610, 7
        %v2612 = vsub.s32 %v2137, %v2611
        %v2613 = vrot.slane %v1989, %v2612
        %v2614 = vlaneseq
        %v2615 = vshrl.u32 %v2614, 7
        %v2616 = vsub.s32 %v2137, %v2615
        %v2617 = vrot.slane %v1991, %v2616
        %v2618 = vlaneseq
        %v2619 = vshrl.u32 %v2618, 7
        %v2620 = vsub.s32 %v2137, %v2619
        %v2621 = vrot.slane %v1993, %v2620
        %v2622 = vlaneseq
        %v2623 = vshrl.u32 %v2622, 7
        %v2624 = vsub.s32 %v2137, %v2623
        %v2625 = vrot.slane %v1995, %v2624
        %v2626 = vlaneseq
        %v2627 = vshrl.u32 %v2626, 7
        %v2628 = vsub.s32 %v2137, %v2627
        %v2629 = vrot.slane %v1997, %v2628
        %v2630 = vlaneseq
        %v2631 = vshrl.u32 %v2630, 7
        %v2632 = vsub.s32 %v2137, %v2631
        %v2633 = vrot.slane %v1999, %v2632
        %v2634 = vlaneseq
        %v2635 = vshrl.u32 %v2634, 7
        %v2636 = vsub.s32 %v2137, %v2635
        %v2637 = vrot.slane %v2001, %v2636
        %v2638 = vlaneseq
        %v2639 = vshrl.u32 %v2638, 7
        %v2640 = vsub.s32 %v2137, %v2639
        %v2641 = vrot.slane %v2003, %v2640
        %v2642 = vlaneseq
        %v2643 = vshrl.u32 %v2642, 7
        %v2644 = vsub.s32 %v2137, %v2643
        %v2645 = vrot.slane %v2005, %v2644
        %v2646 = vlaneseq
        %v2647 = vshrl.u32 %v2646, 7
        %v2648 = vsub.s32 %v2137, %v2647
        %v2649 = vrot.slane %v2007, %v2648
        %vm2650 = vcmask 1041409
        %v2651 = vsel %vm2650, %v2145, %v2141
        %vm2652 = vcmask 1042434
        %v2653 = vsel %vm2652, %v2149, %v2651
        %vm2654 = vcmask 1043459
        %v2655 = vsel %vm2654, %v2153, %v2653
        %vm2656 = vcmask 1044484
        %v2657 = vsel %vm2656, %v2157, %v2655
        %vm2658 = vcmask 1045509
        %v2659 = vsel %vm2658, %v2161, %v2657
        %vm2660 = vcmask 1046534
        %v2661 = vsel %vm2660, %v2165, %v2659
        %vm2662 = vcmask 1047559
        %v2663 = vsel %vm2662, %v2169, %v2661
        %v2664 = vsel %vm2650, %v2177, %v2173
        %v2665 = vsel %vm2652, %v2181, %v2664
        %v2666 = vsel %vm2654, %v2185, %v2665
        %v2667 = vsel %vm2656, %v2189, %v2666
        %v2668 = vsel %vm2658, %v2193, %v2667
        %v2669 = vsel %vm2660, %v2197, %v2668
        %v2670 = vsel %vm2662, %v2201, %v2669
        %v2671 = vsel %vm2650, %v2209, %v2205
        %v2672 = vsel %vm2652, %v2213, %v2671
        %v2673 = vsel %vm2654, %v2217, %v2672
        %v2674 = vsel %vm2656, %v2221, %v2673
        %v2675 = vsel %vm2658, %v2225, %v2674
        %v2676 = vsel %vm2660, %v2229, %v2675
        %v2677 = vsel %vm2662, %v2233, %v2676
        %v2678 = vsel %vm2650, %v2241, %v2237
        %v2679 = vsel %vm2652, %v2245, %v2678
        %v2680 = vsel %vm2654, %v2249, %v2679
        %v2681 = vsel %vm2656, %v2253, %v2680
        %v2682 = vsel %vm2658, %v2257, %v2681
        %v2683 = vsel %vm2660, %v2261, %v2682
        %v2684 = vsel %vm2662, %v2265, %v2683
        %v2685 = vsel %vm2650, %v2273, %v2269
        %v2686 = vsel %vm2652, %v2277, %v2685
        %v2687 = vsel %vm2654, %v2281, %v2686
        %v2688 = vsel %vm2656, %v2285, %v2687
        %v2689 = vsel %vm2658, %v2289, %v2688
        %v2690 = vsel %vm2660, %v2293, %v2689
        %v2691 = vsel %vm2662, %v2297, %v2690
        %v2692 = vsel %vm2650, %v2305, %v2301
        %v2693 = vsel %vm2652, %v2309, %v2692
        %v2694 = vsel %vm2654, %v2313, %v2693
        %v2695 = vsel %vm2656, %v2317, %v2694
        %v2696 = vsel %vm2658, %v2321, %v2695
        %v2697 = vsel %vm2660, %v2325, %v2696
        %v2698 = vsel %vm2662, %v2329, %v2697
        %v2699 = vsel %vm2650, %v2337, %v2333
        %v2700 = vsel %vm2652, %v2341, %v2699
        %v2701 = vsel %vm2654, %v2345, %v2700
        %v2702 = vsel %vm2656, %v2349, %v2701
        %v2703 = vsel %vm2658, %v2353, %v2702
        %v2704 = vsel %vm2660, %v2357, %v2703
        %v2705 = vsel %vm2662, %v2361, %v2704
        %v2706 = vsel %vm2650, %v2369, %v2365
        %v2707 = vsel %vm2652, %v2373, %v2706
        %v2708 = vsel %vm2654, %v2377, %v2707
        %v2709 = vsel %vm2656, %v2381, %v2708
        %v2710 = vsel %vm2658, %v2385, %v2709
        %v2711 = vsel %vm2660, %v2389, %v2710
        %v2712 = vsel %vm2662, %v2393, %v2711
        %v2713 = vsel %vm2650, %v2401, %v2397
        %v2714 = vsel %vm2652, %v2405, %v2713
        %v2715 = vsel %vm2654, %v2409, %v2714
        %v2716 = vsel %vm2656, %v2413, %v2715
        %v2717 = vsel %vm2658, %v2417, %v2716
        %v2718 = vsel %vm2660, %v2421, %v2717
        %v2719 = vsel %vm2662, %v2425, %v2718
        %v2720 = vsel %vm2650, %v2433, %v2429
        %v2721 = vsel %vm2652, %v2437, %v2720
        %v2722 = vsel %vm2654, %v2441, %v2721
        %v2723 = vsel %vm2656, %v2445, %v2722
        %v2724 = vsel %vm2658, %v2449, %v2723
        %v2725 = vsel %vm2660, %v2453, %v2724
        %v2726 = vsel %vm2662, %v2457, %v2725
        %v2727 = vsel %vm2650, %v2465, %v2461
        %v2728 = vsel %vm2652, %v2469, %v2727
        %v2729 = vsel %vm2654, %v2473, %v2728
        %v2730 = vsel %vm2656, %v2477, %v2729
        %v2731 = vsel %vm2658, %v2481, %v2730
        %v2732 = vsel %vm2660, %v2485, %v2731
        %v2733 = vsel %vm2662, %v2489, %v2732
        %v2734 = vsel %vm2650, %v2497, %v2493
        %v2735 = vsel %vm2652, %v2501, %v2734
        %v2736 = vsel %vm2654, %v2505, %v2735
        %v2737 = vsel %vm2656, %v2509, %v2736
        %v2738 = vsel %vm2658, %v2513, %v2737
        %v2739 = vsel %vm2660, %v2517, %v2738
        %v2740 = vsel %vm2662, %v2521, %v2739
        %v2741 = vsel %vm2650, %v2529, %v2525
        %v2742 = vsel %vm2652, %v2533, %v2741
        %v2743 = vsel %vm2654, %v2537, %v2742
        %v2744 = vsel %vm2656, %v2541, %v2743
        %v2745 = vsel %vm2658, %v2545, %v2744
        %v2746 = vsel %vm2660, %v2549, %v2745
        %v2747 = vsel %vm2662, %v2553, %v2746
        %v2748 = vsel %vm2650, %v2561, %v2557
        %v2749 = vsel %vm2652, %v2565, %v2748
        %v2750 = vsel %vm2654, %v2569, %v2749
        %v2751 = vsel %vm2656, %v2573, %v2750
        %v2752 = vsel %vm2658, %v2577, %v2751
        %v2753 = vsel %vm2660, %v2581, %v2752
        %v2754 = vsel %vm2662, %v2585, %v2753
        %v2755 = vsel %vm2650, %v2593, %v2589
        %v2756 = vsel %vm2652, %v2597, %v2755
        %v2757 = vsel %vm2654, %v2601, %v2756
        %v2758 = vsel %vm2656, %v2605, %v2757
        %v2759 = vsel %vm2658, %v2609, %v2758
        %v2760 = vsel %vm2660, %v2613, %v2759
        %v2761 = vsel %vm2662, %v2617, %v2760
        %v2762 = vsel %vm2650, %v2625, %v2621
        %v2763 = vsel %vm2652, %v2629, %v2762
        %v2764 = vsel %vm2654, %v2633, %v2763
        %v2765 = vsel %vm2656, %v2637, %v2764
        %v2766 = vsel %vm2658, %v2641, %v2765
        %v2767 = vsel %vm2660, %v2645, %v2766
        %v2768 = vsel %vm2662, %v2649, %v2767
        %2785 = vxpose.xlu0.b32.start [1/16] %v2663, 128
        %2786 = vxpose.xlu0.b32.cont [2/16] %v2670, 128
        %2787 = vxpose.xlu0.b32.cont [3/16] %v2677, 128
        %2788 = vxpose.xlu0.b32.cont [4/16] %v2684, 128
        %2789 = vxpose.xlu0.b32.cont [5/16] %v2691, 128
        %2790 = vxpose.xlu0.b32.cont [6/16] %v2698, 128
        %2791 = vxpose.xlu0.b32.cont [7/16] %v2705, 128
        %2792 = vxpose.xlu0.b32.cont [8/16] %v2712, 128
        %2793 = vxpose.xlu0.b32.cont [9/16] %v2719, 128
        %2794 = vxpose.xlu0.b32.cont [10/16] %v2726, 128
        %2795 = vxpose.xlu0.b32.cont [11/16] %v2733, 128
        %2796 = vxpose.xlu0.b32.cont [12/16] %v2740, 128
        %2797 = vxpose.xlu0.b32.cont [13/16] %v2747, 128
        %2798 = vxpose.xlu0.b32.cont [14/16] %v2754, 128
        %2799 = vxpose.xlu0.b32.cont [15/16] %v2761, 128
        %2800 = vxpose.xlu0.b32.end [16/16] %v2768, 128
        %v2801 = vpop.trf.xlu0
        %v2802 = vpop.trf.xlu0
        %v2803 = vpop.trf.xlu0
        %v2804 = vpop.trf.xlu0
        %v2805 = vpop.trf.xlu0
        %v2806 = vpop.trf.xlu0
        %v2807 = vpop.trf.xlu0
        %v2808 = vpop.trf.xlu0
        %v2809 = vpop.trf.xlu0
        %v2810 = vpop.trf.xlu0
        %v2811 = vpop.trf.xlu0
        %v2812 = vpop.trf.xlu0
        %v2813 = vpop.trf.xlu0
        %v2814 = vpop.trf.xlu0
        %v2815 = vpop.trf.xlu0
        %v2816 = vpop.trf.xlu0
        %v2817 = vrot.slane %v2801, 4
        %v2818 = vmax.f32 %v2801, %v2817
        %v2819 = vrot.slane %v2818, 2
        %v2820 = vmax.f32 %v2818, %v2819
        %v2821 = vrot.slane %v2820, 1
        %v2822 = vmax.f32 %v2820, %v2821
        %v2823 = vsub.f32 %v2801, %v2822
        %v2824 = vmul.f32 %v2823, 1.442695
        %v2825 = vpow.pop %v2824
        %v2826 = vrot.slane %v2825, 4
        %v2827 = vadd.f32 %v2825, %v2826
        %v2828 = vrot.slane %v2827, 2
        %v2829 = vadd.f32 %v2827, %v2828
        %v2830 = vrot.slane %v2829, 1
        %v2831 = vadd.f32 %v2829, %v2830
        %v2832 = vrcp.pop %v2831
        %v2833 = vmul.f32 %v2825, %v2832
        %2834 = vst [vmem:[%s257] sm:$0xff] %v2833
        %2835 = vxpose.xlu0.b32.start [1/16] %v2833, 128
        %2836 = vxpose.xlu0.b32.cont [2/16] 0.0, 128
        %2837 = vxpose.xlu0.b32.cont [3/16] 0.0, 128
        %2838 = vxpose.xlu0.b32.cont [4/16] 0.0, 128
        %2839 = vxpose.xlu0.b32.cont [5/16] 0.0, 128
        %2840 = vxpose.xlu0.b32.cont [6/16] 0.0, 128
        %2841 = vxpose.xlu0.b32.cont [7/16] 0.0, 128
        %2842 = vxpose.xlu0.b32.cont [8/16] 0.0, 128
        %2843 = vxpose.xlu0.b32.cont [9/16] 0.0, 128
        %2844 = vxpose.xlu0.b32.cont [10/16] 0.0, 128
        %2845 = vxpose.xlu0.b32.cont [11/16] 0.0, 128
        %2846 = vxpose.xlu0.b32.cont [12/16] 0.0, 128
        %2847 = vxpose.xlu0.b32.cont [13/16] 0.0, 128
        %2848 = vxpose.xlu0.b32.cont [14/16] 0.0, 128
        %2849 = vxpose.xlu0.b32.cont [15/16] 0.0, 128
        %2850 = vxpose.xlu0.b32.end [16/16] 0.0, 128
        %v2851 = vpop.trf.xlu0
        %v2852 = vpop.trf.xlu0
        %v2853 = vpop.trf.xlu0
        %v2854 = vpop.trf.xlu0
        %v2855 = vpop.trf.xlu0
        %v2856 = vpop.trf.xlu0
        %v2857 = vpop.trf.xlu0
        %v2858 = vpop.trf.xlu0
        %v2859 = vpop.trf.xlu0
        %v2860 = vpop.trf.xlu0
        %v2861 = vpop.trf.xlu0
        %v2862 = vpop.trf.xlu0
        %v2863 = vpop.trf.xlu0
        %v2864 = vpop.trf.xlu0
        %v2865 = vpop.trf.xlu0
        %v2866 = vpop.trf.xlu0
        %v2867 = vlaneseq
        %v2868 = vshrl.u32 %v2867, 7
        %v2869 = vsub.s32 0, %v2868
        %v2870 = vrot.slane %v2851, %v2869
        %2872 = vbcast.lane.b32.xlu0 %v2870, 256
        %v2873 = vpop.permute.xlu0 %2872
        %v2874 = vlaneseq
        %v2875 = vshrl.u32 %v2874, 7
        %v2876 = vsub.s32 1, %v2875
        %v2877 = vrot.slane %v2851, %v2876
        %2879 = vbcast.lane.b32.xlu0 %v2877, 256
        %v2880 = vpop.permute.xlu0 %2879
        %v2881 = vlaneseq
        %v2882 = vshrl.u32 %v2881, 7
        %v2883 = vsub.s32 2, %v2882
        %v2884 = vrot.slane %v2851, %v2883
        %2886 = vbcast.lane.b32.xlu0 %v2884, 256
        %v2887 = vpop.permute.xlu0 %2886
        %v2888 = vlaneseq
        %v2889 = vshrl.u32 %v2888, 7
        %v2890 = vsub.s32 3, %v2889
        %v2891 = vrot.slane %v2851, %v2890
        %2893 = vbcast.lane.b32.xlu0 %v2891, 256
        %v2894 = vpop.permute.xlu0 %2893
        %v2895 = vlaneseq
        %v2896 = vshrl.u32 %v2895, 7
        %v2897 = vsub.s32 4, %v2896
        %v2898 = vrot.slane %v2851, %v2897
        %2900 = vbcast.lane.b32.xlu0 %v2898, 256
        %v2901 = vpop.permute.xlu0 %2900
        %v2902 = vlaneseq
        %v2903 = vshrl.u32 %v2902, 7
        %v2904 = vsub.s32 5, %v2903
        %v2905 = vrot.slane %v2851, %v2904
        %2907 = vbcast.lane.b32.xlu0 %v2905, 256
        %v2908 = vpop.permute.xlu0 %2907
        %v2909 = vlaneseq
        %v2910 = vshrl.u32 %v2909, 7
        %v2911 = vsub.s32 6, %v2910
        %v2912 = vrot.slane %v2851, %v2911
        %2914 = vbcast.lane.b32.xlu0 %v2912, 256
        %v2915 = vpop.permute.xlu0 %2914
        %v2916 = vlaneseq
        %v2917 = vshrl.u32 %v2916, 7
        %v2918 = vsub.s32 7, %v2917
        %v2919 = vrot.slane %v2851, %v2918
        %2921 = vbcast.lane.b32.xlu0 %v2919, 256
        %v2922 = vpop.permute.xlu0 %2921
        %v2923 = vlaneseq
        %v2924 = vshrl.u32 %v2923, 7
        %v2925 = vsub.s32 0, %v2924
        %v2926 = vrot.slane %v2852, %v2925
        %2928 = vbcast.lane.b32.xlu0 %v2926, 256
        %v2929 = vpop.permute.xlu0 %2928
        %v2930 = vlaneseq
        %v2931 = vshrl.u32 %v2930, 7
        %v2932 = vsub.s32 1, %v2931
        %v2933 = vrot.slane %v2852, %v2932
        %2935 = vbcast.lane.b32.xlu0 %v2933, 256
        %v2936 = vpop.permute.xlu0 %2935
        %v2937 = vlaneseq
        %v2938 = vshrl.u32 %v2937, 7
        %v2939 = vsub.s32 2, %v2938
        %v2940 = vrot.slane %v2852, %v2939
        %2942 = vbcast.lane.b32.xlu0 %v2940, 256
        %v2943 = vpop.permute.xlu0 %2942
        %v2944 = vlaneseq
        %v2945 = vshrl.u32 %v2944, 7
        %v2946 = vsub.s32 3, %v2945
        %v2947 = vrot.slane %v2852, %v2946
        %2949 = vbcast.lane.b32.xlu0 %v2947, 256
        %v2950 = vpop.permute.xlu0 %2949
        %v2951 = vlaneseq
        %v2952 = vshrl.u32 %v2951, 7
        %v2953 = vsub.s32 4, %v2952
        %v2954 = vrot.slane %v2852, %v2953
        %2956 = vbcast.lane.b32.xlu0 %v2954, 256
        %v2957 = vpop.permute.xlu0 %2956
        %v2958 = vlaneseq
        %v2959 = vshrl.u32 %v2958, 7
        %v2960 = vsub.s32 5, %v2959
        %v2961 = vrot.slane %v2852, %v2960
        %2963 = vbcast.lane.b32.xlu0 %v2961, 256
        %v2964 = vpop.permute.xlu0 %2963
        %v2965 = vlaneseq
        %v2966 = vshrl.u32 %v2965, 7
        %v2967 = vsub.s32 6, %v2966
        %v2968 = vrot.slane %v2852, %v2967
        %2970 = vbcast.lane.b32.xlu0 %v2968, 256
        %v2971 = vpop.permute.xlu0 %2970
        %v2972 = vlaneseq
        %v2973 = vshrl.u32 %v2972, 7
        %v2974 = vsub.s32 7, %v2973
        %v2975 = vrot.slane %v2852, %v2974
        %2977 = vbcast.lane.b32.xlu0 %v2975, 256
        %v2978 = vpop.permute.xlu0 %2977
        %v2979 = vlaneseq
        %v2980 = vshrl.u32 %v2979, 7
        %v2981 = vsub.s32 0, %v2980
        %v2982 = vrot.slane %v2853, %v2981
        %2984 = vbcast.lane.b32.xlu0 %v2982, 256
        %v2985 = vpop.permute.xlu0 %2984
        %v2986 = vlaneseq
        %v2987 = vshrl.u32 %v2986, 7
        %v2988 = vsub.s32 1, %v2987
        %v2989 = vrot.slane %v2853, %v2988
        %2991 = vbcast.lane.b32.xlu0 %v2989, 256
        %v2992 = vpop.permute.xlu0 %2991
        %v2993 = vlaneseq
        %v2994 = vshrl.u32 %v2993, 7
        %v2995 = vsub.s32 2, %v2994
        %v2996 = vrot.slane %v2853, %v2995
        %2998 = vbcast.lane.b32.xlu0 %v2996, 256
        %v2999 = vpop.permute.xlu0 %2998
        %v3000 = vlaneseq
        %v3001 = vshrl.u32 %v3000, 7
        %v3002 = vsub.s32 3, %v3001
        %v3003 = vrot.slane %v2853, %v3002
        %3005 = vbcast.lane.b32.xlu0 %v3003, 256
        %v3006 = vpop.permute.xlu0 %3005
        %v3007 = vlaneseq
        %v3008 = vshrl.u32 %v3007, 7
        %v3009 = vsub.s32 4, %v3008
        %v3010 = vrot.slane %v2853, %v3009
        %3012 = vbcast.lane.b32.xlu0 %v3010, 256
        %v3013 = vpop.permute.xlu0 %3012
        %v3014 = vlaneseq
        %v3015 = vshrl.u32 %v3014, 7
        %v3016 = vsub.s32 5, %v3015
        %v3017 = vrot.slane %v2853, %v3016
        %3019 = vbcast.lane.b32.xlu0 %v3017, 256
        %v3020 = vpop.permute.xlu0 %3019
        %v3021 = vlaneseq
        %v3022 = vshrl.u32 %v3021, 7
        %v3023 = vsub.s32 6, %v3022
        %v3024 = vrot.slane %v2853, %v3023
        %3026 = vbcast.lane.b32.xlu0 %v3024, 256
        %v3027 = vpop.permute.xlu0 %3026
        %v3028 = vlaneseq
        %v3029 = vshrl.u32 %v3028, 7
        %v3030 = vsub.s32 7, %v3029
        %v3031 = vrot.slane %v2853, %v3030
        %3033 = vbcast.lane.b32.xlu0 %v3031, 256
        %v3034 = vpop.permute.xlu0 %3033
        %v3035 = vlaneseq
        %v3036 = vshrl.u32 %v3035, 7
        %v3037 = vsub.s32 0, %v3036
        %v3038 = vrot.slane %v2854, %v3037
        %3040 = vbcast.lane.b32.xlu0 %v3038, 256
        %v3041 = vpop.permute.xlu0 %3040
        %v3042 = vlaneseq
        %v3043 = vshrl.u32 %v3042, 7
        %v3044 = vsub.s32 1, %v3043
        %v3045 = vrot.slane %v2854, %v3044
        %3047 = vbcast.lane.b32.xlu0 %v3045, 256
        %v3048 = vpop.permute.xlu0 %3047
        %v3049 = vlaneseq
        %v3050 = vshrl.u32 %v3049, 7
        %v3051 = vsub.s32 2, %v3050
        %v3052 = vrot.slane %v2854, %v3051
        %3054 = vbcast.lane.b32.xlu0 %v3052, 256
        %v3055 = vpop.permute.xlu0 %3054
        %v3056 = vlaneseq
        %v3057 = vshrl.u32 %v3056, 7
        %v3058 = vsub.s32 3, %v3057
        %v3059 = vrot.slane %v2854, %v3058
        %3061 = vbcast.lane.b32.xlu0 %v3059, 256
        %v3062 = vpop.permute.xlu0 %3061
        %v3063 = vlaneseq
        %v3064 = vshrl.u32 %v3063, 7
        %v3065 = vsub.s32 4, %v3064
        %v3066 = vrot.slane %v2854, %v3065
        %3068 = vbcast.lane.b32.xlu0 %v3066, 256
        %v3069 = vpop.permute.xlu0 %3068
        %v3070 = vlaneseq
        %v3071 = vshrl.u32 %v3070, 7
        %v3072 = vsub.s32 5, %v3071
        %v3073 = vrot.slane %v2854, %v3072
        %3075 = vbcast.lane.b32.xlu0 %v3073, 256
        %v3076 = vpop.permute.xlu0 %3075
        %v3077 = vlaneseq
        %v3078 = vshrl.u32 %v3077, 7
        %v3079 = vsub.s32 6, %v3078
        %v3080 = vrot.slane %v2854, %v3079
        %3082 = vbcast.lane.b32.xlu0 %v3080, 256
        %v3083 = vpop.permute.xlu0 %3082
        %v3084 = vlaneseq
        %v3085 = vshrl.u32 %v3084, 7
        %v3086 = vsub.s32 7, %v3085
        %v3087 = vrot.slane %v2854, %v3086
        %3089 = vbcast.lane.b32.xlu0 %v3087, 256
        %v3090 = vpop.permute.xlu0 %3089
        %v3091 = vlaneseq
        %v3092 = vshrl.u32 %v3091, 7
        %v3093 = vsub.s32 0, %v3092
        %v3094 = vrot.slane %v2855, %v3093
        %3096 = vbcast.lane.b32.xlu0 %v3094, 256
        %v3097 = vpop.permute.xlu0 %3096
        %v3098 = vlaneseq
        %v3099 = vshrl.u32 %v3098, 7
        %v3100 = vsub.s32 1, %v3099
        %v3101 = vrot.slane %v2855, %v3100
        %3103 = vbcast.lane.b32.xlu0 %v3101, 256
        %v3104 = vpop.permute.xlu0 %3103
        %v3105 = vlaneseq
        %v3106 = vshrl.u32 %v3105, 7
        %v3107 = vsub.s32 2, %v3106
        %v3108 = vrot.slane %v2855, %v3107
        %3110 = vbcast.lane.b32.xlu0 %v3108, 256
        %v3111 = vpop.permute.xlu0 %3110
        %v3112 = vlaneseq
        %v3113 = vshrl.u32 %v3112, 7
        %v3114 = vsub.s32 3, %v3113
        %v3115 = vrot.slane %v2855, %v3114
        %3117 = vbcast.lane.b32.xlu0 %v3115, 256
        %v3118 = vpop.permute.xlu0 %3117
        %v3119 = vlaneseq
        %v3120 = vshrl.u32 %v3119, 7
        %v3121 = vsub.s32 4, %v3120
        %v3122 = vrot.slane %v2855, %v3121
        %3124 = vbcast.lane.b32.xlu0 %v3122, 256
        %v3125 = vpop.permute.xlu0 %3124
        %v3126 = vlaneseq
        %v3127 = vshrl.u32 %v3126, 7
        %v3128 = vsub.s32 5, %v3127
        %v3129 = vrot.slane %v2855, %v3128
        %3131 = vbcast.lane.b32.xlu0 %v3129, 256
        %v3132 = vpop.permute.xlu0 %3131
        %v3133 = vlaneseq
        %v3134 = vshrl.u32 %v3133, 7
        %v3135 = vsub.s32 6, %v3134
        %v3136 = vrot.slane %v2855, %v3135
        %3138 = vbcast.lane.b32.xlu0 %v3136, 256
        %v3139 = vpop.permute.xlu0 %3138
        %v3140 = vlaneseq
        %v3141 = vshrl.u32 %v3140, 7
        %v3142 = vsub.s32 7, %v3141
        %v3143 = vrot.slane %v2855, %v3142
        %3145 = vbcast.lane.b32.xlu0 %v3143, 256
        %v3146 = vpop.permute.xlu0 %3145
        %v3147 = vlaneseq
        %v3148 = vshrl.u32 %v3147, 7
        %v3149 = vsub.s32 0, %v3148
        %v3150 = vrot.slane %v2856, %v3149
        %3152 = vbcast.lane.b32.xlu0 %v3150, 256
        %v3153 = vpop.permute.xlu0 %3152
        %v3154 = vlaneseq
        %v3155 = vshrl.u32 %v3154, 7
        %v3156 = vsub.s32 1, %v3155
        %v3157 = vrot.slane %v2856, %v3156
        %3159 = vbcast.lane.b32.xlu0 %v3157, 256
        %v3160 = vpop.permute.xlu0 %3159
        %v3161 = vlaneseq
        %v3162 = vshrl.u32 %v3161, 7
        %v3163 = vsub.s32 2, %v3162
        %v3164 = vrot.slane %v2856, %v3163
        %3166 = vbcast.lane.b32.xlu0 %v3164, 256
        %v3167 = vpop.permute.xlu0 %3166
        %v3168 = vlaneseq
        %v3169 = vshrl.u32 %v3168, 7
        %v3170 = vsub.s32 3, %v3169
        %v3171 = vrot.slane %v2856, %v3170
        %3173 = vbcast.lane.b32.xlu0 %v3171, 256
        %v3174 = vpop.permute.xlu0 %3173
        %v3175 = vlaneseq
        %v3176 = vshrl.u32 %v3175, 7
        %v3177 = vsub.s32 4, %v3176
        %v3178 = vrot.slane %v2856, %v3177
        %3180 = vbcast.lane.b32.xlu0 %v3178, 256
        %v3181 = vpop.permute.xlu0 %3180
        %v3182 = vlaneseq
        %v3183 = vshrl.u32 %v3182, 7
        %v3184 = vsub.s32 5, %v3183
        %v3185 = vrot.slane %v2856, %v3184
        %3187 = vbcast.lane.b32.xlu0 %v3185, 256
        %v3188 = vpop.permute.xlu0 %3187
        %v3189 = vlaneseq
        %v3190 = vshrl.u32 %v3189, 7
        %v3191 = vsub.s32 6, %v3190
        %v3192 = vrot.slane %v2856, %v3191
        %3194 = vbcast.lane.b32.xlu0 %v3192, 256
        %v3195 = vpop.permute.xlu0 %3194
        %v3196 = vlaneseq
        %v3197 = vshrl.u32 %v3196, 7
        %v3198 = vsub.s32 7, %v3197
        %v3199 = vrot.slane %v2856, %v3198
        %3201 = vbcast.lane.b32.xlu0 %v3199, 256
        %v3202 = vpop.permute.xlu0 %3201
        %v3203 = vlaneseq
        %v3204 = vshrl.u32 %v3203, 7
        %v3205 = vsub.s32 0, %v3204
        %v3206 = vrot.slane %v2857, %v3205
        %3208 = vbcast.lane.b32.xlu0 %v3206, 256
        %v3209 = vpop.permute.xlu0 %3208
        %v3210 = vlaneseq
        %v3211 = vshrl.u32 %v3210, 7
        %v3212 = vsub.s32 1, %v3211
        %v3213 = vrot.slane %v2857, %v3212
        %3215 = vbcast.lane.b32.xlu0 %v3213, 256
        %v3216 = vpop.permute.xlu0 %3215
        %v3217 = vlaneseq
        %v3218 = vshrl.u32 %v3217, 7
        %v3219 = vsub.s32 2, %v3218
        %v3220 = vrot.slane %v2857, %v3219
        %3222 = vbcast.lane.b32.xlu0 %v3220, 256
        %v3223 = vpop.permute.xlu0 %3222
        %v3224 = vlaneseq
        %v3225 = vshrl.u32 %v3224, 7
        %v3226 = vsub.s32 3, %v3225
        %v3227 = vrot.slane %v2857, %v3226
        %3229 = vbcast.lane.b32.xlu0 %v3227, 256
        %v3230 = vpop.permute.xlu0 %3229
        %v3231 = vlaneseq
        %v3232 = vshrl.u32 %v3231, 7
        %v3233 = vsub.s32 4, %v3232
        %v3234 = vrot.slane %v2857, %v3233
        %3236 = vbcast.lane.b32.xlu0 %v3234, 256
        %v3237 = vpop.permute.xlu0 %3236
        %v3238 = vlaneseq
        %v3239 = vshrl.u32 %v3238, 7
        %v3240 = vsub.s32 5, %v3239
        %v3241 = vrot.slane %v2857, %v3240
        %3243 = vbcast.lane.b32.xlu0 %v3241, 256
        %v3244 = vpop.permute.xlu0 %3243
        %v3245 = vlaneseq
        %v3246 = vshrl.u32 %v3245, 7
        %v3247 = vsub.s32 6, %v3246
        %v3248 = vrot.slane %v2857, %v3247
        %3250 = vbcast.lane.b32.xlu0 %v3248, 256
        %v3251 = vpop.permute.xlu0 %3250
        %v3252 = vlaneseq
        %v3253 = vshrl.u32 %v3252, 7
        %v3254 = vsub.s32 7, %v3253
        %v3255 = vrot.slane %v2857, %v3254
        %3257 = vbcast.lane.b32.xlu0 %v3255, 256
        %v3258 = vpop.permute.xlu0 %3257
        %v3259 = vlaneseq
        %v3260 = vshrl.u32 %v3259, 7
        %v3261 = vsub.s32 0, %v3260
        %v3262 = vrot.slane %v2858, %v3261
        %3264 = vbcast.lane.b32.xlu0 %v3262, 256
        %v3265 = vpop.permute.xlu0 %3264
        %v3266 = vlaneseq
        %v3267 = vshrl.u32 %v3266, 7
        %v3268 = vsub.s32 1, %v3267
        %v3269 = vrot.slane %v2858, %v3268
        %3271 = vbcast.lane.b32.xlu0 %v3269, 256
        %v3272 = vpop.permute.xlu0 %3271
        %v3273 = vlaneseq
        %v3274 = vshrl.u32 %v3273, 7
        %v3275 = vsub.s32 2, %v3274
        %v3276 = vrot.slane %v2858, %v3275
        %3278 = vbcast.lane.b32.xlu0 %v3276, 256
        %v3279 = vpop.permute.xlu0 %3278
        %v3280 = vlaneseq
        %v3281 = vshrl.u32 %v3280, 7
        %v3282 = vsub.s32 3, %v3281
        %v3283 = vrot.slane %v2858, %v3282
        %3285 = vbcast.lane.b32.xlu0 %v3283, 256
        %v3286 = vpop.permute.xlu0 %3285
        %v3287 = vlaneseq
        %v3288 = vshrl.u32 %v3287, 7
        %v3289 = vsub.s32 4, %v3288
        %v3290 = vrot.slane %v2858, %v3289
        %3292 = vbcast.lane.b32.xlu0 %v3290, 256
        %v3293 = vpop.permute.xlu0 %3292
        %v3294 = vlaneseq
        %v3295 = vshrl.u32 %v3294, 7
        %v3296 = vsub.s32 5, %v3295
        %v3297 = vrot.slane %v2858, %v3296
        %3299 = vbcast.lane.b32.xlu0 %v3297, 256
        %v3300 = vpop.permute.xlu0 %3299
        %v3301 = vlaneseq
        %v3302 = vshrl.u32 %v3301, 7
        %v3303 = vsub.s32 6, %v3302
        %v3304 = vrot.slane %v2858, %v3303
        %3306 = vbcast.lane.b32.xlu0 %v3304, 256
        %v3307 = vpop.permute.xlu0 %3306
        %v3308 = vlaneseq
        %v3309 = vshrl.u32 %v3308, 7
        %v3310 = vsub.s32 7, %v3309
        %v3311 = vrot.slane %v2858, %v3310
        %3313 = vbcast.lane.b32.xlu0 %v3311, 256
        %v3314 = vpop.permute.xlu0 %3313
        %v3315 = vlaneseq
        %v3316 = vshrl.u32 %v3315, 7
        %v3317 = vsub.s32 0, %v3316
        %v3318 = vrot.slane %v2859, %v3317
        %3320 = vbcast.lane.b32.xlu0 %v3318, 256
        %v3321 = vpop.permute.xlu0 %3320
        %v3322 = vlaneseq
        %v3323 = vshrl.u32 %v3322, 7
        %v3324 = vsub.s32 1, %v3323
        %v3325 = vrot.slane %v2859, %v3324
        %3327 = vbcast.lane.b32.xlu0 %v3325, 256
        %v3328 = vpop.permute.xlu0 %3327
        %v3329 = vlaneseq
        %v3330 = vshrl.u32 %v3329, 7
        %v3331 = vsub.s32 2, %v3330
        %v3332 = vrot.slane %v2859, %v3331
        %3334 = vbcast.lane.b32.xlu0 %v3332, 256
        %v3335 = vpop.permute.xlu0 %3334
        %v3336 = vlaneseq
        %v3337 = vshrl.u32 %v3336, 7
        %v3338 = vsub.s32 3, %v3337
        %v3339 = vrot.slane %v2859, %v3338
        %3341 = vbcast.lane.b32.xlu0 %v3339, 256
        %v3342 = vpop.permute.xlu0 %3341
        %v3343 = vlaneseq
        %v3344 = vshrl.u32 %v3343, 7
        %v3345 = vsub.s32 4, %v3344
        %v3346 = vrot.slane %v2859, %v3345
        %3348 = vbcast.lane.b32.xlu0 %v3346, 256
        %v3349 = vpop.permute.xlu0 %3348
        %v3350 = vlaneseq
        %v3351 = vshrl.u32 %v3350, 7
        %v3352 = vsub.s32 5, %v3351
        %v3353 = vrot.slane %v2859, %v3352
        %3355 = vbcast.lane.b32.xlu0 %v3353, 256
        %v3356 = vpop.permute.xlu0 %3355
        %v3357 = vlaneseq
        %v3358 = vshrl.u32 %v3357, 7
        %v3359 = vsub.s32 6, %v3358
        %v3360 = vrot.slane %v2859, %v3359
        %3362 = vbcast.lane.b32.xlu0 %v3360, 256
        %v3363 = vpop.permute.xlu0 %3362
        %v3364 = vlaneseq
        %v3365 = vshrl.u32 %v3364, 7
        %v3366 = vsub.s32 7, %v3365
        %v3367 = vrot.slane %v2859, %v3366
        %3369 = vbcast.lane.b32.xlu0 %v3367, 256
        %v3370 = vpop.permute.xlu0 %3369
        %v3371 = vlaneseq
        %v3372 = vshrl.u32 %v3371, 7
        %v3373 = vsub.s32 0, %v3372
        %v3374 = vrot.slane %v2860, %v3373
        %3376 = vbcast.lane.b32.xlu0 %v3374, 256
        %v3377 = vpop.permute.xlu0 %3376
        %v3378 = vlaneseq
        %v3379 = vshrl.u32 %v3378, 7
        %v3380 = vsub.s32 1, %v3379
        %v3381 = vrot.slane %v2860, %v3380
        %3383 = vbcast.lane.b32.xlu0 %v3381, 256
        %v3384 = vpop.permute.xlu0 %3383
        %v3385 = vlaneseq
        %v3386 = vshrl.u32 %v3385, 7
        %v3387 = vsub.s32 2, %v3386
        %v3388 = vrot.slane %v2860, %v3387
        %3390 = vbcast.lane.b32.xlu0 %v3388, 256
        %v3391 = vpop.permute.xlu0 %3390
        %v3392 = vlaneseq
        %v3393 = vshrl.u32 %v3392, 7
        %v3394 = vsub.s32 3, %v3393
        %v3395 = vrot.slane %v2860, %v3394
        %3397 = vbcast.lane.b32.xlu0 %v3395, 256
        %v3398 = vpop.permute.xlu0 %3397
        %v3399 = vlaneseq
        %v3400 = vshrl.u32 %v3399, 7
        %v3401 = vsub.s32 4, %v3400
        %v3402 = vrot.slane %v2860, %v3401
        %3404 = vbcast.lane.b32.xlu0 %v3402, 256
        %v3405 = vpop.permute.xlu0 %3404
        %v3406 = vlaneseq
        %v3407 = vshrl.u32 %v3406, 7
        %v3408 = vsub.s32 5, %v3407
        %v3409 = vrot.slane %v2860, %v3408
        %3411 = vbcast.lane.b32.xlu0 %v3409, 256
        %v3412 = vpop.permute.xlu0 %3411
        %v3413 = vlaneseq
        %v3414 = vshrl.u32 %v3413, 7
        %v3415 = vsub.s32 6, %v3414
        %v3416 = vrot.slane %v2860, %v3415
        %3418 = vbcast.lane.b32.xlu0 %v3416, 256
        %v3419 = vpop.permute.xlu0 %3418
        %v3420 = vlaneseq
        %v3421 = vshrl.u32 %v3420, 7
        %v3422 = vsub.s32 7, %v3421
        %v3423 = vrot.slane %v2860, %v3422
        %3425 = vbcast.lane.b32.xlu0 %v3423, 256
        %v3426 = vpop.permute.xlu0 %3425
        %v3427 = vlaneseq
        %v3428 = vshrl.u32 %v3427, 7
        %v3429 = vsub.s32 0, %v3428
        %v3430 = vrot.slane %v2861, %v3429
        %3432 = vbcast.lane.b32.xlu0 %v3430, 256
        %v3433 = vpop.permute.xlu0 %3432
        %v3434 = vlaneseq
        %v3435 = vshrl.u32 %v3434, 7
        %v3436 = vsub.s32 1, %v3435
        %v3437 = vrot.slane %v2861, %v3436
        %3439 = vbcast.lane.b32.xlu0 %v3437, 256
        %v3440 = vpop.permute.xlu0 %3439
        %v3441 = vlaneseq
        %v3442 = vshrl.u32 %v3441, 7
        %v3443 = vsub.s32 2, %v3442
        %v3444 = vrot.slane %v2861, %v3443
        %3446 = vbcast.lane.b32.xlu0 %v3444, 256
        %v3447 = vpop.permute.xlu0 %3446
        %v3448 = vlaneseq
        %v3449 = vshrl.u32 %v3448, 7
        %v3450 = vsub.s32 3, %v3449
        %v3451 = vrot.slane %v2861, %v3450
        %3453 = vbcast.lane.b32.xlu0 %v3451, 256
        %v3454 = vpop.permute.xlu0 %3453
        %v3455 = vlaneseq
        %v3456 = vshrl.u32 %v3455, 7
        %v3457 = vsub.s32 4, %v3456
        %v3458 = vrot.slane %v2861, %v3457
        %3460 = vbcast.lane.b32.xlu0 %v3458, 256
        %v3461 = vpop.permute.xlu0 %3460
        %v3462 = vlaneseq
        %v3463 = vshrl.u32 %v3462, 7
        %v3464 = vsub.s32 5, %v3463
        %v3465 = vrot.slane %v2861, %v3464
        %3467 = vbcast.lane.b32.xlu0 %v3465, 256
        %v3468 = vpop.permute.xlu0 %3467
        %v3469 = vlaneseq
        %v3470 = vshrl.u32 %v3469, 7
        %v3471 = vsub.s32 6, %v3470
        %v3472 = vrot.slane %v2861, %v3471
        %3474 = vbcast.lane.b32.xlu0 %v3472, 256
        %v3475 = vpop.permute.xlu0 %3474
        %v3476 = vlaneseq
        %v3477 = vshrl.u32 %v3476, 7
        %v3478 = vsub.s32 7, %v3477
        %v3479 = vrot.slane %v2861, %v3478
        %3481 = vbcast.lane.b32.xlu0 %v3479, 256
        %v3482 = vpop.permute.xlu0 %3481
        %v3483 = vlaneseq
        %v3484 = vshrl.u32 %v3483, 7
        %v3485 = vsub.s32 0, %v3484
        %v3486 = vrot.slane %v2862, %v3485
        %3488 = vbcast.lane.b32.xlu0 %v3486, 256
        %v3489 = vpop.permute.xlu0 %3488
        %v3490 = vlaneseq
        %v3491 = vshrl.u32 %v3490, 7
        %v3492 = vsub.s32 1, %v3491
        %v3493 = vrot.slane %v2862, %v3492
        %3495 = vbcast.lane.b32.xlu0 %v3493, 256
        %v3496 = vpop.permute.xlu0 %3495
        %v3497 = vlaneseq
        %v3498 = vshrl.u32 %v3497, 7
        %v3499 = vsub.s32 2, %v3498
        %v3500 = vrot.slane %v2862, %v3499
        %3502 = vbcast.lane.b32.xlu0 %v3500, 256
        %v3503 = vpop.permute.xlu0 %3502
        %v3504 = vlaneseq
        %v3505 = vshrl.u32 %v3504, 7
        %v3506 = vsub.s32 3, %v3505
        %v3507 = vrot.slane %v2862, %v3506
        %3509 = vbcast.lane.b32.xlu0 %v3507, 256
        %v3510 = vpop.permute.xlu0 %3509
        %v3511 = vlaneseq
        %v3512 = vshrl.u32 %v3511, 7
        %v3513 = vsub.s32 4, %v3512
        %v3514 = vrot.slane %v2862, %v3513
        %3516 = vbcast.lane.b32.xlu0 %v3514, 256
        %v3517 = vpop.permute.xlu0 %3516
        %v3518 = vlaneseq
        %v3519 = vshrl.u32 %v3518, 7
        %v3520 = vsub.s32 5, %v3519
        %v3521 = vrot.slane %v2862, %v3520
        %3523 = vbcast.lane.b32.xlu0 %v3521, 256
        %v3524 = vpop.permute.xlu0 %3523
        %v3525 = vlaneseq
        %v3526 = vshrl.u32 %v3525, 7
        %v3527 = vsub.s32 6, %v3526
        %v3528 = vrot.slane %v2862, %v3527
        %3530 = vbcast.lane.b32.xlu0 %v3528, 256
        %v3531 = vpop.permute.xlu0 %3530
        %v3532 = vlaneseq
        %v3533 = vshrl.u32 %v3532, 7
        %v3534 = vsub.s32 7, %v3533
        %v3535 = vrot.slane %v2862, %v3534
        %3537 = vbcast.lane.b32.xlu0 %v3535, 256
        %v3538 = vpop.permute.xlu0 %3537
        %v3539 = vlaneseq
        %v3540 = vshrl.u32 %v3539, 7
        %v3541 = vsub.s32 0, %v3540
        %v3542 = vrot.slane %v2863, %v3541
        %3544 = vbcast.lane.b32.xlu0 %v3542, 256
        %v3545 = vpop.permute.xlu0 %3544
        %v3546 = vlaneseq
        %v3547 = vshrl.u32 %v3546, 7
        %v3548 = vsub.s32 1, %v3547
        %v3549 = vrot.slane %v2863, %v3548
        %3551 = vbcast.lane.b32.xlu0 %v3549, 256
        %v3552 = vpop.permute.xlu0 %3551
        %v3553 = vlaneseq
        %v3554 = vshrl.u32 %v3553, 7
        %v3555 = vsub.s32 2, %v3554
        %v3556 = vrot.slane %v2863, %v3555
        %3558 = vbcast.lane.b32.xlu0 %v3556, 256
        %v3559 = vpop.permute.xlu0 %3558
        %v3560 = vlaneseq
        %v3561 = vshrl.u32 %v3560, 7
        %v3562 = vsub.s32 3, %v3561
        %v3563 = vrot.slane %v2863, %v3562
        %3565 = vbcast.lane.b32.xlu0 %v3563, 256
        %v3566 = vpop.permute.xlu0 %3565
        %v3567 = vlaneseq
        %v3568 = vshrl.u32 %v3567, 7
        %v3569 = vsub.s32 4, %v3568
        %v3570 = vrot.slane %v2863, %v3569
        %3572 = vbcast.lane.b32.xlu0 %v3570, 256
        %v3573 = vpop.permute.xlu0 %3572
        %v3574 = vlaneseq
        %v3575 = vshrl.u32 %v3574, 7
        %v3576 = vsub.s32 5, %v3575
        %v3577 = vrot.slane %v2863, %v3576
        %3579 = vbcast.lane.b32.xlu0 %v3577, 256
        %v3580 = vpop.permute.xlu0 %3579
        %v3581 = vlaneseq
        %v3582 = vshrl.u32 %v3581, 7
        %v3583 = vsub.s32 6, %v3582
        %v3584 = vrot.slane %v2863, %v3583
        %3586 = vbcast.lane.b32.xlu0 %v3584, 256
        %v3587 = vpop.permute.xlu0 %3586
        %v3588 = vlaneseq
        %v3589 = vshrl.u32 %v3588, 7
        %v3590 = vsub.s32 7, %v3589
        %v3591 = vrot.slane %v2863, %v3590
        %3593 = vbcast.lane.b32.xlu0 %v3591, 256
        %v3594 = vpop.permute.xlu0 %3593
        %v3595 = vlaneseq
        %v3596 = vshrl.u32 %v3595, 7
        %v3597 = vsub.s32 0, %v3596
        %v3598 = vrot.slane %v2864, %v3597
        %3600 = vbcast.lane.b32.xlu0 %v3598, 256
        %v3601 = vpop.permute.xlu0 %3600
        %v3602 = vlaneseq
        %v3603 = vshrl.u32 %v3602, 7
        %v3604 = vsub.s32 1, %v3603
        %v3605 = vrot.slane %v2864, %v3604
        %3607 = vbcast.lane.b32.xlu0 %v3605, 256
        %v3608 = vpop.permute.xlu0 %3607
        %v3609 = vlaneseq
        %v3610 = vshrl.u32 %v3609, 7
        %v3611 = vsub.s32 2, %v3610
        %v3612 = vrot.slane %v2864, %v3611
        %3614 = vbcast.lane.b32.xlu0 %v3612, 256
        %v3615 = vpop.permute.xlu0 %3614
        %v3616 = vlaneseq
        %v3617 = vshrl.u32 %v3616, 7
        %v3618 = vsub.s32 3, %v3617
        %v3619 = vrot.slane %v2864, %v3618
        %3621 = vbcast.lane.b32.xlu0 %v3619, 256
        %v3622 = vpop.permute.xlu0 %3621
        %v3623 = vlaneseq
        %v3624 = vshrl.u32 %v3623, 7
        %v3625 = vsub.s32 4, %v3624
        %v3626 = vrot.slane %v2864, %v3625
        %3628 = vbcast.lane.b32.xlu0 %v3626, 256
        %v3629 = vpop.permute.xlu0 %3628
        %v3630 = vlaneseq
        %v3631 = vshrl.u32 %v3630, 7
        %v3632 = vsub.s32 5, %v3631
        %v3633 = vrot.slane %v2864, %v3632
        %3635 = vbcast.lane.b32.xlu0 %v3633, 256
        %v3636 = vpop.permute.xlu0 %3635
        %v3637 = vlaneseq
        %v3638 = vshrl.u32 %v3637, 7
        %v3639 = vsub.s32 6, %v3638
        %v3640 = vrot.slane %v2864, %v3639
        %3642 = vbcast.lane.b32.xlu0 %v3640, 256
        %v3643 = vpop.permute.xlu0 %3642
        %v3644 = vlaneseq
        %v3645 = vshrl.u32 %v3644, 7
        %v3646 = vsub.s32 7, %v3645
        %v3647 = vrot.slane %v2864, %v3646
        %3649 = vbcast.lane.b32.xlu0 %v3647, 256
        %v3650 = vpop.permute.xlu0 %3649
        %v3651 = vlaneseq
        %v3652 = vshrl.u32 %v3651, 7
        %v3653 = vsub.s32 0, %v3652
        %v3654 = vrot.slane %v2865, %v3653
        %3656 = vbcast.lane.b32.xlu0 %v3654, 256
        %v3657 = vpop.permute.xlu0 %3656
        %v3658 = vlaneseq
        %v3659 = vshrl.u32 %v3658, 7
        %v3660 = vsub.s32 1, %v3659
        %v3661 = vrot.slane %v2865, %v3660
        %3663 = vbcast.lane.b32.xlu0 %v3661, 256
        %v3664 = vpop.permute.xlu0 %3663
        %v3665 = vlaneseq
        %v3666 = vshrl.u32 %v3665, 7
        %v3667 = vsub.s32 2, %v3666
        %v3668 = vrot.slane %v2865, %v3667
        %3670 = vbcast.lane.b32.xlu0 %v3668, 256
        %v3671 = vpop.permute.xlu0 %3670
        %v3672 = vlaneseq
        %v3673 = vshrl.u32 %v3672, 7
        %v3674 = vsub.s32 3, %v3673
        %v3675 = vrot.slane %v2865, %v3674
        %3677 = vbcast.lane.b32.xlu0 %v3675, 256
        %v3678 = vpop.permute.xlu0 %3677
        %v3679 = vlaneseq
        %v3680 = vshrl.u32 %v3679, 7
        %v3681 = vsub.s32 4, %v3680
        %v3682 = vrot.slane %v2865, %v3681
        %3684 = vbcast.lane.b32.xlu0 %v3682, 256
        %v3685 = vpop.permute.xlu0 %3684
        %v3686 = vlaneseq
        %v3687 = vshrl.u32 %v3686, 7
        %v3688 = vsub.s32 5, %v3687
        %v3689 = vrot.slane %v2865, %v3688
        %3691 = vbcast.lane.b32.xlu0 %v3689, 256
        %v3692 = vpop.permute.xlu0 %3691
        %v3693 = vlaneseq
        %v3694 = vshrl.u32 %v3693, 7
        %v3695 = vsub.s32 6, %v3694
        %v3696 = vrot.slane %v2865, %v3695
        %3698 = vbcast.lane.b32.xlu0 %v3696, 256
        %v3699 = vpop.permute.xlu0 %3698
        %v3700 = vlaneseq
        %v3701 = vshrl.u32 %v3700, 7
        %v3702 = vsub.s32 7, %v3701
        %v3703 = vrot.slane %v2865, %v3702
        %3705 = vbcast.lane.b32.xlu0 %v3703, 256
        %v3706 = vpop.permute.xlu0 %3705
        %v3707 = vlaneseq
        %v3708 = vshrl.u32 %v3707, 7
        %v3709 = vsub.s32 0, %v3708
        %v3710 = vrot.slane %v2866, %v3709
        %3712 = vbcast.lane.b32.xlu0 %v3710, 256
        %v3713 = vpop.permute.xlu0 %3712
        %v3714 = vlaneseq
        %v3715 = vshrl.u32 %v3714, 7
        %v3716 = vsub.s32 1, %v3715
        %v3717 = vrot.slane %v2866, %v3716
        %3719 = vbcast.lane.b32.xlu0 %v3717, 256
        %v3720 = vpop.permute.xlu0 %3719
        %v3721 = vlaneseq
        %v3722 = vshrl.u32 %v3721, 7
        %v3723 = vsub.s32 2, %v3722
        %v3724 = vrot.slane %v2866, %v3723
        %3726 = vbcast.lane.b32.xlu0 %v3724, 256
        %v3727 = vpop.permute.xlu0 %3726
        %v3728 = vlaneseq
        %v3729 = vshrl.u32 %v3728, 7
        %v3730 = vsub.s32 3, %v3729
        %v3731 = vrot.slane %v2866, %v3730
        %3733 = vbcast.lane.b32.xlu0 %v3731, 256
        %v3734 = vpop.permute.xlu0 %3733
        %v3735 = vlaneseq
        %v3736 = vshrl.u32 %v3735, 7
        %v3737 = vsub.s32 4, %v3736
        %v3738 = vrot.slane %v2866, %v3737
        %3740 = vbcast.lane.b32.xlu0 %v3738, 256
        %v3741 = vpop.permute.xlu0 %3740
        %v3742 = vlaneseq
        %v3743 = vshrl.u32 %v3742, 7
        %v3744 = vsub.s32 5, %v3743
        %v3745 = vrot.slane %v2866, %v3744
        %3747 = vbcast.lane.b32.xlu0 %v3745, 256
        %v3748 = vpop.permute.xlu0 %3747
        %v3749 = vlaneseq
        %v3750 = vshrl.u32 %v3749, 7
        %v3751 = vsub.s32 6, %v3750
        %v3752 = vrot.slane %v2866, %v3751
        %3754 = vbcast.lane.b32.xlu0 %v3752, 256
        %v3755 = vpop.permute.xlu0 %3754
        %v3756 = vlaneseq
        %v3757 = vshrl.u32 %v3756, 7
        %v3758 = vsub.s32 7, %v3757
        %v3759 = vrot.slane %v2866, %v3758
        %3761 = vbcast.lane.b32.xlu0 %v3759, 256
        %v3762 = vpop.permute.xlu0 %3761
        %v3763 = vmul.f32 %v2873, %v264
        %v3764 = vmul.f32 %v2880, %v265
        %v3765 = vmul.f32 %v2887, %v266
        %v3766 = vmul.f32 %v2894, %v267
        %v3767 = vmul.f32 %v2901, %v268
        %v3768 = vmul.f32 %v2908, %v269
        %v3769 = vmul.f32 %v2915, %v270
        %v3770 = vmul.f32 %v2922, %v271
        %v3771 = vmul.f32 %v2929, %v272
        %v3772 = vmul.f32 %v2936, %v273
        %v3773 = vmul.f32 %v2943, %v274
        %v3774 = vmul.f32 %v2950, %v275
        %v3775 = vmul.f32 %v2957, %v276
        %v3776 = vmul.f32 %v2964, %v277
        %v3777 = vmul.f32 %v2971, %v278
        %v3778 = vmul.f32 %v2978, %v279
        %v3779 = vmul.f32 %v2985, %v280
        %v3780 = vmul.f32 %v2992, %v281
        %v3781 = vmul.f32 %v2999, %v282
        %v3782 = vmul.f32 %v3006, %v283
        %v3783 = vmul.f32 %v3013, %v284
        %v3784 = vmul.f32 %v3020, %v285
        %v3785 = vmul.f32 %v3027, %v286
        %v3786 = vmul.f32 %v3034, %v287
        %v3787 = vmul.f32 %v3041, %v288
        %v3788 = vmul.f32 %v3048, %v289
        %v3789 = vmul.f32 %v3055, %v290
        %v3790 = vmul.f32 %v3062, %v291
        %v3791 = vmul.f32 %v3069, %v292
        %v3792 = vmul.f32 %v3076, %v293
        %v3793 = vmul.f32 %v3083, %v294
        %v3794 = vmul.f32 %v3090, %v295
        %v3795 = vmul.f32 %v3097, %v296
        %v3796 = vmul.f32 %v3104, %v297
        %v3797 = vmul.f32 %v3111, %v298
        %v3798 = vmul.f32 %v3118, %v299
        %v3799 = vmul.f32 %v3125, %v300
        %v3800 = vmul.f32 %v3132, %v301
        %v3801 = vmul.f32 %v3139, %v302
        %v3802 = vmul.f32 %v3146, %v303
        %v3803 = vmul.f32 %v3153, %v304
        %v3804 = vmul.f32 %v3160, %v305
        %v3805 = vmul.f32 %v3167, %v306
        %v3806 = vmul.f32 %v3174, %v307
        %v3807 = vmul.f32 %v3181, %v308
        %v3808 = vmul.f32 %v3188, %v309
        %v3809 = vmul.f32 %v3195, %v310
        %v3810 = vmul.f32 %v3202, %v311
        %v3811 = vmul.f32 %v3209, %v312
        %v3812 = vmul.f32 %v3216, %v313
        %v3813 = vmul.f32 %v3223, %v314
        %v3814 = vmul.f32 %v3230, %v315
        %v3815 = vmul.f32 %v3237, %v316
        %v3816 = vmul.f32 %v3244, %v317
        %v3817 = vmul.f32 %v3251, %v318
        %v3818 = vmul.f32 %v3258, %v319
        %v3819 = vmul.f32 %v3265, %v320
        %v3820 = vmul.f32 %v3272, %v321
        %v3821 = vmul.f32 %v3279, %v322
        %v3822 = vmul.f32 %v3286, %v323
        %v3823 = vmul.f32 %v3293, %v324
        %v3824 = vmul.f32 %v3300, %v325
        %v3825 = vmul.f32 %v3307, %v326
        %v3826 = vmul.f32 %v3314, %v327
        %v3827 = vmul.f32 %v3321, %v328
        %v3828 = vmul.f32 %v3328, %v329
        %v3829 = vmul.f32 %v3335, %v330
        %v3830 = vmul.f32 %v3342, %v331
        %v3831 = vmul.f32 %v3349, %v332
        %v3832 = vmul.f32 %v3356, %v333
        %v3833 = vmul.f32 %v3363, %v334
        %v3834 = vmul.f32 %v3370, %v335
        %v3835 = vmul.f32 %v3377, %v336
        %v3836 = vmul.f32 %v3384, %v337
        %v3837 = vmul.f32 %v3391, %v338
        %v3838 = vmul.f32 %v3398, %v339
        %v3839 = vmul.f32 %v3405, %v340
        %v3840 = vmul.f32 %v3412, %v341
        %v3841 = vmul.f32 %v3419, %v342
        %v3842 = vmul.f32 %v3426, %v343
        %v3843 = vmul.f32 %v3433, %v344
        %v3844 = vmul.f32 %v3440, %v345
        %v3845 = vmul.f32 %v3447, %v346
        %v3846 = vmul.f32 %v3454, %v347
        %v3847 = vmul.f32 %v3461, %v348
        %v3848 = vmul.f32 %v3468, %v349
        %v3849 = vmul.f32 %v3475, %v350
        %v3850 = vmul.f32 %v3482, %v351
        %v3851 = vmul.f32 %v3489, %v352
        %v3852 = vmul.f32 %v3496, %v353
        %v3853 = vmul.f32 %v3503, %v354
        %v3854 = vmul.f32 %v3510, %v355
        %v3855 = vmul.f32 %v3517, %v356
        %v3856 = vmul.f32 %v3524, %v357
        %v3857 = vmul.f32 %v3531, %v358
        %v3858 = vmul.f32 %v3538, %v359
        %v3859 = vmul.f32 %v3545, %v360
        %v3860 = vmul.f32 %v3552, %v361
        %v3861 = vmul.f32 %v3559, %v362
        %v3862 = vmul.f32 %v3566, %v363
        %v3863 = vmul.f32 %v3573, %v364
        %v3864 = vmul.f32 %v3580, %v365
        %v3865 = vmul.f32 %v3587, %v366
        %v3866 = vmul.f32 %v3594, %v367
        %v3867 = vmul.f32 %v3601, %v368
        %v3868 = vmul.f32 %v3608, %v369
        %v3869 = vmul.f32 %v3615, %v370
        %v3870 = vmul.f32 %v3622, %v371
        %v3871 = vmul.f32 %v3629, %v372
        %v3872 = vmul.f32 %v3636, %v373
        %v3873 = vmul.f32 %v3643, %v374
        %v3874 = vmul.f32 %v3650, %v375
        %v3875 = vmul.f32 %v3657, %v376
        %v3876 = vmul.f32 %v3664, %v377
        %v3877 = vmul.f32 %v3671, %v378
        %v3878 = vmul.f32 %v3678, %v379
        %v3879 = vmul.f32 %v3685, %v380
        %v3880 = vmul.f32 %v3692, %v381
        %v3881 = vmul.f32 %v3699, %v382
        %v3882 = vmul.f32 %v3706, %v383
        %v3883 = vmul.f32 %v3713, %v384
        %v3884 = vmul.f32 %v3720, %v385
        %v3885 = vmul.f32 %v3727, %v386
        %v3886 = vmul.f32 %v3734, %v387
        %v3887 = vmul.f32 %v3741, %v388
        %v3888 = vmul.f32 %v3748, %v389
        %v3889 = vmul.f32 %v3755, %v390
        %v3890 = vmul.f32 %v3762, %v391
        %v3891 = vsel %vm402, %v3763, 0.0
        %v3892 = vrot.slane %v3891, 4
        %v3893 = vadd.f32 %v3891, %v3892
        %v3894 = vrot.slane %v3893, 2
        %v3895 = vadd.f32 %v3893, %v3894
        %v3896 = vrot.slane %v3895, 1
        %v3897 = vadd.f32 %v3895, %v3896
        %v3898 = vsel %vm402, %v3764, 0.0
        %v3899 = vrot.slane %v3898, 4
        %v3900 = vadd.f32 %v3898, %v3899
        %v3901 = vrot.slane %v3900, 2
        %v3902 = vadd.f32 %v3900, %v3901
        %v3903 = vrot.slane %v3902, 1
        %v3904 = vadd.f32 %v3902, %v3903
        %v3905 = vsel %vm402, %v3765, 0.0
        %v3906 = vrot.slane %v3905, 4
        %v3907 = vadd.f32 %v3905, %v3906
        %v3908 = vrot.slane %v3907, 2
        %v3909 = vadd.f32 %v3907, %v3908
        %v3910 = vrot.slane %v3909, 1
        %v3911 = vadd.f32 %v3909, %v3910
        %v3912 = vsel %vm402, %v3766, 0.0
        %v3913 = vrot.slane %v3912, 4
        %v3914 = vadd.f32 %v3912, %v3913
        %v3915 = vrot.slane %v3914, 2
        %v3916 = vadd.f32 %v3914, %v3915
        %v3917 = vrot.slane %v3916, 1
        %v3918 = vadd.f32 %v3916, %v3917
        %v3919 = vsel %vm402, %v3767, 0.0
        %v3920 = vrot.slane %v3919, 4
        %v3921 = vadd.f32 %v3919, %v3920
        %v3922 = vrot.slane %v3921, 2
        %v3923 = vadd.f32 %v3921, %v3922
        %v3924 = vrot.slane %v3923, 1
        %v3925 = vadd.f32 %v3923, %v3924
        %v3926 = vsel %vm402, %v3768, 0.0
        %v3927 = vrot.slane %v3926, 4
        %v3928 = vadd.f32 %v3926, %v3927
        %v3929 = vrot.slane %v3928, 2
        %v3930 = vadd.f32 %v3928, %v3929
        %v3931 = vrot.slane %v3930, 1
        %v3932 = vadd.f32 %v3930, %v3931
        %v3933 = vsel %vm402, %v3769, 0.0
        %v3934 = vrot.slane %v3933, 4
        %v3935 = vadd.f32 %v3933, %v3934
        %v3936 = vrot.slane %v3935, 2
        %v3937 = vadd.f32 %v3935, %v3936
        %v3938 = vrot.slane %v3937, 1
        %v3939 = vadd.f32 %v3937, %v3938
        %v3940 = vsel %vm402, %v3770, 0.0
        %v3941 = vrot.slane %v3940, 4
        %v3942 = vadd.f32 %v3940, %v3941
        %v3943 = vrot.slane %v3942, 2
        %v3944 = vadd.f32 %v3942, %v3943
        %v3945 = vrot.slane %v3944, 1
        %v3946 = vadd.f32 %v3944, %v3945
        %v3947 = vsel %vm402, %v3771, 0.0
        %v3948 = vrot.slane %v3947, 4
        %v3949 = vadd.f32 %v3947, %v3948
        %v3950 = vrot.slane %v3949, 2
        %v3951 = vadd.f32 %v3949, %v3950
        %v3952 = vrot.slane %v3951, 1
        %v3953 = vadd.f32 %v3951, %v3952
        %v3954 = vsel %vm402, %v3772, 0.0
        %v3955 = vrot.slane %v3954, 4
        %v3956 = vadd.f32 %v3954, %v3955
        %v3957 = vrot.slane %v3956, 2
        %v3958 = vadd.f32 %v3956, %v3957
        %v3959 = vrot.slane %v3958, 1
        %v3960 = vadd.f32 %v3958, %v3959
        %v3961 = vsel %vm402, %v3773, 0.0
        %v3962 = vrot.slane %v3961, 4
        %v3963 = vadd.f32 %v3961, %v3962
        %v3964 = vrot.slane %v3963, 2
        %v3965 = vadd.f32 %v3963, %v3964
        %v3966 = vrot.slane %v3965, 1
        %v3967 = vadd.f32 %v3965, %v3966
        %v3968 = vsel %vm402, %v3774, 0.0
        %v3969 = vrot.slane %v3968, 4
        %v3970 = vadd.f32 %v3968, %v3969
        %v3971 = vrot.slane %v3970, 2
        %v3972 = vadd.f32 %v3970, %v3971
        %v3973 = vrot.slane %v3972, 1
        %v3974 = vadd.f32 %v3972, %v3973
        %v3975 = vsel %vm402, %v3775, 0.0
        %v3976 = vrot.slane %v3975, 4
        %v3977 = vadd.f32 %v3975, %v3976
        %v3978 = vrot.slane %v3977, 2
        %v3979 = vadd.f32 %v3977, %v3978
        %v3980 = vrot.slane %v3979, 1
        %v3981 = vadd.f32 %v3979, %v3980
        %v3982 = vsel %vm402, %v3776, 0.0
        %v3983 = vrot.slane %v3982, 4
        %v3984 = vadd.f32 %v3982, %v3983
        %v3985 = vrot.slane %v3984, 2
        %v3986 = vadd.f32 %v3984, %v3985
        %v3987 = vrot.slane %v3986, 1
        %v3988 = vadd.f32 %v3986, %v3987
        %v3989 = vsel %vm402, %v3777, 0.0
        %v3990 = vrot.slane %v3989, 4
        %v3991 = vadd.f32 %v3989, %v3990
        %v3992 = vrot.slane %v3991, 2
        %v3993 = vadd.f32 %v3991, %v3992
        %v3994 = vrot.slane %v3993, 1
        %v3995 = vadd.f32 %v3993, %v3994
        %v3996 = vsel %vm402, %v3778, 0.0
        %v3997 = vrot.slane %v3996, 4
        %v3998 = vadd.f32 %v3996, %v3997
        %v3999 = vrot.slane %v3998, 2
        %v4000 = vadd.f32 %v3998, %v3999
        %v4001 = vrot.slane %v4000, 1
        %v4002 = vadd.f32 %v4000, %v4001
        %v4003 = vsel %vm402, %v3779, 0.0
        %v4004 = vrot.slane %v4003, 4
        %v4005 = vadd.f32 %v4003, %v4004
        %v4006 = vrot.slane %v4005, 2
        %v4007 = vadd.f32 %v4005, %v4006
        %v4008 = vrot.slane %v4007, 1
        %v4009 = vadd.f32 %v4007, %v4008
        %v4010 = vsel %vm402, %v3780, 0.0
        %v4011 = vrot.slane %v4010, 4
        %v4012 = vadd.f32 %v4010, %v4011
        %v4013 = vrot.slane %v4012, 2
        %v4014 = vadd.f32 %v4012, %v4013
        %v4015 = vrot.slane %v4014, 1
        %v4016 = vadd.f32 %v4014, %v4015
        %v4017 = vsel %vm402, %v3781, 0.0
        %v4018 = vrot.slane %v4017, 4
        %v4019 = vadd.f32 %v4017, %v4018
        %v4020 = vrot.slane %v4019, 2
        %v4021 = vadd.f32 %v4019, %v4020
        %v4022 = vrot.slane %v4021, 1
        %v4023 = vadd.f32 %v4021, %v4022
        %v4024 = vsel %vm402, %v3782, 0.0
        %v4025 = vrot.slane %v4024, 4
        %v4026 = vadd.f32 %v4024, %v4025
        %v4027 = vrot.slane %v4026, 2
        %v4028 = vadd.f32 %v4026, %v4027
        %v4029 = vrot.slane %v4028, 1
        %v4030 = vadd.f32 %v4028, %v4029
        %v4031 = vsel %vm402, %v3783, 0.0
        %v4032 = vrot.slane %v4031, 4
        %v4033 = vadd.f32 %v4031, %v4032
        %v4034 = vrot.slane %v4033, 2
        %v4035 = vadd.f32 %v4033, %v4034
        %v4036 = vrot.slane %v4035, 1
        %v4037 = vadd.f32 %v4035, %v4036
        %v4038 = vsel %vm402, %v3784, 0.0
        %v4039 = vrot.slane %v4038, 4
        %v4040 = vadd.f32 %v4038, %v4039
        %v4041 = vrot.slane %v4040, 2
        %v4042 = vadd.f32 %v4040, %v4041
        %v4043 = vrot.slane %v4042, 1
        %v4044 = vadd.f32 %v4042, %v4043
        %v4045 = vsel %vm402, %v3785, 0.0
        %v4046 = vrot.slane %v4045, 4
        %v4047 = vadd.f32 %v4045, %v4046
        %v4048 = vrot.slane %v4047, 2
        %v4049 = vadd.f32 %v4047, %v4048
        %v4050 = vrot.slane %v4049, 1
        %v4051 = vadd.f32 %v4049, %v4050
        %v4052 = vsel %vm402, %v3786, 0.0
        %v4053 = vrot.slane %v4052, 4
        %v4054 = vadd.f32 %v4052, %v4053
        %v4055 = vrot.slane %v4054, 2
        %v4056 = vadd.f32 %v4054, %v4055
        %v4057 = vrot.slane %v4056, 1
        %v4058 = vadd.f32 %v4056, %v4057
        %v4059 = vsel %vm402, %v3787, 0.0
        %v4060 = vrot.slane %v4059, 4
        %v4061 = vadd.f32 %v4059, %v4060
        %v4062 = vrot.slane %v4061, 2
        %v4063 = vadd.f32 %v4061, %v4062
        %v4064 = vrot.slane %v4063, 1
        %v4065 = vadd.f32 %v4063, %v4064
        %v4066 = vsel %vm402, %v3788, 0.0
        %v4067 = vrot.slane %v4066, 4
        %v4068 = vadd.f32 %v4066, %v4067
        %v4069 = vrot.slane %v4068, 2
        %v4070 = vadd.f32 %v4068, %v4069
        %v4071 = vrot.slane %v4070, 1
        %v4072 = vadd.f32 %v4070, %v4071
        %v4073 = vsel %vm402, %v3789, 0.0
        %v4074 = vrot.slane %v4073, 4
        %v4075 = vadd.f32 %v4073, %v4074
        %v4076 = vrot.slane %v4075, 2
        %v4077 = vadd.f32 %v4075, %v4076
        %v4078 = vrot.slane %v4077, 1
        %v4079 = vadd.f32 %v4077, %v4078
        %v4080 = vsel %vm402, %v3790, 0.0
        %v4081 = vrot.slane %v4080, 4
        %v4082 = vadd.f32 %v4080, %v4081
        %v4083 = vrot.slane %v4082, 2
        %v4084 = vadd.f32 %v4082, %v4083
        %v4085 = vrot.slane %v4084, 1
        %v4086 = vadd.f32 %v4084, %v4085
        %v4087 = vsel %vm402, %v3791, 0.0
        %v4088 = vrot.slane %v4087, 4
        %v4089 = vadd.f32 %v4087, %v4088
        %v4090 = vrot.slane %v4089, 2
        %v4091 = vadd.f32 %v4089, %v4090
        %v4092 = vrot.slane %v4091, 1
        %v4093 = vadd.f32 %v4091, %v4092
        %v4094 = vsel %vm402, %v3792, 0.0
        %v4095 = vrot.slane %v4094, 4
        %v4096 = vadd.f32 %v4094, %v4095
        %v4097 = vrot.slane %v4096, 2
        %v4098 = vadd.f32 %v4096, %v4097
        %v4099 = vrot.slane %v4098, 1
        %v4100 = vadd.f32 %v4098, %v4099
        %v4101 = vsel %vm402, %v3793, 0.0
        %v4102 = vrot.slane %v4101, 4
        %v4103 = vadd.f32 %v4101, %v4102
        %v4104 = vrot.slane %v4103, 2
        %v4105 = vadd.f32 %v4103, %v4104
        %v4106 = vrot.slane %v4105, 1
        %v4107 = vadd.f32 %v4105, %v4106
        %v4108 = vsel %vm402, %v3794, 0.0
        %v4109 = vrot.slane %v4108, 4
        %v4110 = vadd.f32 %v4108, %v4109
        %v4111 = vrot.slane %v4110, 2
        %v4112 = vadd.f32 %v4110, %v4111
        %v4113 = vrot.slane %v4112, 1
        %v4114 = vadd.f32 %v4112, %v4113
        %v4115 = vsel %vm402, %v3795, 0.0
        %v4116 = vrot.slane %v4115, 4
        %v4117 = vadd.f32 %v4115, %v4116
        %v4118 = vrot.slane %v4117, 2
        %v4119 = vadd.f32 %v4117, %v4118
        %v4120 = vrot.slane %v4119, 1
        %v4121 = vadd.f32 %v4119, %v4120
        %v4122 = vsel %vm402, %v3796, 0.0
        %v4123 = vrot.slane %v4122, 4
        %v4124 = vadd.f32 %v4122, %v4123
        %v4125 = vrot.slane %v4124, 2
        %v4126 = vadd.f32 %v4124, %v4125
        %v4127 = vrot.slane %v4126, 1
        %v4128 = vadd.f32 %v4126, %v4127
        %v4129 = vsel %vm402, %v3797, 0.0
        %v4130 = vrot.slane %v4129, 4
        %v4131 = vadd.f32 %v4129, %v4130
        %v4132 = vrot.slane %v4131, 2
        %v4133 = vadd.f32 %v4131, %v4132
        %v4134 = vrot.slane %v4133, 1
        %v4135 = vadd.f32 %v4133, %v4134
        %v4136 = vsel %vm402, %v3798, 0.0
        %v4137 = vrot.slane %v4136, 4
        %v4138 = vadd.f32 %v4136, %v4137
        %v4139 = vrot.slane %v4138, 2
        %v4140 = vadd.f32 %v4138, %v4139
        %v4141 = vrot.slane %v4140, 1
        %v4142 = vadd.f32 %v4140, %v4141
        %v4143 = vsel %vm402, %v3799, 0.0
        %v4144 = vrot.slane %v4143, 4
        %v4145 = vadd.f32 %v4143, %v4144
        %v4146 = vrot.slane %v4145, 2
        %v4147 = vadd.f32 %v4145, %v4146
        %v4148 = vrot.slane %v4147, 1
        %v4149 = vadd.f32 %v4147, %v4148
        %v4150 = vsel %vm402, %v3800, 0.0
        %v4151 = vrot.slane %v4150, 4
        %v4152 = vadd.f32 %v4150, %v4151
        %v4153 = vrot.slane %v4152, 2
        %v4154 = vadd.f32 %v4152, %v4153
        %v4155 = vrot.slane %v4154, 1
        %v4156 = vadd.f32 %v4154, %v4155
        %v4157 = vsel %vm402, %v3801, 0.0
        %v4158 = vrot.slane %v4157, 4
        %v4159 = vadd.f32 %v4157, %v4158
        %v4160 = vrot.slane %v4159, 2
        %v4161 = vadd.f32 %v4159, %v4160
        %v4162 = vrot.slane %v4161, 1
        %v4163 = vadd.f32 %v4161, %v4162
        %v4164 = vsel %vm402, %v3802, 0.0
        %v4165 = vrot.slane %v4164, 4
        %v4166 = vadd.f32 %v4164, %v4165
        %v4167 = vrot.slane %v4166, 2
        %v4168 = vadd.f32 %v4166, %v4167
        %v4169 = vrot.slane %v4168, 1
        %v4170 = vadd.f32 %v4168, %v4169
        %v4171 = vsel %vm402, %v3803, 0.0
        %v4172 = vrot.slane %v4171, 4
        %v4173 = vadd.f32 %v4171, %v4172
        %v4174 = vrot.slane %v4173, 2
        %v4175 = vadd.f32 %v4173, %v4174
        %v4176 = vrot.slane %v4175, 1
        %v4177 = vadd.f32 %v4175, %v4176
        %v4178 = vsel %vm402, %v3804, 0.0
        %v4179 = vrot.slane %v4178, 4
        %v4180 = vadd.f32 %v4178, %v4179
        %v4181 = vrot.slane %v4180, 2
        %v4182 = vadd.f32 %v4180, %v4181
        %v4183 = vrot.slane %v4182, 1
        %v4184 = vadd.f32 %v4182, %v4183
        %v4185 = vsel %vm402, %v3805, 0.0
        %v4186 = vrot.slane %v4185, 4
        %v4187 = vadd.f32 %v4185, %v4186
        %v4188 = vrot.slane %v4187, 2
        %v4189 = vadd.f32 %v4187, %v4188
        %v4190 = vrot.slane %v4189, 1
        %v4191 = vadd.f32 %v4189, %v4190
        %v4192 = vsel %vm402, %v3806, 0.0
        %v4193 = vrot.slane %v4192, 4
        %v4194 = vadd.f32 %v4192, %v4193
        %v4195 = vrot.slane %v4194, 2
        %v4196 = vadd.f32 %v4194, %v4195
        %v4197 = vrot.slane %v4196, 1
        %v4198 = vadd.f32 %v4196, %v4197
        %v4199 = vsel %vm402, %v3807, 0.0
        %v4200 = vrot.slane %v4199, 4
        %v4201 = vadd.f32 %v4199, %v4200
        %v4202 = vrot.slane %v4201, 2
        %v4203 = vadd.f32 %v4201, %v4202
        %v4204 = vrot.slane %v4203, 1
        %v4205 = vadd.f32 %v4203, %v4204
        %v4206 = vsel %vm402, %v3808, 0.0
        %v4207 = vrot.slane %v4206, 4
        %v4208 = vadd.f32 %v4206, %v4207
        %v4209 = vrot.slane %v4208, 2
        %v4210 = vadd.f32 %v4208, %v4209
        %v4211 = vrot.slane %v4210, 1
        %v4212 = vadd.f32 %v4210, %v4211
        %v4213 = vsel %vm402, %v3809, 0.0
        %v4214 = vrot.slane %v4213, 4
        %v4215 = vadd.f32 %v4213, %v4214
        %v4216 = vrot.slane %v4215, 2
        %v4217 = vadd.f32 %v4215, %v4216
        %v4218 = vrot.slane %v4217, 1
        %v4219 = vadd.f32 %v4217, %v4218
        %v4220 = vsel %vm402, %v3810, 0.0
        %v4221 = vrot.slane %v4220, 4
        %v4222 = vadd.f32 %v4220, %v4221
        %v4223 = vrot.slane %v4222, 2
        %v4224 = vadd.f32 %v4222, %v4223
        %v4225 = vrot.slane %v4224, 1
        %v4226 = vadd.f32 %v4224, %v4225
        %v4227 = vsel %vm402, %v3811, 0.0
        %v4228 = vrot.slane %v4227, 4
        %v4229 = vadd.f32 %v4227, %v4228
        %v4230 = vrot.slane %v4229, 2
        %v4231 = vadd.f32 %v4229, %v4230
        %v4232 = vrot.slane %v4231, 1
        %v4233 = vadd.f32 %v4231, %v4232
        %v4234 = vsel %vm402, %v3812, 0.0
        %v4235 = vrot.slane %v4234, 4
        %v4236 = vadd.f32 %v4234, %v4235
        %v4237 = vrot.slane %v4236, 2
        %v4238 = vadd.f32 %v4236, %v4237
        %v4239 = vrot.slane %v4238, 1
        %v4240 = vadd.f32 %v4238, %v4239
        %v4241 = vsel %vm402, %v3813, 0.0
        %v4242 = vrot.slane %v4241, 4
        %v4243 = vadd.f32 %v4241, %v4242
        %v4244 = vrot.slane %v4243, 2
        %v4245 = vadd.f32 %v4243, %v4244
        %v4246 = vrot.slane %v4245, 1
        %v4247 = vadd.f32 %v4245, %v4246
        %v4248 = vsel %vm402, %v3814, 0.0
        %v4249 = vrot.slane %v4248, 4
        %v4250 = vadd.f32 %v4248, %v4249
        %v4251 = vrot.slane %v4250, 2
        %v4252 = vadd.f32 %v4250, %v4251
        %v4253 = vrot.slane %v4252, 1
        %v4254 = vadd.f32 %v4252, %v4253
        %v4255 = vsel %vm402, %v3815, 0.0
        %v4256 = vrot.slane %v4255, 4
        %v4257 = vadd.f32 %v4255, %v4256
        %v4258 = vrot.slane %v4257, 2
        %v4259 = vadd.f32 %v4257, %v4258
        %v4260 = vrot.slane %v4259, 1
        %v4261 = vadd.f32 %v4259, %v4260
        %v4262 = vsel %vm402, %v3816, 0.0
        %v4263 = vrot.slane %v4262, 4
        %v4264 = vadd.f32 %v4262, %v4263
        %v4265 = vrot.slane %v4264, 2
        %v4266 = vadd.f32 %v4264, %v4265
        %v4267 = vrot.slane %v4266, 1
        %v4268 = vadd.f32 %v4266, %v4267
        %v4269 = vsel %vm402, %v3817, 0.0
        %v4270 = vrot.slane %v4269, 4
        %v4271 = vadd.f32 %v4269, %v4270
        %v4272 = vrot.slane %v4271, 2
        %v4273 = vadd.f32 %v4271, %v4272
        %v4274 = vrot.slane %v4273, 1
        %v4275 = vadd.f32 %v4273, %v4274
        %v4276 = vsel %vm402, %v3818, 0.0
        %v4277 = vrot.slane %v4276, 4
        %v4278 = vadd.f32 %v4276, %v4277
        %v4279 = vrot.slane %v4278, 2
        %v4280 = vadd.f32 %v4278, %v4279
        %v4281 = vrot.slane %v4280, 1
        %v4282 = vadd.f32 %v4280, %v4281
        %v4283 = vsel %vm402, %v3819, 0.0
        %v4284 = vrot.slane %v4283, 4
        %v4285 = vadd.f32 %v4283, %v4284
        %v4286 = vrot.slane %v4285, 2
        %v4287 = vadd.f32 %v4285, %v4286
        %v4288 = vrot.slane %v4287, 1
        %v4289 = vadd.f32 %v4287, %v4288
        %v4290 = vsel %vm402, %v3820, 0.0
        %v4291 = vrot.slane %v4290, 4
        %v4292 = vadd.f32 %v4290, %v4291
        %v4293 = vrot.slane %v4292, 2
        %v4294 = vadd.f32 %v4292, %v4293
        %v4295 = vrot.slane %v4294, 1
        %v4296 = vadd.f32 %v4294, %v4295
        %v4297 = vsel %vm402, %v3821, 0.0
        %v4298 = vrot.slane %v4297, 4
        %v4299 = vadd.f32 %v4297, %v4298
        %v4300 = vrot.slane %v4299, 2
        %v4301 = vadd.f32 %v4299, %v4300
        %v4302 = vrot.slane %v4301, 1
        %v4303 = vadd.f32 %v4301, %v4302
        %v4304 = vsel %vm402, %v3822, 0.0
        %v4305 = vrot.slane %v4304, 4
        %v4306 = vadd.f32 %v4304, %v4305
        %v4307 = vrot.slane %v4306, 2
        %v4308 = vadd.f32 %v4306, %v4307
        %v4309 = vrot.slane %v4308, 1
        %v4310 = vadd.f32 %v4308, %v4309
        %v4311 = vsel %vm402, %v3823, 0.0
        %v4312 = vrot.slane %v4311, 4
        %v4313 = vadd.f32 %v4311, %v4312
        %v4314 = vrot.slane %v4313, 2
        %v4315 = vadd.f32 %v4313, %v4314
        %v4316 = vrot.slane %v4315, 1
        %v4317 = vadd.f32 %v4315, %v4316
        %v4318 = vsel %vm402, %v3824, 0.0
        %v4319 = vrot.slane %v4318, 4
        %v4320 = vadd.f32 %v4318, %v4319
        %v4321 = vrot.slane %v4320, 2
        %v4322 = vadd.f32 %v4320, %v4321
        %v4323 = vrot.slane %v4322, 1
        %v4324 = vadd.f32 %v4322, %v4323
        %v4325 = vsel %vm402, %v3825, 0.0
        %v4326 = vrot.slane %v4325, 4
        %v4327 = vadd.f32 %v4325, %v4326
        %v4328 = vrot.slane %v4327, 2
        %v4329 = vadd.f32 %v4327, %v4328
        %v4330 = vrot.slane %v4329, 1
        %v4331 = vadd.f32 %v4329, %v4330
        %v4332 = vsel %vm402, %v3826, 0.0
        %v4333 = vrot.slane %v4332, 4
        %v4334 = vadd.f32 %v4332, %v4333
        %v4335 = vrot.slane %v4334, 2
        %v4336 = vadd.f32 %v4334, %v4335
        %v4337 = vrot.slane %v4336, 1
        %v4338 = vadd.f32 %v4336, %v4337
        %v4339 = vsel %vm402, %v3827, 0.0
        %v4340 = vrot.slane %v4339, 4
        %v4341 = vadd.f32 %v4339, %v4340
        %v4342 = vrot.slane %v4341, 2
        %v4343 = vadd.f32 %v4341, %v4342
        %v4344 = vrot.slane %v4343, 1
        %v4345 = vadd.f32 %v4343, %v4344
        %v4346 = vsel %vm402, %v3828, 0.0
        %v4347 = vrot.slane %v4346, 4
        %v4348 = vadd.f32 %v4346, %v4347
        %v4349 = vrot.slane %v4348, 2
        %v4350 = vadd.f32 %v4348, %v4349
        %v4351 = vrot.slane %v4350, 1
        %v4352 = vadd.f32 %v4350, %v4351
        %v4353 = vsel %vm402, %v3829, 0.0
        %v4354 = vrot.slane %v4353, 4
        %v4355 = vadd.f32 %v4353, %v4354
        %v4356 = vrot.slane %v4355, 2
        %v4357 = vadd.f32 %v4355, %v4356
        %v4358 = vrot.slane %v4357, 1
        %v4359 = vadd.f32 %v4357, %v4358
        %v4360 = vsel %vm402, %v3830, 0.0
        %v4361 = vrot.slane %v4360, 4
        %v4362 = vadd.f32 %v4360, %v4361
        %v4363 = vrot.slane %v4362, 2
        %v4364 = vadd.f32 %v4362, %v4363
        %v4365 = vrot.slane %v4364, 1
        %v4366 = vadd.f32 %v4364, %v4365
        %v4367 = vsel %vm402, %v3831, 0.0
        %v4368 = vrot.slane %v4367, 4
        %v4369 = vadd.f32 %v4367, %v4368
        %v4370 = vrot.slane %v4369, 2
        %v4371 = vadd.f32 %v4369, %v4370
        %v4372 = vrot.slane %v4371, 1
        %v4373 = vadd.f32 %v4371, %v4372
        %v4374 = vsel %vm402, %v3832, 0.0
        %v4375 = vrot.slane %v4374, 4
        %v4376 = vadd.f32 %v4374, %v4375
        %v4377 = vrot.slane %v4376, 2
        %v4378 = vadd.f32 %v4376, %v4377
        %v4379 = vrot.slane %v4378, 1
        %v4380 = vadd.f32 %v4378, %v4379
        %v4381 = vsel %vm402, %v3833, 0.0
        %v4382 = vrot.slane %v4381, 4
        %v4383 = vadd.f32 %v4381, %v4382
        %v4384 = vrot.slane %v4383, 2
        %v4385 = vadd.f32 %v4383, %v4384
        %v4386 = vrot.slane %v4385, 1
        %v4387 = vadd.f32 %v4385, %v4386
        %v4388 = vsel %vm402, %v3834, 0.0
        %v4389 = vrot.slane %v4388, 4
        %v4390 = vadd.f32 %v4388, %v4389
        %v4391 = vrot.slane %v4390, 2
        %v4392 = vadd.f32 %v4390, %v4391
        %v4393 = vrot.slane %v4392, 1
        %v4394 = vadd.f32 %v4392, %v4393
        %v4395 = vsel %vm402, %v3835, 0.0
        %v4396 = vrot.slane %v4395, 4
        %v4397 = vadd.f32 %v4395, %v4396
        %v4398 = vrot.slane %v4397, 2
        %v4399 = vadd.f32 %v4397, %v4398
        %v4400 = vrot.slane %v4399, 1
        %v4401 = vadd.f32 %v4399, %v4400
        %v4402 = vsel %vm402, %v3836, 0.0
        %v4403 = vrot.slane %v4402, 4
        %v4404 = vadd.f32 %v4402, %v4403
        %v4405 = vrot.slane %v4404, 2
        %v4406 = vadd.f32 %v4404, %v4405
        %v4407 = vrot.slane %v4406, 1
        %v4408 = vadd.f32 %v4406, %v4407
        %v4409 = vsel %vm402, %v3837, 0.0
        %v4410 = vrot.slane %v4409, 4
        %v4411 = vadd.f32 %v4409, %v4410
        %v4412 = vrot.slane %v4411, 2
        %v4413 = vadd.f32 %v4411, %v4412
        %v4414 = vrot.slane %v4413, 1
        %v4415 = vadd.f32 %v4413, %v4414
        %v4416 = vsel %vm402, %v3838, 0.0
        %v4417 = vrot.slane %v4416, 4
        %v4418 = vadd.f32 %v4416, %v4417
        %v4419 = vrot.slane %v4418, 2
        %v4420 = vadd.f32 %v4418, %v4419
        %v4421 = vrot.slane %v4420, 1
        %v4422 = vadd.f32 %v4420, %v4421
        %v4423 = vsel %vm402, %v3839, 0.0
        %v4424 = vrot.slane %v4423, 4
        %v4425 = vadd.f32 %v4423, %v4424
        %v4426 = vrot.slane %v4425, 2
        %v4427 = vadd.f32 %v4425, %v4426
        %v4428 = vrot.slane %v4427, 1
        %v4429 = vadd.f32 %v4427, %v4428
        %v4430 = vsel %vm402, %v3840, 0.0
        %v4431 = vrot.slane %v4430, 4
        %v4432 = vadd.f32 %v4430, %v4431
        %v4433 = vrot.slane %v4432, 2
        %v4434 = vadd.f32 %v4432, %v4433
        %v4435 = vrot.slane %v4434, 1
        %v4436 = vadd.f32 %v4434, %v4435
        %v4437 = vsel %vm402, %v3841, 0.0
        %v4438 = vrot.slane %v4437, 4
        %v4439 = vadd.f32 %v4437, %v4438
        %v4440 = vrot.slane %v4439, 2
        %v4441 = vadd.f32 %v4439, %v4440
        %v4442 = vrot.slane %v4441, 1
        %v4443 = vadd.f32 %v4441, %v4442
        %v4444 = vsel %vm402, %v3842, 0.0
        %v4445 = vrot.slane %v4444, 4
        %v4446 = vadd.f32 %v4444, %v4445
        %v4447 = vrot.slane %v4446, 2
        %v4448 = vadd.f32 %v4446, %v4447
        %v4449 = vrot.slane %v4448, 1
        %v4450 = vadd.f32 %v4448, %v4449
        %v4451 = vsel %vm402, %v3843, 0.0
        %v4452 = vrot.slane %v4451, 4
        %v4453 = vadd.f32 %v4451, %v4452
        %v4454 = vrot.slane %v4453, 2
        %v4455 = vadd.f32 %v4453, %v4454
        %v4456 = vrot.slane %v4455, 1
        %v4457 = vadd.f32 %v4455, %v4456
        %v4458 = vsel %vm402, %v3844, 0.0
        %v4459 = vrot.slane %v4458, 4
        %v4460 = vadd.f32 %v4458, %v4459
        %v4461 = vrot.slane %v4460, 2
        %v4462 = vadd.f32 %v4460, %v4461
        %v4463 = vrot.slane %v4462, 1
        %v4464 = vadd.f32 %v4462, %v4463
        %v4465 = vsel %vm402, %v3845, 0.0
        %v4466 = vrot.slane %v4465, 4
        %v4467 = vadd.f32 %v4465, %v4466
        %v4468 = vrot.slane %v4467, 2
        %v4469 = vadd.f32 %v4467, %v4468
        %v4470 = vrot.slane %v4469, 1
        %v4471 = vadd.f32 %v4469, %v4470
        %v4472 = vsel %vm402, %v3846, 0.0
        %v4473 = vrot.slane %v4472, 4
        %v4474 = vadd.f32 %v4472, %v4473
        %v4475 = vrot.slane %v4474, 2
        %v4476 = vadd.f32 %v4474, %v4475
        %v4477 = vrot.slane %v4476, 1
        %v4478 = vadd.f32 %v4476, %v4477
        %v4479 = vsel %vm402, %v3847, 0.0
        %v4480 = vrot.slane %v4479, 4
        %v4481 = vadd.f32 %v4479, %v4480
        %v4482 = vrot.slane %v4481, 2
        %v4483 = vadd.f32 %v4481, %v4482
        %v4484 = vrot.slane %v4483, 1
        %v4485 = vadd.f32 %v4483, %v4484
        %v4486 = vsel %vm402, %v3848, 0.0
        %v4487 = vrot.slane %v4486, 4
        %v4488 = vadd.f32 %v4486, %v4487
        %v4489 = vrot.slane %v4488, 2
        %v4490 = vadd.f32 %v4488, %v4489
        %v4491 = vrot.slane %v4490, 1
        %v4492 = vadd.f32 %v4490, %v4491
        %v4493 = vsel %vm402, %v3849, 0.0
        %v4494 = vrot.slane %v4493, 4
        %v4495 = vadd.f32 %v4493, %v4494
        %v4496 = vrot.slane %v4495, 2
        %v4497 = vadd.f32 %v4495, %v4496
        %v4498 = vrot.slane %v4497, 1
        %v4499 = vadd.f32 %v4497, %v4498
        %v4500 = vsel %vm402, %v3850, 0.0
        %v4501 = vrot.slane %v4500, 4
        %v4502 = vadd.f32 %v4500, %v4501
        %v4503 = vrot.slane %v4502, 2
        %v4504 = vadd.f32 %v4502, %v4503
        %v4505 = vrot.slane %v4504, 1
        %v4506 = vadd.f32 %v4504, %v4505
        %v4507 = vsel %vm402, %v3851, 0.0
        %v4508 = vrot.slane %v4507, 4
        %v4509 = vadd.f32 %v4507, %v4508
        %v4510 = vrot.slane %v4509, 2
        %v4511 = vadd.f32 %v4509, %v4510
        %v4512 = vrot.slane %v4511, 1
        %v4513 = vadd.f32 %v4511, %v4512
        %v4514 = vsel %vm402, %v3852, 0.0
        %v4515 = vrot.slane %v4514, 4
        %v4516 = vadd.f32 %v4514, %v4515
        %v4517 = vrot.slane %v4516, 2
        %v4518 = vadd.f32 %v4516, %v4517
        %v4519 = vrot.slane %v4518, 1
        %v4520 = vadd.f32 %v4518, %v4519
        %v4521 = vsel %vm402, %v3853, 0.0
        %v4522 = vrot.slane %v4521, 4
        %v4523 = vadd.f32 %v4521, %v4522
        %v4524 = vrot.slane %v4523, 2
        %v4525 = vadd.f32 %v4523, %v4524
        %v4526 = vrot.slane %v4525, 1
        %v4527 = vadd.f32 %v4525, %v4526
        %v4528 = vsel %vm402, %v3854, 0.0
        %v4529 = vrot.slane %v4528, 4
        %v4530 = vadd.f32 %v4528, %v4529
        %v4531 = vrot.slane %v4530, 2
        %v4532 = vadd.f32 %v4530, %v4531
        %v4533 = vrot.slane %v4532, 1
        %v4534 = vadd.f32 %v4532, %v4533
        %v4535 = vsel %vm402, %v3855, 0.0
        %v4536 = vrot.slane %v4535, 4
        %v4537 = vadd.f32 %v4535, %v4536
        %v4538 = vrot.slane %v4537, 2
        %v4539 = vadd.f32 %v4537, %v4538
        %v4540 = vrot.slane %v4539, 1
        %v4541 = vadd.f32 %v4539, %v4540
        %v4542 = vsel %vm402, %v3856, 0.0
        %v4543 = vrot.slane %v4542, 4
        %v4544 = vadd.f32 %v4542, %v4543
        %v4545 = vrot.slane %v4544, 2
        %v4546 = vadd.f32 %v4544, %v4545
        %v4547 = vrot.slane %v4546, 1
        %v4548 = vadd.f32 %v4546, %v4547
        %v4549 = vsel %vm402, %v3857, 0.0
        %v4550 = vrot.slane %v4549, 4
        %v4551 = vadd.f32 %v4549, %v4550
        %v4552 = vrot.slane %v4551, 2
        %v4553 = vadd.f32 %v4551, %v4552
        %v4554 = vrot.slane %v4553, 1
        %v4555 = vadd.f32 %v4553, %v4554
        %v4556 = vsel %vm402, %v3858, 0.0
        %v4557 = vrot.slane %v4556, 4
        %v4558 = vadd.f32 %v4556, %v4557
        %v4559 = vrot.slane %v4558, 2
        %v4560 = vadd.f32 %v4558, %v4559
        %v4561 = vrot.slane %v4560, 1
        %v4562 = vadd.f32 %v4560, %v4561
        %v4563 = vsel %vm402, %v3859, 0.0
        %v4564 = vrot.slane %v4563, 4
        %v4565 = vadd.f32 %v4563, %v4564
        %v4566 = vrot.slane %v4565, 2
        %v4567 = vadd.f32 %v4565, %v4566
        %v4568 = vrot.slane %v4567, 1
        %v4569 = vadd.f32 %v4567, %v4568
        %v4570 = vsel %vm402, %v3860, 0.0
        %v4571 = vrot.slane %v4570, 4
        %v4572 = vadd.f32 %v4570, %v4571
        %v4573 = vrot.slane %v4572, 2
        %v4574 = vadd.f32 %v4572, %v4573
        %v4575 = vrot.slane %v4574, 1
        %v4576 = vadd.f32 %v4574, %v4575
        %v4577 = vsel %vm402, %v3861, 0.0
        %v4578 = vrot.slane %v4577, 4
        %v4579 = vadd.f32 %v4577, %v4578
        %v4580 = vrot.slane %v4579, 2
        %v4581 = vadd.f32 %v4579, %v4580
        %v4582 = vrot.slane %v4581, 1
        %v4583 = vadd.f32 %v4581, %v4582
        %v4584 = vsel %vm402, %v3862, 0.0
        %v4585 = vrot.slane %v4584, 4
        %v4586 = vadd.f32 %v4584, %v4585
        %v4587 = vrot.slane %v4586, 2
        %v4588 = vadd.f32 %v4586, %v4587
        %v4589 = vrot.slane %v4588, 1
        %v4590 = vadd.f32 %v4588, %v4589
        %v4591 = vsel %vm402, %v3863, 0.0
        %v4592 = vrot.slane %v4591, 4
        %v4593 = vadd.f32 %v4591, %v4592
        %v4594 = vrot.slane %v4593, 2
        %v4595 = vadd.f32 %v4593, %v4594
        %v4596 = vrot.slane %v4595, 1
        %v4597 = vadd.f32 %v4595, %v4596
        %v4598 = vsel %vm402, %v3864, 0.0
        %v4599 = vrot.slane %v4598, 4
        %v4600 = vadd.f32 %v4598, %v4599
        %v4601 = vrot.slane %v4600, 2
        %v4602 = vadd.f32 %v4600, %v4601
        %v4603 = vrot.slane %v4602, 1
        %v4604 = vadd.f32 %v4602, %v4603
        %v4605 = vsel %vm402, %v3865, 0.0
        %v4606 = vrot.slane %v4605, 4
        %v4607 = vadd.f32 %v4605, %v4606
        %v4608 = vrot.slane %v4607, 2
        %v4609 = vadd.f32 %v4607, %v4608
        %v4610 = vrot.slane %v4609, 1
        %v4611 = vadd.f32 %v4609, %v4610
        %v4612 = vsel %vm402, %v3866, 0.0
        %v4613 = vrot.slane %v4612, 4
        %v4614 = vadd.f32 %v4612, %v4613
        %v4615 = vrot.slane %v4614, 2
        %v4616 = vadd.f32 %v4614, %v4615
        %v4617 = vrot.slane %v4616, 1
        %v4618 = vadd.f32 %v4616, %v4617
        %v4619 = vsel %vm402, %v3867, 0.0
        %v4620 = vrot.slane %v4619, 4
        %v4621 = vadd.f32 %v4619, %v4620
        %v4622 = vrot.slane %v4621, 2
        %v4623 = vadd.f32 %v4621, %v4622
        %v4624 = vrot.slane %v4623, 1
        %v4625 = vadd.f32 %v4623, %v4624
        %v4626 = vsel %vm402, %v3868, 0.0
        %v4627 = vrot.slane %v4626, 4
        %v4628 = vadd.f32 %v4626, %v4627
        %v4629 = vrot.slane %v4628, 2
        %v4630 = vadd.f32 %v4628, %v4629
        %v4631 = vrot.slane %v4630, 1
        %v4632 = vadd.f32 %v4630, %v4631
        %v4633 = vsel %vm402, %v3869, 0.0
        %v4634 = vrot.slane %v4633, 4
        %v4635 = vadd.f32 %v4633, %v4634
        %v4636 = vrot.slane %v4635, 2
        %v4637 = vadd.f32 %v4635, %v4636
        %v4638 = vrot.slane %v4637, 1
        %v4639 = vadd.f32 %v4637, %v4638
        %v4640 = vsel %vm402, %v3870, 0.0
        %v4641 = vrot.slane %v4640, 4
        %v4642 = vadd.f32 %v4640, %v4641
        %v4643 = vrot.slane %v4642, 2
        %v4644 = vadd.f32 %v4642, %v4643
        %v4645 = vrot.slane %v4644, 1
        %v4646 = vadd.f32 %v4644, %v4645
        %v4647 = vsel %vm402, %v3871, 0.0
        %v4648 = vrot.slane %v4647, 4
        %v4649 = vadd.f32 %v4647, %v4648
        %v4650 = vrot.slane %v4649, 2
        %v4651 = vadd.f32 %v4649, %v4650
        %v4652 = vrot.slane %v4651, 1
        %v4653 = vadd.f32 %v4651, %v4652
        %v4654 = vsel %vm402, %v3872, 0.0
        %v4655 = vrot.slane %v4654, 4
        %v4656 = vadd.f32 %v4654, %v4655
        %v4657 = vrot.slane %v4656, 2
        %v4658 = vadd.f32 %v4656, %v4657
        %v4659 = vrot.slane %v4658, 1
        %v4660 = vadd.f32 %v4658, %v4659
        %v4661 = vsel %vm402, %v3873, 0.0
        %v4662 = vrot.slane %v4661, 4
        %v4663 = vadd.f32 %v4661, %v4662
        %v4664 = vrot.slane %v4663, 2
        %v4665 = vadd.f32 %v4663, %v4664
        %v4666 = vrot.slane %v4665, 1
        %v4667 = vadd.f32 %v4665, %v4666
        %v4668 = vsel %vm402, %v3874, 0.0
        %v4669 = vrot.slane %v4668, 4
        %v4670 = vadd.f32 %v4668, %v4669
        %v4671 = vrot.slane %v4670, 2
        %v4672 = vadd.f32 %v4670, %v4671
        %v4673 = vrot.slane %v4672, 1
        %v4674 = vadd.f32 %v4672, %v4673
        %v4675 = vsel %vm402, %v3875, 0.0
        %v4676 = vrot.slane %v4675, 4
        %v4677 = vadd.f32 %v4675, %v4676
        %v4678 = vrot.slane %v4677, 2
        %v4679 = vadd.f32 %v4677, %v4678
        %v4680 = vrot.slane %v4679, 1
        %v4681 = vadd.f32 %v4679, %v4680
        %v4682 = vsel %vm402, %v3876, 0.0
        %v4683 = vrot.slane %v4682, 4
        %v4684 = vadd.f32 %v4682, %v4683
        %v4685 = vrot.slane %v4684, 2
        %v4686 = vadd.f32 %v4684, %v4685
        %v4687 = vrot.slane %v4686, 1
        %v4688 = vadd.f32 %v4686, %v4687
        %v4689 = vsel %vm402, %v3877, 0.0
        %v4690 = vrot.slane %v4689, 4
        %v4691 = vadd.f32 %v4689, %v4690
        %v4692 = vrot.slane %v4691, 2
        %v4693 = vadd.f32 %v4691, %v4692
        %v4694 = vrot.slane %v4693, 1
        %v4695 = vadd.f32 %v4693, %v4694
        %v4696 = vsel %vm402, %v3878, 0.0
        %v4697 = vrot.slane %v4696, 4
        %v4698 = vadd.f32 %v4696, %v4697
        %v4699 = vrot.slane %v4698, 2
        %v4700 = vadd.f32 %v4698, %v4699
        %v4701 = vrot.slane %v4700, 1
        %v4702 = vadd.f32 %v4700, %v4701
        %v4703 = vsel %vm402, %v3879, 0.0
        %v4704 = vrot.slane %v4703, 4
        %v4705 = vadd.f32 %v4703, %v4704
        %v4706 = vrot.slane %v4705, 2
        %v4707 = vadd.f32 %v4705, %v4706
        %v4708 = vrot.slane %v4707, 1
        %v4709 = vadd.f32 %v4707, %v4708
        %v4710 = vsel %vm402, %v3880, 0.0
        %v4711 = vrot.slane %v4710, 4
        %v4712 = vadd.f32 %v4710, %v4711
        %v4713 = vrot.slane %v4712, 2
        %v4714 = vadd.f32 %v4712, %v4713
        %v4715 = vrot.slane %v4714, 1
        %v4716 = vadd.f32 %v4714, %v4715
        %v4717 = vsel %vm402, %v3881, 0.0
        %v4718 = vrot.slane %v4717, 4
        %v4719 = vadd.f32 %v4717, %v4718
        %v4720 = vrot.slane %v4719, 2
        %v4721 = vadd.f32 %v4719, %v4720
        %v4722 = vrot.slane %v4721, 1
        %v4723 = vadd.f32 %v4721, %v4722
        %v4724 = vsel %vm402, %v3882, 0.0
        %v4725 = vrot.slane %v4724, 4
        %v4726 = vadd.f32 %v4724, %v4725
        %v4727 = vrot.slane %v4726, 2
        %v4728 = vadd.f32 %v4726, %v4727
        %v4729 = vrot.slane %v4728, 1
        %v4730 = vadd.f32 %v4728, %v4729
        %v4731 = vsel %vm402, %v3883, 0.0
        %v4732 = vrot.slane %v4731, 4
        %v4733 = vadd.f32 %v4731, %v4732
        %v4734 = vrot.slane %v4733, 2
        %v4735 = vadd.f32 %v4733, %v4734
        %v4736 = vrot.slane %v4735, 1
        %v4737 = vadd.f32 %v4735, %v4736
        %v4738 = vsel %vm402, %v3884, 0.0
        %v4739 = vrot.slane %v4738, 4
        %v4740 = vadd.f32 %v4738, %v4739
        %v4741 = vrot.slane %v4740, 2
        %v4742 = vadd.f32 %v4740, %v4741
        %v4743 = vrot.slane %v4742, 1
        %v4744 = vadd.f32 %v4742, %v4743
        %v4745 = vsel %vm402, %v3885, 0.0
        %v4746 = vrot.slane %v4745, 4
        %v4747 = vadd.f32 %v4745, %v4746
        %v4748 = vrot.slane %v4747, 2
        %v4749 = vadd.f32 %v4747, %v4748
        %v4750 = vrot.slane %v4749, 1
        %v4751 = vadd.f32 %v4749, %v4750
        %v4752 = vsel %vm402, %v3886, 0.0
        %v4753 = vrot.slane %v4752, 4
        %v4754 = vadd.f32 %v4752, %v4753
        %v4755 = vrot.slane %v4754, 2
        %v4756 = vadd.f32 %v4754, %v4755
        %v4757 = vrot.slane %v4756, 1
        %v4758 = vadd.f32 %v4756, %v4757
        %v4759 = vsel %vm402, %v3887, 0.0
        %v4760 = vrot.slane %v4759, 4
        %v4761 = vadd.f32 %v4759, %v4760
        %v4762 = vrot.slane %v4761, 2
        %v4763 = vadd.f32 %v4761, %v4762
        %v4764 = vrot.slane %v4763, 1
        %v4765 = vadd.f32 %v4763, %v4764
        %v4766 = vsel %vm402, %v3888, 0.0
        %v4767 = vrot.slane %v4766, 4
        %v4768 = vadd.f32 %v4766, %v4767
        %v4769 = vrot.slane %v4768, 2
        %v4770 = vadd.f32 %v4768, %v4769
        %v4771 = vrot.slane %v4770, 1
        %v4772 = vadd.f32 %v4770, %v4771
        %v4773 = vsel %vm402, %v3889, 0.0
        %v4774 = vrot.slane %v4773, 4
        %v4775 = vadd.f32 %v4773, %v4774
        %v4776 = vrot.slane %v4775, 2
        %v4777 = vadd.f32 %v4775, %v4776
        %v4778 = vrot.slane %v4777, 1
        %v4779 = vadd.f32 %v4777, %v4778
        %v4780 = vsel %vm402, %v3890, 0.0
        %v4781 = vrot.slane %v4780, 4
        %v4782 = vadd.f32 %v4780, %v4781
        %v4783 = vrot.slane %v4782, 2
        %v4784 = vadd.f32 %v4782, %v4783
        %v4785 = vrot.slane %v4784, 1
        %v4786 = vadd.f32 %v4784, %v4785
        %v4787 = vld [vmem:[%s3] sm:$0x1]
        %v4788 = vld [vmem:[#allocation2] sm:$0x1]
        %4790 = vset.pattern.permute.xlu0 0
        %4791 = vperm.xlu0 %4790, %v4788
        %v4792 = vpop.permute.xlu0 %4791
        %v4794 = vlaneseq
        %v4795 = vshrl.u32 %v4794, 7
        %v4796 = vsub.s32 0, %v4795
        %v4797 = vrot.slane %v4792, %v4796
        %v4926 = vsel %vm2650, %v3904, %v3897
        %v4927 = vsel %vm2652, %v3911, %v4926
        %v4928 = vsel %vm2654, %v3918, %v4927
        %v4929 = vsel %vm2656, %v3925, %v4928
        %v4930 = vsel %vm2658, %v3932, %v4929
        %v4931 = vsel %vm2660, %v3939, %v4930
        %v4932 = vsel %vm2662, %v3946, %v4931
        %v4933 = vsel %vm2650, %v3960, %v3953
        %v4934 = vsel %vm2652, %v3967, %v4933
        %v4935 = vsel %vm2654, %v3974, %v4934
        %v4936 = vsel %vm2656, %v3981, %v4935
        %v4937 = vsel %vm2658, %v3988, %v4936
        %v4938 = vsel %vm2660, %v3995, %v4937
        %v4939 = vsel %vm2662, %v4002, %v4938
        %v4940 = vsel %vm2650, %v4016, %v4009
        %v4941 = vsel %vm2652, %v4023, %v4940
        %v4942 = vsel %vm2654, %v4030, %v4941
        %v4943 = vsel %vm2656, %v4037, %v4942
        %v4944 = vsel %vm2658, %v4044, %v4943
        %v4945 = vsel %vm2660, %v4051, %v4944
        %v4946 = vsel %vm2662, %v4058, %v4945
        %v4947 = vsel %vm2650, %v4072, %v4065
        %v4948 = vsel %vm2652, %v4079, %v4947
        %v4949 = vsel %vm2654, %v4086, %v4948
        %v4950 = vsel %vm2656, %v4093, %v4949
        %v4951 = vsel %vm2658, %v4100, %v4950
        %v4952 = vsel %vm2660, %v4107, %v4951
        %v4953 = vsel %vm2662, %v4114, %v4952
        %v4954 = vsel %vm2650, %v4128, %v4121
        %v4955 = vsel %vm2652, %v4135, %v4954
        %v4956 = vsel %vm2654, %v4142, %v4955
        %v4957 = vsel %vm2656, %v4149, %v4956
        %v4958 = vsel %vm2658, %v4156, %v4957
        %v4959 = vsel %vm2660, %v4163, %v4958
        %v4960 = vsel %vm2662, %v4170, %v4959
        %v4961 = vsel %vm2650, %v4184, %v4177
        %v4962 = vsel %vm2652, %v4191, %v4961
        %v4963 = vsel %vm2654, %v4198, %v4962
        %v4964 = vsel %vm2656, %v4205, %v4963
        %v4965 = vsel %vm2658, %v4212, %v4964
        %v4966 = vsel %vm2660, %v4219, %v4965
        %v4967 = vsel %vm2662, %v4226, %v4966
        %v4968 = vsel %vm2650, %v4240, %v4233
        %v4969 = vsel %vm2652, %v4247, %v4968
        %v4970 = vsel %vm2654, %v4254, %v4969
        %v4971 = vsel %vm2656, %v4261, %v4970
        %v4972 = vsel %vm2658, %v4268, %v4971
        %v4973 = vsel %vm2660, %v4275, %v4972
        %v4974 = vsel %vm2662, %v4282, %v4973
        %v4975 = vsel %vm2650, %v4296, %v4289
        %v4976 = vsel %vm2652, %v4303, %v4975
        %v4977 = vsel %vm2654, %v4310, %v4976
        %v4978 = vsel %vm2656, %v4317, %v4977
        %v4979 = vsel %vm2658, %v4324, %v4978
        %v4980 = vsel %vm2660, %v4331, %v4979
        %v4981 = vsel %vm2662, %v4338, %v4980
        %v4982 = vsel %vm2650, %v4352, %v4345
        %v4983 = vsel %vm2652, %v4359, %v4982
        %v4984 = vsel %vm2654, %v4366, %v4983
        %v4985 = vsel %vm2656, %v4373, %v4984
        %v4986 = vsel %vm2658, %v4380, %v4985
        %v4987 = vsel %vm2660, %v4387, %v4986
        %v4988 = vsel %vm2662, %v4394, %v4987
        %v4989 = vsel %vm2650, %v4408, %v4401
        %v4990 = vsel %vm2652, %v4415, %v4989
        %v4991 = vsel %vm2654, %v4422, %v4990
        %v4992 = vsel %vm2656, %v4429, %v4991
        %v4993 = vsel %vm2658, %v4436, %v4992
        %v4994 = vsel %vm2660, %v4443, %v4993
        %v4995 = vsel %vm2662, %v4450, %v4994
        %v4996 = vsel %vm2650, %v4464, %v4457
        %v4997 = vsel %vm2652, %v4471, %v4996
        %v4998 = vsel %vm2654, %v4478, %v4997
        %v4999 = vsel %vm2656, %v4485, %v4998
        %v5000 = vsel %vm2658, %v4492, %v4999
        %v5001 = vsel %vm2660, %v4499, %v5000
        %v5002 = vsel %vm2662, %v4506, %v5001
        %v5003 = vsel %vm2650, %v4520, %v4513
        %v5004 = vsel %vm2652, %v4527, %v5003
        %v5005 = vsel %vm2654, %v4534, %v5004
        %v5006 = vsel %vm2656, %v4541, %v5005
        %v5007 = vsel %vm2658, %v4548, %v5006
        %v5008 = vsel %vm2660, %v4555, %v5007
        %v5009 = vsel %vm2662, %v4562, %v5008
        %v5010 = vsel %vm2650, %v4576, %v4569
        %v5011 = vsel %vm2652, %v4583, %v5010
        %v5012 = vsel %vm2654, %v4590, %v5011
        %v5013 = vsel %vm2656, %v4597, %v5012
        %v5014 = vsel %vm2658, %v4604, %v5013
        %v5015 = vsel %vm2660, %v4611, %v5014
        %v5016 = vsel %vm2662, %v4618, %v5015
        %v5017 = vsel %vm2650, %v4632, %v4625
        %v5018 = vsel %vm2652, %v4639, %v5017
        %v5019 = vsel %vm2654, %v4646, %v5018
        %v5020 = vsel %vm2656, %v4653, %v5019
        %v5021 = vsel %vm2658, %v4660, %v5020
        %v5022 = vsel %vm2660, %v4667, %v5021
        %v5023 = vsel %vm2662, %v4674, %v5022
        %v5024 = vsel %vm2650, %v4688, %v4681
        %v5025 = vsel %vm2652, %v4695, %v5024
        %v5026 = vsel %vm2654, %v4702, %v5025
        %v5027 = vsel %vm2656, %v4709, %v5026
        %v5028 = vsel %vm2658, %v4716, %v5027
        %v5029 = vsel %vm2660, %v4723, %v5028
        %v5030 = vsel %vm2662, %v4730, %v5029
        %v5031 = vsel %vm2650, %v4744, %v4737
        %v5032 = vsel %vm2652, %v4751, %v5031
        %v5033 = vsel %vm2654, %v4758, %v5032
        %v5034 = vsel %vm2656, %v4765, %v5033
        %v5035 = vsel %vm2658, %v4772, %v5034
        %v5036 = vsel %vm2660, %v4779, %v5035
        %v5037 = vsel %vm2662, %v4786, %v5036
        %v5039 = vsel %vm402, %v4787, 0
        %v5041 = vsel %vm402, %v4932, 0
        %v5043 = vsel %vm402, %v4939, 0
        %v5045 = vsel %vm402, %v4946, 0
        %v5047 = vsel %vm402, %v4953, 0
        %v5049 = vsel %vm402, %v4960, 0
        %v5051 = vsel %vm402, %v4967, 0
        %v5053 = vsel %vm402, %v4974, 0
        %v5055 = vsel %vm402, %v4981, 0
        %v5057 = vsel %vm402, %v4988, 0
        %v5059 = vsel %vm402, %v4995, 0
        %v5061 = vsel %vm402, %v5002, 0
        %v5063 = vsel %vm402, %v5009, 0
        %v5065 = vsel %vm402, %v5016, 0
        %v5067 = vsel %vm402, %v5023, 0
        %v5069 = vsel %vm402, %v5030, 0
        %v5071 = vsel %vm402, %v5037, 0
        %5073 = vmatprep.subr.mxu0 0.0
        %5074 = vmatpush1.xpose.msra.mxu0 %v5071
        %5075 = vmatprep.subr.mxu0 0.0
        %5076 = vmatpush1.xpose.msra.mxu0 %v5069
        %5077 = vmatprep.subr.mxu0 0.0
        %5078 = vmatpush1.xpose.msra.mxu0 %v5067
        %5079 = vmatprep.subr.mxu0 0.0
        %5080 = vmatpush1.xpose.msra.mxu0 %v5065
        %5081 = vmatprep.subr.mxu0 0.0
        %5082 = vmatpush1.xpose.msra.mxu0 %v5063
        %5083 = vmatprep.subr.mxu0 0.0
        %5084 = vmatpush1.xpose.msra.mxu0 %v5061
        %5085 = vmatprep.subr.mxu0 0.0
        %5086 = vmatpush1.xpose.msra.mxu0 %v5059
        %5087 = vmatprep.subr.mxu0 0.0
        %5088 = vmatpush1.xpose.msra.mxu0 %v5057
        %5089 = vmatprep.subr.mxu0 0.0
        %5090 = vmatpush1.xpose.msra.mxu0 %v5055
        %5091 = vmatprep.subr.mxu0 0.0
        %5092 = vmatpush1.xpose.msra.mxu0 %v5053
        %5093 = vmatprep.subr.mxu0 0.0
        %5094 = vmatpush1.xpose.msra.mxu0 %v5051
        %5095 = vmatprep.subr.mxu0 0.0
        %5096 = vmatpush1.xpose.msra.mxu0 %v5049
        %5097 = vmatprep.subr.mxu0 0.0
        %5098 = vmatpush1.xpose.msra.mxu0 %v5047
        %5099 = vmatprep.subr.mxu0 0.0
        %5100 = vmatpush1.xpose.msra.mxu0 %v5045
        %5101 = vmatprep.subr.mxu0 0.0
        %5102 = vmatpush1.xpose.msra.mxu0 %v5043
        %5103 = vmatprep.subr.mxu0 0.0
        %5104 = vmatpush1.xpose.msra.mxu0 %v5041
        %5105 = vmatprep.subr.mxu0 0.0
        %5106 = vmatpush2.xpose.msra.mxu0 0.0
        %5107 = vmatprep.subr.mxu0 0.0
        %5108 = vmatpush2.xpose.msra.mxu0 0.0
        %5109 = vmatprep.subr.mxu0 0.0
        %5110 = vmatpush2.xpose.msra.mxu0 0.0
        %5111 = vmatprep.subr.mxu0 0.0
        %5112 = vmatpush2.xpose.msra.mxu0 0.0
        %5113 = vmatprep.subr.mxu0 0.0
        %5114 = vmatpush2.xpose.msra.mxu0 0.0
        %5115 = vmatprep.subr.mxu0 0.0
        %5116 = vmatpush2.xpose.msra.mxu0 0.0
        %5117 = vmatprep.subr.mxu0 0.0
        %5118 = vmatpush2.xpose.msra.mxu0 0.0
        %5119 = vmatprep.subr.mxu0 0.0
        %5120 = vmatpush2.xpose.msra.mxu0 0.0
        %5121 = vmatprep.subr.mxu0 0.0
        %5122 = vmatpush2.xpose.msra.mxu0 0.0
        %5123 = vmatprep.subr.mxu0 0.0
        %5124 = vmatpush2.xpose.msra.mxu0 0.0
        %5125 = vmatprep.subr.mxu0 0.0
        %5126 = vmatpush2.xpose.msra.mxu0 0.0
        %5127 = vmatprep.subr.mxu0 0.0
        %5128 = vmatpush2.xpose.msra.mxu0 0.0
        %5129 = vmatprep.subr.mxu0 0.0
        %5130 = vmatpush2.xpose.msra.mxu0 0.0
        %5131 = vmatprep.subr.mxu0 0.0
        %5132 = vmatpush2.xpose.msra.mxu0 0.0
        %5133 = vmatprep.subr.mxu0 0.0
        %5134 = vmatpush2.xpose.msra.mxu0 0.0
        %5135 = vmatprep.subr.mxu0 0.0
        %5136 = vmatpush2.xpose.msra.mxu0 0.0
        %5137 = vmatprep.mubr.f32.mxu0 0.0
        %5138 = vmatmul.mubr.f32.gmra.mxu0 %v5039
        %v5139 = vpop.f32.mrf.mxu0
        %v5140 = vadd.f32 %v4797, %v5139
        %v5141 = vpop.f32.mrf.mxu0
        %5142 = vdwg.mxu0
        %5143 = vst [vmem:[%s250] sm:$0x1] %v5140
        %s5144 = sand.u32 %s144, 1
        %s5145 = scalar_lea.sflag [#allocation4], %s5144
        %s5146 = sand.u32 %s144, 1
        %s5147 = scalar_lea.vmem [#allocation3], %s5146
        %s5148 = sand.u32 %s170, 1
        %s5149 = scalar_lea.sflag [#allocation6], %s5148
        %s5150 = sand.u32 %s170, 1
        %s5151 = smul.addr %s5150, 8
        %s5152 = scalar_lea.vmem [#allocation5], %s5151
        // Predicated region
        $region41: #{tpu_custom_call.1} parent=39 // pred_check
          %p5153 = pneg %p154
        $region42: #{tpu_custom_call.1} parent=39 // pred_check_branch
          %5155 = sbr.rel (%p5153) target = $region44
        $region43: #{tpu_custom_call.1} parent=39 // pred_region
          %s5157 = ssub.s32 16, 16
          %5158 = vsyncadd %s5145, %s5157
          %s5159 = smul.addr %s26, 16
          %s5160 = scalar_lea.hbm %s5, %s5159
          %s5162 = sshll.u32 %s5147, 4
          %s5163 = int_to_ptr.vmem [resolvable:$true] %s5162
          %5165 = dma.vmem_to_hbm [thread:$0]  %s5163, 16, %s5160, %s5145
        $region44: #{tpu_custom_call.1} parent=39 // pred_fallthru
          _
        // Predicated region
        $region45: #{tpu_custom_call.1} parent=39 // pred_check
          %p5166 = pneg %p180
        $region46: #{tpu_custom_call.1} parent=39 // pred_check_branch
          %5168 = sbr.rel (%p5166) target = $region48
        $region47: #{tpu_custom_call.1} parent=39 // pred_region
          %s5170 = ssub.s32 128, 128
          %5171 = vsyncadd %s5149, %s5170
          %s5172 = smul.addr %s26, 128
          %s5173 = scalar_lea.hbm %s6, %s5172
          %s5175 = sshll.u32 %s5152, 4
          %s5176 = int_to_ptr.vmem [resolvable:$true] %s5175
          %5178 = dma.vmem_to_hbm [thread:$0]  %s5176, 128, %s5173, %s5149
        $region48: #{tpu_custom_call.1} parent=39 // pred_fallthru
          _
      $region40: #{tpu_custom_call.1} parent=5 // pred_fallthru
        _
      %p5179 = scmp.le.s32.totalorder 2, %s21
      // Predicated region
      $region49: #{tpu_custom_call.1} parent=5 // pred_check
        %p5180 = pneg %p5179
      $region50: #{tpu_custom_call.1} parent=5 // pred_check_branch
        %5182 = sbr.rel (%p5180) target = $region52
      $region51: #{tpu_custom_call.1} parent=5 // pred_region
        %s5183 = ssub.s32 %s21, 2
        // Predicated region
        $region53: #{tpu_custom_call.1} parent=51 // pred_check
          %p5184 = pneg %p160
        $region54: #{tpu_custom_call.1} parent=51 // pred_check_branch
          %5186 = sbr.rel (%p5184) target = $region56
        $region55: #{tpu_custom_call.1} parent=51 // pred_region
          %s5187 = sand.u32 %s145, 1
          %s5188 = scalar_lea.sflag [#allocation4], %s5187
          %s5189 = sand.u32 %s145, 1
          %s5190 = scalar_lea.vmem [#allocation3], %s5189
          %5191 = dma.done %s5188, 16
        $region56: #{tpu_custom_call.1} parent=51 // pred_fallthru
          _
        // Predicated region
        $region57: #{tpu_custom_call.1} parent=51 // pred_check
          %p5192 = pneg %p186
        $region58: #{tpu_custom_call.1} parent=51 // pred_check_branch
          %5194 = sbr.rel (%p5192) target = $region60
        $region59: #{tpu_custom_call.1} parent=51 // pred_region
          %s5195 = sand.u32 %s171, 1
          %s5196 = scalar_lea.sflag [#allocation6], %s5195
          %s5197 = sand.u32 %s171, 1
          %s5198 = smul.addr %s5197, 8
          %s5199 = scalar_lea.vmem [#allocation5], %s5198
          %5200 = dma.done %s5196, 128
        $region60: #{tpu_custom_call.1} parent=51 // pred_fallthru
          _
      $region52: #{tpu_custom_call.1} parent=5 // pred_fallthru
        _
    $region6: #{tpu_custom_call.1} parent=1 // loop_footer
      %s25 = sadd.s32 1, %s21
    $region7: #{tpu_custom_call.1} parent=1 // loop_footer_branch
      %20 = sbr.rel target = $region3
    $region8: #{tpu_custom_call.1} parent=1 // loop_exit
      _
    %5201 = vsyncpa [#allocation4], 1
    %s5202 = scalar_lea.sflag [#allocation4], 1
    %5203 = vsyncpa %s5202, 1
    %5204 = vsyncpa [#allocation6], 1
    %s5205 = scalar_lea.sflag [#allocation6], 1
    %5206 = vsyncpa %s5205, 1

</llo_original>
